<compile_context>
chip_gen: v7x
topology: tpu7x:2x2x1
jax: 0.10.0
libtpu: 0.0.40
codegen_flags: <defaults>
</compile_context>

<pallas_src>
import functools

import jax
import jax.numpy as jnp
from jax import lax
from jax.experimental import pallas as pl
from jax.experimental.pallas import tpu as pltpu

LEAKY_SLOPE = 0.1
HIDDEN1 = 512
HIDDEN2 = 256
RESIDENT_FLAT_DIM_LIMIT = 4096     # full layer-1 weight kept VMEM-resident below this
VMEM_LIMIT_BYTES = 48 << 20        # safe on v7x (64 MiB/TC), comfortable on v5e/v6e


def _leaky_relu(x):
    return jnp.where(x >= 0, x, LEAKY_SLOPE * x)


def _softplus(x):
    # numerically stable softplus (beta=1), matches torch.nn.Softplus defaults
    return jnp.maximum(x, 0.0) + jnp.log1p(jnp.exp(-jnp.abs(x)))


def _round_up(n, m):
    return ((n + m - 1) // m) * m


def _epilogue(y1_f32, w2bd_ref, b2f_ref, w3bd_ref, b3f_ref, out_ref, latent_dim):
    """Block-diagonal fused layers 2+3 for both branches; single lane-dense store."""
    y2 = _leaky_relu(
        jnp.dot(y1_f32.astype(jnp.bfloat16), w2bd_ref[...],
                preferred_element_type=jnp.float32) + b2f_ref[...])
    z = jnp.dot(y2.astype(jnp.bfloat16), w3bd_ref[...],
                preferred_element_type=jnp.float32) + b3f_ref[...]
    col = lax.broadcasted_iota(jnp.int32, z.shape, 1)
    var_mask = (col >= latent_dim) & (col < 2 * latent_dim)
    out_ref[...] = jnp.where(var_mask, _softplus(z), z).astype(out_ref.dtype)


def mlp_encoder_kernel_resident(
    x_ref,            # (tile_b, flat_dim) bf16
    w1f_ref,          # (flat_dim, 2*HIDDEN1) bf16  -- [mw1 | vw1], constant index -> resident
    b1f_ref,          # (1, 2*HIDDEN1) f32
    w2bd_ref, b2f_ref,  # block-diag layer 2
    w3bd_ref, b3f_ref,  # block-diag layer 3 (padded to out_cols lanes)
    out_ref,          # (tile_b, out_cols) f32  -- [z_mu | softplus(z_var) | pad]
    *, latent_dim,
):
    y1 = _leaky_relu(
        jnp.dot(x_ref[...], w1f_ref[...], preferred_element_type=jnp.float32)
        + b1f_ref[...])
    _epilogue(y1, w2bd_ref, b2f_ref, w3bd_ref, b3f_ref, out_ref, latent_dim)


def mlp_encoder_kernel_ktiled(
    x_ref,            # (tile_b, tile_k) bf16
    w1f_ref,          # (tile_k, 2*HIDDEN1) bf16
    b1f_ref,          # (1, 2*HIDDEN1) f32
    w2bd_ref, b2f_ref,
    w3bd_ref, b3f_ref,
    out_ref,          # (tile_b, out_cols) f32
    acc_ref,          # (tile_b, 2*HIDDEN1) f32 layer-1 accumulator
    *, latent_dim,
):
    k = pl.program_id(1)

    @pl.when(k == 0)
    def _():
        # initialize with the broadcast bias: bias add disappears from the epilogue
        acc_ref[...] = jnp.broadcast_to(b1f_ref[...], acc_ref.shape)

    acc_ref[...] += jnp.dot(x_ref[...], w1f_ref[...],
                            preferred_element_type=jnp.float32)

    @pl.when(k == pl.num_programs(1) - 1)
    def _():
        _epilogue(_leaky_relu(acc_ref[...]),
                  w2bd_ref, b2f_ref, w3bd_ref, b3f_ref, out_ref, latent_dim)


def _pick_tile_k(flat_dim):
    for cand in (2048, 1024, 512, 256, 128):
        if flat_dim >= cand and flat_dim % cand == 0:
            return cand
    return flat_dim


def prepare_kernel_params(params, latent_dim):
    """Fuse both branches: layer-1 column-concat, layers 2/3 block-diagonal.

    Weights bf16, biases f32. Layer-3 output padded to a multiple of 128 lanes.
    """
    out_cols = _round_up(2 * latent_dim, 128)

    w1f = jnp.concatenate([params["mw1"], params["vw1"]], axis=1)
    b1f = jnp.concatenate([params["mb1"], params["vb1"]], axis=1)

    w2bd = jnp.zeros((2 * HIDDEN1, 2 * HIDDEN2), jnp.float32)
    w2bd = w2bd.at[:HIDDEN1, :HIDDEN2].set(params["mw2"])
    w2bd = w2bd.at[HIDDEN1:, HIDDEN2:].set(params["vw2"])
    b2f = jnp.concatenate([params["mb2"], params["vb2"]], axis=1)

    w3bd = jnp.zeros((2 * HIDDEN2, out_cols), jnp.float32)
    w3bd = w3bd.at[:HIDDEN2, :latent_dim].set(params["mw3"])
    w3bd = w3bd.at[HIDDEN2:, latent_dim:2 * latent_dim].set(params["vw3"])
    b3f = jnp.zeros((1, out_cols), jnp.float32)
    b3f = b3f.at[:, :latent_dim].set(params["mb3"])
    b3f = b3f.at[:, latent_dim:2 * latent_dim].set(params["vb3"])

    return {
        "w1f": w1f.astype(jnp.bfloat16), "b1f": b1f.astype(jnp.float32),
        "w2bd": w2bd.astype(jnp.bfloat16), "b2f": b2f.astype(jnp.float32),
        "w3bd": w3bd.astype(jnp.bfloat16), "b3f": b3f.astype(jnp.float32),
    }


@functools.partial(jax.jit, static_argnames=("latent_dim",))
def mlp_encoder_forward(x, kparams, *, latent_dim):
    B = x.shape[0]
    x_flat = x.reshape(B, -1).astype(jnp.bfloat16)   # same row-major flatten as torch reshape
    flat_dim = x_flat.shape[1]
    out_cols = kparams["w3bd"].shape[1]

    # batch tiling: big M tiles so layer-1 weights are re-streamed as rarely as possible
    if B >= 128:
        tile_b = min(_round_up(B, 128), 512)
    else:
        tile_b = _round_up(B, 16)
    b_pad = _round_up(B, tile_b)
    if b_pad != B:
        x_flat = jnp.pad(x_flat, ((0, b_pad - B), (0, 0)))

    weight_args = (kparams["w1f"], kparams["b1f"],
                   kparams["w2bd"], kparams["b2f"],
                   kparams["w3bd"], kparams["b3f"])

    if flat_dim <= RESIDENT_FLAT_DIM_LIMIT:
        # --- resident path: no K axis, layer-1 weight DMA'd once, no accumulator ---
        const = lambda i: (0, 0)
        grid = (b_pad // tile_b,)
        kernel = functools.partial(mlp_encoder_kernel_resident, latent_dim=latent_dim)
        in_specs = [
            pl.BlockSpec((tile_b, flat_dim), lambda i: (i, 0)),          # x
            pl.BlockSpec((flat_dim, 2 * HIDDEN1), const),                # w1f (resident)
            pl.BlockSpec((1, 2 * HIDDEN1), const),                       # b1f
            pl.BlockSpec((2 * HIDDEN1, 2 * HIDDEN2), const),             # w2bd
            pl.BlockSpec((1, 2 * HIDDEN2), const),                       # b2f
            pl.BlockSpec((2 * HIDDEN2, out_cols), const),                # w3bd
            pl.BlockSpec((1, out_cols), const),                          # b3f
        ]
        out_specs = pl.BlockSpec((tile_b, out_cols), lambda i: (i, 0))
        scratch_shapes = ()
        dim_sem = ("parallel",)
    else:
        # --- streamed path: K-tiled layer-1 contraction with f32 VMEM accumulator ---
        const = lambda i, k: (0, 0)
        tile_k = _pick_tile_k(flat_dim)
        grid = (b_pad // tile_b, flat_dim // tile_k)
        kernel = functools.partial(mlp_encoder_kernel_ktiled, latent_dim=latent_dim)
        in_specs = [
            pl.BlockSpec((tile_b, tile_k), lambda i, k: (i, k)),         # x
            pl.BlockSpec((tile_k, 2 * HIDDEN1), lambda i, k: (k, 0)),    # w1f
            pl.BlockSpec((1, 2 * HIDDEN1), const),                       # b1f
            pl.BlockSpec((2 * HIDDEN1, 2 * HIDDEN2), const),             # w2bd
            pl.BlockSpec((1, 2 * HIDDEN2), const),                       # b2f
            pl.BlockSpec((2 * HIDDEN2, out_cols), const),                # w3bd
            pl.BlockSpec((1, out_cols), const),                          # b3f
        ]
        out_specs = pl.BlockSpec((tile_b, out_cols), lambda i, k: (i, 0))
        scratch_shapes = (pltpu.VMEM((tile_b, 2 * HIDDEN1), jnp.float32),)
        dim_sem = ("parallel", "arbitrary")

    out = pl.pallas_call(
        kernel,
        out_shape=jax.ShapeDtypeStruct((b_pad, out_cols), jnp.float32),
        grid=grid,
        in_specs=in_specs,
        out_specs=out_specs,
        scratch_shapes=scratch_shapes,
        compiler_params=pltpu.CompilerParams(
            dimension_semantics=dim_sem,
            vmem_limit_bytes=VMEM_LIMIT_BYTES,
        ),
    )(x_flat, *weight_args)

    z_mu = out[:B, :latent_dim]
    z_var = out[:B, latent_dim:2 * latent_dim]
    return z_mu, z_var


def init_params(key, flat_dim, latent_dim):
    """Kaiming-normal-like init (std = sqrt(2/fan_in)), zero bias, f32 master copy.

    Weights stored (in_features, out_features); biases (1, out_features).
    """
    dims = [(flat_dim, HIDDEN1), (HIDDEN1, HIDDEN2), (HIDDEN2, latent_dim)]
    params = {}
    keys = jax.random.split(key, 6)
    for i, (fan_in, fan_out) in enumerate(dims):
        w = jax.random.normal(keys[i], (fan_in, fan_out), jnp.float32) * jnp.sqrt(2.0 / fan_in)
        params[f"mw{i+1}"] = w
        params[f"mb{i+1}"] = jnp.zeros((1, fan_out), jnp.float32)
    for i, (fan_in, fan_out) in enumerate(dims):
        w = jax.random.normal(keys[3 + i], (fan_in, fan_out), jnp.float32) * jnp.sqrt(2.0 / fan_in)
        params[f"vw{i+1}"] = w
        params[f"vb{i+1}"] = jnp.zeros((1, fan_out), jnp.float32)
    return params


def reference_forward(x_flat, params):
    """Pure-JAX reference mirroring the kernel's bf16-operand / f32-accumulate math."""
    def bdot(a, w):
        return jnp.dot(a.astype(jnp.bfloat16), w.astype(jnp.bfloat16),
                       preferred_element_type=jnp.float32)

    def leaky(t):
        return jnp.where(t >= 0, t, LEAKY_SLOPE * t)

    h = leaky(bdot(x_flat, params["mw1"]) + params["mb1"])
    h = leaky(bdot(h, params["mw2"]) + params["mb2"])
    z_mu = bdot(h, params["mw3"]) + params["mb3"]

    g = leaky(bdot(x_flat, params["vw1"]) + params["vb1"])
    g = leaky(bdot(g, params["vw2"]) + params["vb2"])
    z_var = jax.nn.softplus(bdot(g, params["vw3"]) + params["vb3"])
    return z_mu, z_var


if __name__ == "__main__":
    key = jax.random.PRNGKey(0)
    kx, kp, kx2, kp2 = jax.random.split(key, 4)

    # --- primary test: small shapes consistent with the module (resident-weight path) ---
    B = 2
    input_shape = (4, 16, 16)
    latent_dim = 32
    flat_dim = 4 * 16 * 16

    x = jax.random.normal(kx, (B,) + input_shape, jnp.float32)   # NCHW, like PyTorch
    params = init_params(kp, flat_dim, latent_dim)
    kparams = prepare_kernel_params(params, latent_dim)

    z_mu, z_var = mlp_encoder_forward(x, kparams, latent_dim=latent_dim)
    jax.block_until_ready((z_mu, z_var))

    ref_mu, ref_var = reference_forward(x.reshape(B, -1), params)
    assert z_mu.shape == (B, latent_dim) and z_var.shape == (B, latent_dim)
    assert jnp.allclose(z_mu, ref_mu, atol=5e-3, rtol=5e-3), float(jnp.max(jnp.abs(z_mu - ref_mu)))
    assert jnp.allclose(z_var, ref_var, atol=5e-3, rtol=5e-3), float(jnp.max(jnp.abs(z_var - ref_var)))
    assert bool(jnp.all(z_var >= 0))   # softplus output is non-negative

    # --- secondary test: large flat_dim exercises the K-tiled (streamed layer-1) path ---
    B2 = 4
    input_shape2 = (8, 32, 32)          # flat_dim = 8192 > RESIDENT_FLAT_DIM_LIMIT
    latent_dim2 = 16
    flat_dim2 = 8 * 32 * 32

    x2 = jax.random.normal(kx2, (B2,) + input_shape2, jnp.float32)
    params2 = init_params(kp2, flat_dim2, latent_dim2)
    kparams2 = prepare_kernel_params(params2, latent_dim2)

    z_mu2, z_var2 = mlp_encoder_forward(x2, kparams2, latent_dim=latent_dim2)
    jax.block_until_ready((z_mu2, z_var2))

    ref_mu2, ref_var2 = reference_forward(x2.reshape(B2, -1), params2)
    assert jnp.allclose(z_mu2, ref_mu2, atol=5e-3, rtol=5e-3), float(jnp.max(jnp.abs(z_mu2 - ref_mu2)))
    assert jnp.allclose(z_var2, ref_var2, atol=5e-3, rtol=5e-3), float(jnp.max(jnp.abs(z_var2 - ref_var2)))
    assert bool(jnp.all(z_var2 >= 0))

    print("KERNEL_OK")
</pallas_src>

<mosaic_0001>
module attributes {stable_mosaic.version = 11 : i64} {
  func.func @mlp_encoder_kernel_resident(%arg0: i32, %arg1: memref<16x1024xbf16, #tpu.memory_space<vmem>>, %arg2: memref<1024x1024xbf16, #tpu.memory_space<vmem>>, %arg3: memref<1x1024xf32, #tpu.memory_space<vmem>>, %arg4: memref<1024x512xbf16, #tpu.memory_space<vmem>>, %arg5: memref<1x512xf32, #tpu.memory_space<vmem>>, %arg6: memref<512x128xbf16, #tpu.memory_space<vmem>>, %arg7: memref<1x128xf32, #tpu.memory_space<vmem>>, %arg8: memref<16x128xf32, #tpu.memory_space<vmem>>) attributes {dimension_semantics = [#tpu.dimension_semantics<parallel>], iteration_bounds = array<i64: 1>, scalar_prefetch = 0 : i64, scratch_operands = 0 : i64, tpu.core_type = #tpu.core_type<tc>, window_params = [{transform_indices = @transform_0, window_bounds = array<i64: 16, 1024>}, {pipeline_mode = #tpu.pipeline_mode<synchronous>, transform_indices = @transform_1, window_bounds = array<i64: 1024, 1024>}, {pipeline_mode = #tpu.pipeline_mode<synchronous>, transform_indices = @transform_2, window_bounds = array<i64: 1, 1024>}, {pipeline_mode = #tpu.pipeline_mode<synchronous>, transform_indices = @transform_3, window_bounds = array<i64: 1024, 512>}, {pipeline_mode = #tpu.pipeline_mode<synchronous>, transform_indices = @transform_4, window_bounds = array<i64: 1, 512>}, {pipeline_mode = #tpu.pipeline_mode<synchronous>, transform_indices = @transform_5, window_bounds = array<i64: 512, 128>}, {pipeline_mode = #tpu.pipeline_mode<synchronous>, transform_indices = @transform_6, window_bounds = array<i64: 1, 128>}, {transform_indices = @transform_7, window_bounds = array<i64: 16, 128>}]} {
    %c0 = arith.constant 0 : index
    %c0_0 = arith.constant 0 : index
    %0 = vector.load %arg1[%c0, %c0_0] : memref<16x1024xbf16, #tpu.memory_space<vmem>>, vector<16x1024xbf16>
    %c0_1 = arith.constant 0 : index
    %c0_2 = arith.constant 0 : index
    %1 = vector.load %arg2[%c0_1, %c0_2] : memref<1024x1024xbf16, #tpu.memory_space<vmem>>, vector<1024x1024xbf16>
    %cst = arith.constant dense<0.000000e+00> : vector<16x1024xf32>
    %2 = tpu.matmul %0, %1, %cst {dimension_numbers = #tpu.dot_dimension_numbers<[1], [0], [0], [1], [0, 0, 1, 1], [], []>} : vector<16x1024xbf16>, vector<1024x1024xbf16>, vector<16x1024xf32> -> vector<16x1024xf32>
    %c0_3 = arith.constant 0 : index
    %c0_4 = arith.constant 0 : index
    %3 = vector.load %arg3[%c0_3, %c0_4] : memref<1x1024xf32, #tpu.memory_space<vmem>>, vector<1x1024xf32>
    %4 = vector.broadcast %3 : vector<1x1024xf32> to vector<16x1024xf32>
    %5 = arith.addf %2, %4 : vector<16x1024xf32>
    %cst_5 = arith.constant 0.000000e+00 : f32
    %6 = vector.broadcast %cst_5 : f32 to vector<16x1024xf32>
    %7 = arith.cmpf oge, %5, %6 : vector<16x1024xf32>
    %cst_6 = arith.constant 1.000000e-01 : f32
    %8 = vector.broadcast %cst_6 : f32 to vector<16x1024xf32>
    %9 = arith.mulf %8, %5 : vector<16x1024xf32>
    %10 = arith.select %7, %5, %9 : vector<16x1024xi1>, vector<16x1024xf32>
    %11 = arith.truncf %10 : vector<16x1024xf32> to vector<16x1024xbf16>
    %c0_7 = arith.constant 0 : index
    %c0_8 = arith.constant 0 : index
    %12 = vector.load %arg4[%c0_7, %c0_8] : memref<1024x512xbf16, #tpu.memory_space<vmem>>, vector<1024x512xbf16>
    %cst_9 = arith.constant dense<0.000000e+00> : vector<16x512xf32>
    %13 = tpu.matmul %11, %12, %cst_9 {dimension_numbers = #tpu.dot_dimension_numbers<[1], [0], [0], [1], [0, 0, 1, 1], [], []>} : vector<16x1024xbf16>, vector<1024x512xbf16>, vector<16x512xf32> -> vector<16x512xf32>
    %c0_10 = arith.constant 0 : index
    %c0_11 = arith.constant 0 : index
    %14 = vector.load %arg5[%c0_10, %c0_11] : memref<1x512xf32, #tpu.memory_space<vmem>>, vector<1x512xf32>
    %15 = vector.broadcast %14 : vector<1x512xf32> to vector<16x512xf32>
    %16 = arith.addf %13, %15 : vector<16x512xf32>
    %cst_12 = arith.constant 0.000000e+00 : f32
    %17 = vector.broadcast %cst_12 : f32 to vector<16x512xf32>
    %18 = arith.cmpf oge, %16, %17 : vector<16x512xf32>
    %cst_13 = arith.constant 1.000000e-01 : f32
    %19 = vector.broadcast %cst_13 : f32 to vector<16x512xf32>
    %20 = arith.mulf %19, %16 : vector<16x512xf32>
    %21 = arith.select %18, %16, %20 : vector<16x512xi1>, vector<16x512xf32>
    %22 = arith.truncf %21 : vector<16x512xf32> to vector<16x512xbf16>
    %c0_14 = arith.constant 0 : index
    %c0_15 = arith.constant 0 : index
    %23 = vector.load %arg6[%c0_14, %c0_15] : memref<512x128xbf16, #tpu.memory_space<vmem>>, vector<512x128xbf16>
    %cst_16 = arith.constant dense<0.000000e+00> : vector<16x128xf32>
    %24 = tpu.matmul %22, %23, %cst_16 {dimension_numbers = #tpu.dot_dimension_numbers<[1], [0], [0], [1], [0, 0, 1, 1], [], []>} : vector<16x512xbf16>, vector<512x128xbf16>, vector<16x128xf32> -> vector<16x128xf32>
    %c0_17 = arith.constant 0 : index
    %c0_18 = arith.constant 0 : index
    %25 = vector.load %arg7[%c0_17, %c0_18] : memref<1x128xf32, #tpu.memory_space<vmem>>, vector<1x128xf32>
    %26 = vector.broadcast %25 : vector<1x128xf32> to vector<16x128xf32>
    %27 = arith.addf %24, %26 : vector<16x128xf32>
    %28 = tpu.iota {dimensions = array<i32: 1>} : vector<16x128xi32>
    %c32_i32 = arith.constant 32 : i32
    %29 = vector.broadcast %c32_i32 : i32 to vector<16x128xi32>
    %30 = arith.cmpi sge, %28, %29 : vector<16x128xi32>
    %c64_i32 = arith.constant 64 : i32
    %31 = vector.broadcast %c64_i32 : i32 to vector<16x128xi32>
    %32 = arith.cmpi slt, %28, %31 : vector<16x128xi32>
    %33 = arith.andi %30, %32 : vector<16x128xi1>
    %cst_19 = arith.constant 0.000000e+00 : f32
    %34 = vector.broadcast %cst_19 : f32 to vector<16x128xf32>
    %35 = arith.maximumf %27, %34 : vector<16x128xf32>
    %36 = math.absf %27 : vector<16x128xf32>
    %cst_20 = arith.constant 0.000000e+00 : f32
    %37 = vector.broadcast %cst_20 : f32 to vector<16x128xf32>
    %38 = arith.subf %37, %36 : vector<16x128xf32>
    %39 = math.exp %38 : vector<16x128xf32>
    %40 = math.log1p %39 : vector<16x128xf32>
    %41 = arith.addf %35, %40 : vector<16x128xf32>
    %42 = arith.select %33, %41, %27 : vector<16x128xi1>, vector<16x128xf32>
    %c0_21 = arith.constant 0 : index
    %c0_22 = arith.constant 0 : index
    %43 = vector.load %arg8[%c0_21, %c0_22] : memref<16x128xf32, #tpu.memory_space<vmem>>, vector<16x128xf32>
    tpu.vector_store %arg8[%c0_21, %c0_22], %42 {strides = array<i32>} : memref<16x128xf32, #tpu.memory_space<vmem>>, vector<16x128xf32>,
    return
  }
  func.func @transform_0(%arg0: i32) -> (i32, i32) {
    %c0_i32 = arith.constant 0 : i32
    %c0_i32_0 = arith.constant 0 : i32
    return %arg0, %c0_i32 : i32, i32
  }
  func.func @transform_1(%arg0: i32) -> (i32, i32) {
    %c0_i32 = arith.constant 0 : i32
    %c0_i32_0 = arith.constant 0 : i32
    %c0_i32_1 = arith.constant 0 : i32
    return %c0_i32, %c0_i32_0 : i32, i32
  }
  func.func @transform_2(%arg0: i32) -> (i32, i32) {
    %c0_i32 = arith.constant 0 : i32
    %c0_i32_0 = arith.constant 0 : i32
    %c0_i32_1 = arith.constant 0 : i32
    return %c0_i32, %c0_i32_0 : i32, i32
  }
  func.func @transform_3(%arg0: i32) -> (i32, i32) {
    %c0_i32 = arith.constant 0 : i32
    %c0_i32_0 = arith.constant 0 : i32
    %c0_i32_1 = arith.constant 0 : i32
    return %c0_i32, %c0_i32_0 : i32, i32
  }
  func.func @transform_4(%arg0: i32) -> (i32, i32) {
    %c0_i32 = arith.constant 0 : i32
    %c0_i32_0 = arith.constant 0 : i32
    %c0_i32_1 = arith.constant 0 : i32
    return %c0_i32, %c0_i32_0 : i32, i32
  }
  func.func @transform_5(%arg0: i32) -> (i32, i32) {
    %c0_i32 = arith.constant 0 : i32
    %c0_i32_0 = arith.constant 0 : i32
    %c0_i32_1 = arith.constant 0 : i32
    return %c0_i32, %c0_i32_0 : i32, i32
  }
  func.func @transform_6(%arg0: i32) -> (i32, i32) {
    %c0_i32 = arith.constant 0 : i32
    %c0_i32_0 = arith.constant 0 : i32
    %c0_i32_1 = arith.constant 0 : i32
    return %c0_i32, %c0_i32_0 : i32, i32
  }
  func.func @transform_7(%arg0: i32) -> (i32, i32) {
    %c0_i32 = arith.constant 0 : i32
    %c0_i32_0 = arith.constant 0 : i32
    return %arg0, %c0_i32 : i32, i32
  }
}

</mosaic_0001>

<llo_original>
// kernel: mlp_encoder_forward.1
$region0: #{mlp_encoder_forward.1}
  #allocation0 [shape = 'u32[]', space=smem, size = 0x4, offset = 0x4, fixed_abs, tag = 'smem constant byte address 0x4 - core index']
  #allocation1 [shape = 'u32[144,128]{1,0:T(1,128)}', space=vmem, size = 0x12000, scoped, tag = 'internal scratch']
  %s0 = inlined_call_operand.vmem [shape: bf16[16,1024], index: 0, kind: input, shape index: {}]
  %s1 = inlined_call_operand.hbm [shape: bf16[1024,1024], index: 1, kind: input, shape index: {}]
  %s2 = inlined_call_operand.hbm [shape: f32[1,1024], index: 2, kind: input, shape index: {}]
  %s3 = inlined_call_operand.hbm [shape: bf16[1024,512], index: 3, kind: input, shape index: {}]
  %s4 = inlined_call_operand.hbm [shape: f32[1,512], index: 4, kind: input, shape index: {}]
  %s5 = inlined_call_operand.hbm [shape: bf16[512,128], index: 5, kind: input, shape index: {}]
  %s6 = inlined_call_operand.hbm [shape: f32[1,128], index: 6, kind: input, shape index: {}]
  %s7 = inlined_call_operand.vmem [shape: f32[16,128], index: 7, kind: output, shape index: {}]
  %s8 = sld [smem:[#allocation0]]
  $region62: #{mlp_encoder_forward.1} parent=0
    _
  %s10 = ssub.s32 1, %s8
  %s11 = scalar_select 0, %s10, %s8
  $region1: #{mlp_encoder_forward.1} parent=0
    #allocation2 [shape = 'u8[2097152]{0}', space=vmem, size = 0x200000, scoped, tag = 'input window, operand 1, single buffered']
    #allocation3 [shape = 's32[1]{0}', space=sflag, size = 0x4, scoped, tag = 'scoped memory for mlp_encoder_forward.1']
    #allocation4 [shape = 'u8[4096]{0}', space=vmem, size = 0x1000, scoped, tag = 'input window, operand 2, single buffered']
    #allocation5 [shape = 's32[1]{0}', space=sflag, size = 0x4, scoped, tag = 'scoped memory for mlp_encoder_forward.1']
    #allocation6 [shape = 'u8[1048576]{0}', space=vmem, size = 0x100000, scoped, tag = 'input window, operand 3, single buffered']
    #allocation7 [shape = 'u8[2048]{0}', space=vmem, size = 0x800, scoped, tag = 'input window, operand 4, single buffered']
    #allocation8 [shape = 's32[1]{0}', space=sflag, size = 0x4, scoped, tag = 'scoped memory for mlp_encoder_forward.1']
    #allocation9 [shape = 'u8[131072]{0}', space=vmem, size = 0x20000, scoped, tag = 'input window, operand 5, single buffered']
    #allocation10 [shape = 'u8[512]{0}', space=vmem, size = 0x400, scoped, tag = 'input window, operand 6, single buffered']
    #allocation11 [shape = 's32[1]{0}', space=sflag, size = 0x4, scoped, tag = 'scoped memory for mlp_encoder_forward.1']
    %12 = vsyncpa [#allocation3], 0
    %13 = vsyncpa [#allocation5], 0
    %14 = vsyncpa [#allocation8], 0
    %15 = vsyncpa [#allocation11], 0
    // Predicated region
    $region2: #{mlp_encoder_forward.1} parent=1 // pred_check
      _
    $region3: #{mlp_encoder_forward.1} parent=1 // pred_check_branch
      %17 = sbr.rel (0) target = $region5
    $region4: #{mlp_encoder_forward.1} parent=1 // pred_region
      _
    $region5: #{mlp_encoder_forward.1} parent=1 // pred_fallthru
      _
    // Predicated region
    $region6: #{mlp_encoder_forward.1} parent=1 // pred_check
      _
    $region7: #{mlp_encoder_forward.1} parent=1 // pred_check_branch
      %19 = sbr.rel (0) target = $region9
    $region8: #{mlp_encoder_forward.1} parent=1 // pred_region
      %s21 = ssub.s32 65536, 65536
      %22 = vsyncadd [#allocation3], %s21
      %s23 = sshll.u32 [#allocation2], 4
      %s24 = int_to_ptr.vmem [resolvable:$true] %s23
      %29 = dma.hbm_to_vmem [thread:$0]  %s1, 65536, %s24, [#allocation3], 512, 512, 32
    $region9: #{mlp_encoder_forward.1} parent=1 // pred_fallthru
      _
    // Predicated region
    $region10: #{mlp_encoder_forward.1} parent=1 // pred_check
      _
    $region11: #{mlp_encoder_forward.1} parent=1 // pred_check_branch
      %31 = sbr.rel (0) target = $region13
    $region12: #{mlp_encoder_forward.1} parent=1 // pred_region
      %s33 = ssub.s32 128, 128
      %34 = vsyncadd [#allocation5], %s33
      %s36 = sshll.u32 [#allocation4], 4
      %s37 = int_to_ptr.vmem [resolvable:$true] %s36
      %39 = dma.hbm_to_vmem [thread:$0]  %s2, 128, %s37, [#allocation5]
    $region13: #{mlp_encoder_forward.1} parent=1 // pred_fallthru
      _
    // Predicated region
    $region14: #{mlp_encoder_forward.1} parent=1 // pred_check
      _
    $region15: #{mlp_encoder_forward.1} parent=1 // pred_check_branch
      %41 = sbr.rel (0) target = $region17
    $region16: #{mlp_encoder_forward.1} parent=1 // pred_region
      %s43 = ssub.s32 32768, 32768
      %44 = vsyncadd [#allocation5], %s43
      %s45 = sshll.u32 [#allocation6], 4
      %s46 = int_to_ptr.vmem [resolvable:$true] %s45
      %51 = dma.hbm_to_vmem [thread:$0]  %s3, 32768, %s46, [#allocation5], 256, 256, 16
    $region17: #{mlp_encoder_forward.1} parent=1 // pred_fallthru
      _
    // Predicated region
    $region18: #{mlp_encoder_forward.1} parent=1 // pred_check
      _
    $region19: #{mlp_encoder_forward.1} parent=1 // pred_check_branch
      %53 = sbr.rel (0) target = $region21
    $region20: #{mlp_encoder_forward.1} parent=1 // pred_region
      %s55 = ssub.s32 64, 64
      %56 = vsyncadd [#allocation8], %s55
      %s58 = sshll.u32 [#allocation7], 4
      %s59 = int_to_ptr.vmem [resolvable:$true] %s58
      %61 = dma.hbm_to_vmem [thread:$0]  %s4, 64, %s59, [#allocation8]
    $region21: #{mlp_encoder_forward.1} parent=1 // pred_fallthru
      _
    // Predicated region
    $region22: #{mlp_encoder_forward.1} parent=1 // pred_check
      _
    $region23: #{mlp_encoder_forward.1} parent=1 // pred_check_branch
      %63 = sbr.rel (0) target = $region25
    $region24: #{mlp_encoder_forward.1} parent=1 // pred_region
      %s65 = ssub.s32 4096, 4096
      %66 = vsyncadd [#allocation8], %s65
      %s67 = sshll.u32 [#allocation9], 4
      %s68 = int_to_ptr.vmem [resolvable:$true] %s67
      %73 = dma.hbm_to_vmem [thread:$0]  %s5, 4096, %s68, [#allocation8], 64, 64, 4
    $region25: #{mlp_encoder_forward.1} parent=1 // pred_fallthru
      _
    // Predicated region
    $region26: #{mlp_encoder_forward.1} parent=1 // pred_check
      _
    $region27: #{mlp_encoder_forward.1} parent=1 // pred_check_branch
      %75 = sbr.rel (0) target = $region29
    $region28: #{mlp_encoder_forward.1} parent=1 // pred_region
      %s77 = ssub.s32 16, 16
      %78 = vsyncadd [#allocation11], %s77
      %s80 = sshll.u32 [#allocation10], 4
      %s81 = int_to_ptr.vmem [resolvable:$true] %s80
      %83 = dma.hbm_to_vmem [thread:$0]  %s6, 16, %s81, [#allocation11]
    $region29: #{mlp_encoder_forward.1} parent=1 // pred_fallthru
      _
    // Predicated region
    $region30: #{mlp_encoder_forward.1} parent=1 // pred_check
      _
    $region31: #{mlp_encoder_forward.1} parent=1 // pred_check_branch
      %85 = sbr.rel (0) target = $region33
    $region32: #{mlp_encoder_forward.1} parent=1 // pred_region
      %86 = dma.done [#allocation3], 65536
    $region33: #{mlp_encoder_forward.1} parent=1 // pred_fallthru
      _
    // Predicated region
    $region34: #{mlp_encoder_forward.1} parent=1 // pred_check
      _
    $region35: #{mlp_encoder_forward.1} parent=1 // pred_check_branch
      %88 = sbr.rel (0) target = $region37
    $region36: #{mlp_encoder_forward.1} parent=1 // pred_region
      %89 = dma.done [#allocation5], 128
    $region37: #{mlp_encoder_forward.1} parent=1 // pred_fallthru
      _
    // Predicated region
    $region38: #{mlp_encoder_forward.1} parent=1 // pred_check
      _
    $region39: #{mlp_encoder_forward.1} parent=1 // pred_check_branch
      %91 = sbr.rel (0) target = $region41
    $region40: #{mlp_encoder_forward.1} parent=1 // pred_region
      %92 = dma.done [#allocation5], 32768
    $region41: #{mlp_encoder_forward.1} parent=1 // pred_fallthru
      _
    // Predicated region
    $region42: #{mlp_encoder_forward.1} parent=1 // pred_check
      _
    $region43: #{mlp_encoder_forward.1} parent=1 // pred_check_branch
      %94 = sbr.rel (0) target = $region45
    $region44: #{mlp_encoder_forward.1} parent=1 // pred_region
      %95 = dma.done [#allocation8], 64
    $region45: #{mlp_encoder_forward.1} parent=1 // pred_fallthru
      _
    // Predicated region
    $region46: #{mlp_encoder_forward.1} parent=1 // pred_check
      _
    $region47: #{mlp_encoder_forward.1} parent=1 // pred_check_branch
      %97 = sbr.rel (0) target = $region49
    $region48: #{mlp_encoder_forward.1} parent=1 // pred_region
      %98 = dma.done [#allocation8], 4096
    $region49: #{mlp_encoder_forward.1} parent=1 // pred_fallthru
      _
    // Predicated region
    $region50: #{mlp_encoder_forward.1} parent=1 // pred_check
      _
    $region51: #{mlp_encoder_forward.1} parent=1 // pred_check_branch
      %100 = sbr.rel (0) target = $region53
    $region52: #{mlp_encoder_forward.1} parent=1 // pred_region
      %101 = dma.done [#allocation11], 16
    $region53: #{mlp_encoder_forward.1} parent=1 // pred_fallthru
      _
    %v103 = vld [vmem:[%s0] sm:$0xff]
    %v104 = vld [vmem:[%s0 + $0x8] sm:$0xff]
    %v105 = vld [vmem:[%s0 + $0x10] sm:$0xff]
    %v106 = vld [vmem:[%s0 + $0x18] sm:$0xff]
    %v107 = vld [vmem:[%s0 + $0x20] sm:$0xff]
    %v108 = vld [vmem:[%s0 + $0x28] sm:$0xff]
    %v109 = vld [vmem:[%s0 + $0x30] sm:$0xff]
    %v110 = vld [vmem:[%s0 + $0x38] sm:$0xff]
    %v111 = vld [vmem:[#allocation2] sm:$0xff]
    %v112 = vld [vmem:[#allocation2 + $0x8] sm:$0xff]
    %v113 = vld [vmem:[#allocation2 + $0x10] sm:$0xff]
    %v114 = vld [vmem:[#allocation2 + $0x18] sm:$0xff]
    %v115 = vld [vmem:[#allocation2 + $0x20] sm:$0xff]
    %v116 = vld [vmem:[#allocation2 + $0x28] sm:$0xff]
    %v117 = vld [vmem:[#allocation2 + $0x30] sm:$0xff]
    %v118 = vld [vmem:[#allocation2 + $0x38] sm:$0xff]
    %v119 = vld [vmem:[#allocation2 + $0x40] sm:$0xff]
    %v120 = vld [vmem:[#allocation2 + $0x48] sm:$0xff]
    %v121 = vld [vmem:[#allocation2 + $0x50] sm:$0xff]
    %v122 = vld [vmem:[#allocation2 + $0x58] sm:$0xff]
    %v123 = vld [vmem:[#allocation2 + $0x60] sm:$0xff]
    %v124 = vld [vmem:[#allocation2 + $0x68] sm:$0xff]
    %v125 = vld [vmem:[#allocation2 + $0x70] sm:$0xff]
    %v126 = vld [vmem:[#allocation2 + $0x78] sm:$0xff]
    %v127 = vld [vmem:[#allocation2 + $0x80] sm:$0xff]
    %v128 = vld [vmem:[#allocation2 + $0x88] sm:$0xff]
    %v129 = vld [vmem:[#allocation2 + $0x90] sm:$0xff]
    %v130 = vld [vmem:[#allocation2 + $0x98] sm:$0xff]
    %v131 = vld [vmem:[#allocation2 + $0xa0] sm:$0xff]
    %v132 = vld [vmem:[#allocation2 + $0xa8] sm:$0xff]
    %v133 = vld [vmem:[#allocation2 + $0xb0] sm:$0xff]
    %v134 = vld [vmem:[#allocation2 + $0xb8] sm:$0xff]
    %v135 = vld [vmem:[#allocation2 + $0xc0] sm:$0xff]
    %v136 = vld [vmem:[#allocation2 + $0xc8] sm:$0xff]
    %v137 = vld [vmem:[#allocation2 + $0xd0] sm:$0xff]
    %v138 = vld [vmem:[#allocation2 + $0xd8] sm:$0xff]
    %v139 = vld [vmem:[#allocation2 + $0xe0] sm:$0xff]
    %v140 = vld [vmem:[#allocation2 + $0xe8] sm:$0xff]
    %v141 = vld [vmem:[#allocation2 + $0xf0] sm:$0xff]
    %v142 = vld [vmem:[#allocation2 + $0xf8] sm:$0xff]
    %v143 = vld [vmem:[#allocation2 + $0x100] sm:$0xff]
    %v144 = vld [vmem:[#allocation2 + $0x108] sm:$0xff]
    %v145 = vld [vmem:[#allocation2 + $0x110] sm:$0xff]
    %v146 = vld [vmem:[#allocation2 + $0x118] sm:$0xff]
    %v147 = vld [vmem:[#allocation2 + $0x120] sm:$0xff]
    %v148 = vld [vmem:[#allocation2 + $0x128] sm:$0xff]
    %v149 = vld [vmem:[#allocation2 + $0x130] sm:$0xff]
    %v150 = vld [vmem:[#allocation2 + $0x138] sm:$0xff]
    %v151 = vld [vmem:[#allocation2 + $0x140] sm:$0xff]
    %v152 = vld [vmem:[#allocation2 + $0x148] sm:$0xff]
    %v153 = vld [vmem:[#allocation2 + $0x150] sm:$0xff]
    %v154 = vld [vmem:[#allocation2 + $0x158] sm:$0xff]
    %v155 = vld [vmem:[#allocation2 + $0x160] sm:$0xff]
    %v156 = vld [vmem:[#allocation2 + $0x168] sm:$0xff]
    %v157 = vld [vmem:[#allocation2 + $0x170] sm:$0xff]
    %v158 = vld [vmem:[#allocation2 + $0x178] sm:$0xff]
    %v159 = vld [vmem:[#allocation2 + $0x180] sm:$0xff]
    %v160 = vld [vmem:[#allocation2 + $0x188] sm:$0xff]
    %v161 = vld [vmem:[#allocation2 + $0x190] sm:$0xff]
    %v162 = vld [vmem:[#allocation2 + $0x198] sm:$0xff]
    %v163 = vld [vmem:[#allocation2 + $0x1a0] sm:$0xff]
    %v164 = vld [vmem:[#allocation2 + $0x1a8] sm:$0xff]
    %v165 = vld [vmem:[#allocation2 + $0x1b0] sm:$0xff]
    %v166 = vld [vmem:[#allocation2 + $0x1b8] sm:$0xff]
    %v167 = vld [vmem:[#allocation2 + $0x1c0] sm:$0xff]
    %v168 = vld [vmem:[#allocation2 + $0x1c8] sm:$0xff]
    %v169 = vld [vmem:[#allocation2 + $0x1d0] sm:$0xff]
    %v170 = vld [vmem:[#allocation2 + $0x1d8] sm:$0xff]
    %v171 = vld [vmem:[#allocation2 + $0x1e0] sm:$0xff]
    %v172 = vld [vmem:[#allocation2 + $0x1e8] sm:$0xff]
    %v173 = vld [vmem:[#allocation2 + $0x1f0] sm:$0xff]
    %v174 = vld [vmem:[#allocation2 + $0x1f8] sm:$0xff]
    %v175 = vld [vmem:[#allocation2 + $0x200] sm:$0xff]
    %v176 = vld [vmem:[#allocation2 + $0x208] sm:$0xff]
    %v177 = vld [vmem:[#allocation2 + $0x210] sm:$0xff]
    %v178 = vld [vmem:[#allocation2 + $0x218] sm:$0xff]
    %v179 = vld [vmem:[#allocation2 + $0x220] sm:$0xff]
    %v180 = vld [vmem:[#allocation2 + $0x228] sm:$0xff]
    %v181 = vld [vmem:[#allocation2 + $0x230] sm:$0xff]
    %v182 = vld [vmem:[#allocation2 + $0x238] sm:$0xff]
    %v183 = vld [vmem:[#allocation2 + $0x240] sm:$0xff]
    %v184 = vld [vmem:[#allocation2 + $0x248] sm:$0xff]
    %v185 = vld [vmem:[#allocation2 + $0x250] sm:$0xff]
    %v186 = vld [vmem:[#allocation2 + $0x258] sm:$0xff]
    %v187 = vld [vmem:[#allocation2 + $0x260] sm:$0xff]
    %v188 = vld [vmem:[#allocation2 + $0x268] sm:$0xff]
    %v189 = vld [vmem:[#allocation2 + $0x270] sm:$0xff]
    %v190 = vld [vmem:[#allocation2 + $0x278] sm:$0xff]
    %v191 = vld [vmem:[#allocation2 + $0x280] sm:$0xff]
    %v192 = vld [vmem:[#allocation2 + $0x288] sm:$0xff]
    %v193 = vld [vmem:[#allocation2 + $0x290] sm:$0xff]
    %v194 = vld [vmem:[#allocation2 + $0x298] sm:$0xff]
    %v195 = vld [vmem:[#allocation2 + $0x2a0] sm:$0xff]
    %v196 = vld [vmem:[#allocation2 + $0x2a8] sm:$0xff]
    %v197 = vld [vmem:[#allocation2 + $0x2b0] sm:$0xff]
    %v198 = vld [vmem:[#allocation2 + $0x2b8] sm:$0xff]
    %v199 = vld [vmem:[#allocation2 + $0x2c0] sm:$0xff]
    %v200 = vld [vmem:[#allocation2 + $0x2c8] sm:$0xff]
    %v201 = vld [vmem:[#allocation2 + $0x2d0] sm:$0xff]
    %v202 = vld [vmem:[#allocation2 + $0x2d8] sm:$0xff]
    %v203 = vld [vmem:[#allocation2 + $0x2e0] sm:$0xff]
    %v204 = vld [vmem:[#allocation2 + $0x2e8] sm:$0xff]
    %v205 = vld [vmem:[#allocation2 + $0x2f0] sm:$0xff]
    %v206 = vld [vmem:[#allocation2 + $0x2f8] sm:$0xff]
    %v207 = vld [vmem:[#allocation2 + $0x300] sm:$0xff]
    %v208 = vld [vmem:[#allocation2 + $0x308] sm:$0xff]
    %v209 = vld [vmem:[#allocation2 + $0x310] sm:$0xff]
    %v210 = vld [vmem:[#allocation2 + $0x318] sm:$0xff]
    %v211 = vld [vmem:[#allocation2 + $0x320] sm:$0xff]
    %v212 = vld [vmem:[#allocation2 + $0x328] sm:$0xff]
    %v213 = vld [vmem:[#allocation2 + $0x330] sm:$0xff]
    %v214 = vld [vmem:[#allocation2 + $0x338] sm:$0xff]
    %v215 = vld [vmem:[#allocation2 + $0x340] sm:$0xff]
    %v216 = vld [vmem:[#allocation2 + $0x348] sm:$0xff]
    %v217 = vld [vmem:[#allocation2 + $0x350] sm:$0xff]
    %v218 = vld [vmem:[#allocation2 + $0x358] sm:$0xff]
    %v219 = vld [vmem:[#allocation2 + $0x360] sm:$0xff]
    %v220 = vld [vmem:[#allocation2 + $0x368] sm:$0xff]
    %v221 = vld [vmem:[#allocation2 + $0x370] sm:$0xff]
    %v222 = vld [vmem:[#allocation2 + $0x378] sm:$0xff]
    %v223 = vld [vmem:[#allocation2 + $0x380] sm:$0xff]
    %v224 = vld [vmem:[#allocation2 + $0x388] sm:$0xff]
    %v225 = vld [vmem:[#allocation2 + $0x390] sm:$0xff]
    %v226 = vld [vmem:[#allocation2 + $0x398] sm:$0xff]
    %v227 = vld [vmem:[#allocation2 + $0x3a0] sm:$0xff]
    %v228 = vld [vmem:[#allocation2 + $0x3a8] sm:$0xff]
    %v229 = vld [vmem:[#allocation2 + $0x3b0] sm:$0xff]
    %v230 = vld [vmem:[#allocation2 + $0x3b8] sm:$0xff]
    %v231 = vld [vmem:[#allocation2 + $0x3c0] sm:$0xff]
    %v232 = vld [vmem:[#allocation2 + $0x3c8] sm:$0xff]
    %v233 = vld [vmem:[#allocation2 + $0x3d0] sm:$0xff]
    %v234 = vld [vmem:[#allocation2 + $0x3d8] sm:$0xff]
    %v235 = vld [vmem:[#allocation2 + $0x3e0] sm:$0xff]
    %v236 = vld [vmem:[#allocation2 + $0x3e8] sm:$0xff]
    %v237 = vld [vmem:[#allocation2 + $0x3f0] sm:$0xff]
    %v238 = vld [vmem:[#allocation2 + $0x3f8] sm:$0xff]
    %v239 = vld [vmem:[#allocation2 + $0x400] sm:$0xff]
    %v240 = vld [vmem:[#allocation2 + $0x408] sm:$0xff]
    %v241 = vld [vmem:[#allocation2 + $0x410] sm:$0xff]
    %v242 = vld [vmem:[#allocation2 + $0x418] sm:$0xff]
    %v243 = vld [vmem:[#allocation2 + $0x420] sm:$0xff]
    %v244 = vld [vmem:[#allocation2 + $0x428] sm:$0xff]
    %v245 = vld [vmem:[#allocation2 + $0x430] sm:$0xff]
    %v246 = vld [vmem:[#allocation2 + $0x438] sm:$0xff]
    %v247 = vld [vmem:[#allocation2 + $0x440] sm:$0xff]
    %v248 = vld [vmem:[#allocation2 + $0x448] sm:$0xff]
    %v249 = vld [vmem:[#allocation2 + $0x450] sm:$0xff]
    %v250 = vld [vmem:[#allocation2 + $0x458] sm:$0xff]
    %v251 = vld [vmem:[#allocation2 + $0x460] sm:$0xff]
    %v252 = vld [vmem:[#allocation2 + $0x468] sm:$0xff]
    %v253 = vld [vmem:[#allocation2 + $0x470] sm:$0xff]
    %v254 = vld [vmem:[#allocation2 + $0x478] sm:$0xff]
    %v255 = vld [vmem:[#allocation2 + $0x480] sm:$0xff]
    %v256 = vld [vmem:[#allocation2 + $0x488] sm:$0xff]
    %v257 = vld [vmem:[#allocation2 + $0x490] sm:$0xff]
    %v258 = vld [vmem:[#allocation2 + $0x498] sm:$0xff]
    %v259 = vld [vmem:[#allocation2 + $0x4a0] sm:$0xff]
    %v260 = vld [vmem:[#allocation2 + $0x4a8] sm:$0xff]
    %v261 = vld [vmem:[#allocation2 + $0x4b0] sm:$0xff]
    %v262 = vld [vmem:[#allocation2 + $0x4b8] sm:$0xff]
    %v263 = vld [vmem:[#allocation2 + $0x4c0] sm:$0xff]
    %v264 = vld [vmem:[#allocation2 + $0x4c8] sm:$0xff]
    %v265 = vld [vmem:[#allocation2 + $0x4d0] sm:$0xff]
    %v266 = vld [vmem:[#allocation2 + $0x4d8] sm:$0xff]
    %v267 = vld [vmem:[#allocation2 + $0x4e0] sm:$0xff]
    %v268 = vld [vmem:[#allocation2 + $0x4e8] sm:$0xff]
    %v269 = vld [vmem:[#allocation2 + $0x4f0] sm:$0xff]
    %v270 = vld [vmem:[#allocation2 + $0x4f8] sm:$0xff]
    %v271 = vld [vmem:[#allocation2 + $0x500] sm:$0xff]
    %v272 = vld [vmem:[#allocation2 + $0x508] sm:$0xff]
    %v273 = vld [vmem:[#allocation2 + $0x510] sm:$0xff]
    %v274 = vld [vmem:[#allocation2 + $0x518] sm:$0xff]
    %v275 = vld [vmem:[#allocation2 + $0x520] sm:$0xff]
    %v276 = vld [vmem:[#allocation2 + $0x528] sm:$0xff]
    %v277 = vld [vmem:[#allocation2 + $0x530] sm:$0xff]
    %v278 = vld [vmem:[#allocation2 + $0x538] sm:$0xff]
    %v279 = vld [vmem:[#allocation2 + $0x540] sm:$0xff]
    %v280 = vld [vmem:[#allocation2 + $0x548] sm:$0xff]
    %v281 = vld [vmem:[#allocation2 + $0x550] sm:$0xff]
    %v282 = vld [vmem:[#allocation2 + $0x558] sm:$0xff]
    %v283 = vld [vmem:[#allocation2 + $0x560] sm:$0xff]
    %v284 = vld [vmem:[#allocation2 + $0x568] sm:$0xff]
    %v285 = vld [vmem:[#allocation2 + $0x570] sm:$0xff]
    %v286 = vld [vmem:[#allocation2 + $0x578] sm:$0xff]
    %v287 = vld [vmem:[#allocation2 + $0x580] sm:$0xff]
    %v288 = vld [vmem:[#allocation2 + $0x588] sm:$0xff]
    %v289 = vld [vmem:[#allocation2 + $0x590] sm:$0xff]
    %v290 = vld [vmem:[#allocation2 + $0x598] sm:$0xff]
    %v291 = vld [vmem:[#allocation2 + $0x5a0] sm:$0xff]
    %v292 = vld [vmem:[#allocation2 + $0x5a8] sm:$0xff]
    %v293 = vld [vmem:[#allocation2 + $0x5b0] sm:$0xff]
    %v294 = vld [vmem:[#allocation2 + $0x5b8] sm:$0xff]
    %v295 = vld [vmem:[#allocation2 + $0x5c0] sm:$0xff]
    %v296 = vld [vmem:[#allocation2 + $0x5c8] sm:$0xff]
    %v297 = vld [vmem:[#allocation2 + $0x5d0] sm:$0xff]
    %v298 = vld [vmem:[#allocation2 + $0x5d8] sm:$0xff]
    %v299 = vld [vmem:[#allocation2 + $0x5e0] sm:$0xff]
    %v300 = vld [vmem:[#allocation2 + $0x5e8] sm:$0xff]
    %v301 = vld [vmem:[#allocation2 + $0x5f0] sm:$0xff]
    %v302 = vld [vmem:[#allocation2 + $0x5f8] sm:$0xff]
    %v303 = vld [vmem:[#allocation2 + $0x600] sm:$0xff]
    %v304 = vld [vmem:[#allocation2 + $0x608] sm:$0xff]
    %v305 = vld [vmem:[#allocation2 + $0x610] sm:$0xff]
    %v306 = vld [vmem:[#allocation2 + $0x618] sm:$0xff]
    %v307 = vld [vmem:[#allocation2 + $0x620] sm:$0xff]
    %v308 = vld [vmem:[#allocation2 + $0x628] sm:$0xff]
    %v309 = vld [vmem:[#allocation2 + $0x630] sm:$0xff]
    %v310 = vld [vmem:[#allocation2 + $0x638] sm:$0xff]
    %v311 = vld [vmem:[#allocation2 + $0x640] sm:$0xff]
    %v312 = vld [vmem:[#allocation2 + $0x648] sm:$0xff]
    %v313 = vld [vmem:[#allocation2 + $0x650] sm:$0xff]
    %v314 = vld [vmem:[#allocation2 + $0x658] sm:$0xff]
    %v315 = vld [vmem:[#allocation2 + $0x660] sm:$0xff]
    %v316 = vld [vmem:[#allocation2 + $0x668] sm:$0xff]
    %v317 = vld [vmem:[#allocation2 + $0x670] sm:$0xff]
    %v318 = vld [vmem:[#allocation2 + $0x678] sm:$0xff]
    %v319 = vld [vmem:[#allocation2 + $0x680] sm:$0xff]
    %v320 = vld [vmem:[#allocation2 + $0x688] sm:$0xff]
    %v321 = vld [vmem:[#allocation2 + $0x690] sm:$0xff]
    %v322 = vld [vmem:[#allocation2 + $0x698] sm:$0xff]
    %v323 = vld [vmem:[#allocation2 + $0x6a0] sm:$0xff]
    %v324 = vld [vmem:[#allocation2 + $0x6a8] sm:$0xff]
    %v325 = vld [vmem:[#allocation2 + $0x6b0] sm:$0xff]
    %v326 = vld [vmem:[#allocation2 + $0x6b8] sm:$0xff]
    %v327 = vld [vmem:[#allocation2 + $0x6c0] sm:$0xff]
    %v328 = vld [vmem:[#allocation2 + $0x6c8] sm:$0xff]
    %v329 = vld [vmem:[#allocation2 + $0x6d0] sm:$0xff]
    %v330 = vld [vmem:[#allocation2 + $0x6d8] sm:$0xff]
    %v331 = vld [vmem:[#allocation2 + $0x6e0] sm:$0xff]
    %v332 = vld [vmem:[#allocation2 + $0x6e8] sm:$0xff]
    %v333 = vld [vmem:[#allocation2 + $0x6f0] sm:$0xff]
    %v334 = vld [vmem:[#allocation2 + $0x6f8] sm:$0xff]
    %v335 = vld [vmem:[#allocation2 + $0x700] sm:$0xff]
    %v336 = vld [vmem:[#allocation2 + $0x708] sm:$0xff]
    %v337 = vld [vmem:[#allocation2 + $0x710] sm:$0xff]
    %v338 = vld [vmem:[#allocation2 + $0x718] sm:$0xff]
    %v339 = vld [vmem:[#allocation2 + $0x720] sm:$0xff]
    %v340 = vld [vmem:[#allocation2 + $0x728] sm:$0xff]
    %v341 = vld [vmem:[#allocation2 + $0x730] sm:$0xff]
    %v342 = vld [vmem:[#allocation2 + $0x738] sm:$0xff]
    %v343 = vld [vmem:[#allocation2 + $0x740] sm:$0xff]
    %v344 = vld [vmem:[#allocation2 + $0x748] sm:$0xff]
    %v345 = vld [vmem:[#allocation2 + $0x750] sm:$0xff]
    %v346 = vld [vmem:[#allocation2 + $0x758] sm:$0xff]
    %v347 = vld [vmem:[#allocation2 + $0x760] sm:$0xff]
    %v348 = vld [vmem:[#allocation2 + $0x768] sm:$0xff]
    %v349 = vld [vmem:[#allocation2 + $0x770] sm:$0xff]
    %v350 = vld [vmem:[#allocation2 + $0x778] sm:$0xff]
    %v351 = vld [vmem:[#allocation2 + $0x780] sm:$0xff]
    %v352 = vld [vmem:[#allocation2 + $0x788] sm:$0xff]
    %v353 = vld [vmem:[#allocation2 + $0x790] sm:$0xff]
    %v354 = vld [vmem:[#allocation2 + $0x798] sm:$0xff]
    %v355 = vld [vmem:[#allocation2 + $0x7a0] sm:$0xff]
    %v356 = vld [vmem:[#allocation2 + $0x7a8] sm:$0xff]
    %v357 = vld [vmem:[#allocation2 + $0x7b0] sm:$0xff]
    %v358 = vld [vmem:[#allocation2 + $0x7b8] sm:$0xff]
    %v359 = vld [vmem:[#allocation2 + $0x7c0] sm:$0xff]
    %v360 = vld [vmem:[#allocation2 + $0x7c8] sm:$0xff]
    %v361 = vld [vmem:[#allocation2 + $0x7d0] sm:$0xff]
    %v362 = vld [vmem:[#allocation2 + $0x7d8] sm:$0xff]
    %v363 = vld [vmem:[#allocation2 + $0x7e0] sm:$0xff]
    %v364 = vld [vmem:[#allocation2 + $0x7e8] sm:$0xff]
    %v365 = vld [vmem:[#allocation2 + $0x7f0] sm:$0xff]
    %v366 = vld [vmem:[#allocation2 + $0x7f8] sm:$0xff]
    %v367 = vld [vmem:[#allocation2 + $0x800] sm:$0xff]
    %v368 = vld [vmem:[#allocation2 + $0x808] sm:$0xff]
    %v369 = vld [vmem:[#allocation2 + $0x810] sm:$0xff]
    %v370 = vld [vmem:[#allocation2 + $0x818] sm:$0xff]
    %v371 = vld [vmem:[#allocation2 + $0x820] sm:$0xff]
    %v372 = vld [vmem:[#allocation2 + $0x828] sm:$0xff]
    %v373 = vld [vmem:[#allocation2 + $0x830] sm:$0xff]
    %v374 = vld [vmem:[#allocation2 + $0x838] sm:$0xff]
    %v375 = vld [vmem:[#allocation2 + $0x840] sm:$0xff]
    %v376 = vld [vmem:[#allocation2 + $0x848] sm:$0xff]
    %v377 = vld [vmem:[#allocation2 + $0x850] sm:$0xff]
    %v378 = vld [vmem:[#allocation2 + $0x858] sm:$0xff]
    %v379 = vld [vmem:[#allocation2 + $0x860] sm:$0xff]
    %v380 = vld [vmem:[#allocation2 + $0x868] sm:$0xff]
    %v381 = vld [vmem:[#allocation2 + $0x870] sm:$0xff]
    %v382 = vld [vmem:[#allocation2 + $0x878] sm:$0xff]
    %v383 = vld [vmem:[#allocation2 + $0x880] sm:$0xff]
    %v384 = vld [vmem:[#allocation2 + $0x888] sm:$0xff]
    %v385 = vld [vmem:[#allocation2 + $0x890] sm:$0xff]
    %v386 = vld [vmem:[#allocation2 + $0x898] sm:$0xff]
    %v387 = vld [vmem:[#allocation2 + $0x8a0] sm:$0xff]
    %v388 = vld [vmem:[#allocation2 + $0x8a8] sm:$0xff]
    %v389 = vld [vmem:[#allocation2 + $0x8b0] sm:$0xff]
    %v390 = vld [vmem:[#allocation2 + $0x8b8] sm:$0xff]
    %v391 = vld [vmem:[#allocation2 + $0x8c0] sm:$0xff]
    %v392 = vld [vmem:[#allocation2 + $0x8c8] sm:$0xff]
    %v393 = vld [vmem:[#allocation2 + $0x8d0] sm:$0xff]
    %v394 = vld [vmem:[#allocation2 + $0x8d8] sm:$0xff]
    %v395 = vld [vmem:[#allocation2 + $0x8e0] sm:$0xff]
    %v396 = vld [vmem:[#allocation2 + $0x8e8] sm:$0xff]
    %v397 = vld [vmem:[#allocation2 + $0x8f0] sm:$0xff]
    %v398 = vld [vmem:[#allocation2 + $0x8f8] sm:$0xff]
    %v399 = vld [vmem:[#allocation2 + $0x900] sm:$0xff]
    %v400 = vld [vmem:[#allocation2 + $0x908] sm:$0xff]
    %v401 = vld [vmem:[#allocation2 + $0x910] sm:$0xff]
    %v402 = vld [vmem:[#allocation2 + $0x918] sm:$0xff]
    %v403 = vld [vmem:[#allocation2 + $0x920] sm:$0xff]
    %v404 = vld [vmem:[#allocation2 + $0x928] sm:$0xff]
    %v405 = vld [vmem:[#allocation2 + $0x930] sm:$0xff]
    %v406 = vld [vmem:[#allocation2 + $0x938] sm:$0xff]
    %v407 = vld [vmem:[#allocation2 + $0x940] sm:$0xff]
    %v408 = vld [vmem:[#allocation2 + $0x948] sm:$0xff]
    %v409 = vld [vmem:[#allocation2 + $0x950] sm:$0xff]
    %v410 = vld [vmem:[#allocation2 + $0x958] sm:$0xff]
    %v411 = vld [vmem:[#allocation2 + $0x960] sm:$0xff]
    %v412 = vld [vmem:[#allocation2 + $0x968] sm:$0xff]
    %v413 = vld [vmem:[#allocation2 + $0x970] sm:$0xff]
    %v414 = vld [vmem:[#allocation2 + $0x978] sm:$0xff]
    %v415 = vld [vmem:[#allocation2 + $0x980] sm:$0xff]
    %v416 = vld [vmem:[#allocation2 + $0x988] sm:$0xff]
    %v417 = vld [vmem:[#allocation2 + $0x990] sm:$0xff]
    %v418 = vld [vmem:[#allocation2 + $0x998] sm:$0xff]
    %v419 = vld [vmem:[#allocation2 + $0x9a0] sm:$0xff]
    %v420 = vld [vmem:[#allocation2 + $0x9a8] sm:$0xff]
    %v421 = vld [vmem:[#allocation2 + $0x9b0] sm:$0xff]
    %v422 = vld [vmem:[#allocation2 + $0x9b8] sm:$0xff]
    %v423 = vld [vmem:[#allocation2 + $0x9c0] sm:$0xff]
    %v424 = vld [vmem:[#allocation2 + $0x9c8] sm:$0xff]
    %v425 = vld [vmem:[#allocation2 + $0x9d0] sm:$0xff]
    %v426 = vld [vmem:[#allocation2 + $0x9d8] sm:$0xff]
    %v427 = vld [vmem:[#allocation2 + $0x9e0] sm:$0xff]
    %v428 = vld [vmem:[#allocation2 + $0x9e8] sm:$0xff]
    %v429 = vld [vmem:[#allocation2 + $0x9f0] sm:$0xff]
    %v430 = vld [vmem:[#allocation2 + $0x9f8] sm:$0xff]
    %v431 = vld [vmem:[#allocation2 + $0xa00] sm:$0xff]
    %v432 = vld [vmem:[#allocation2 + $0xa08] sm:$0xff]
    %v433 = vld [vmem:[#allocation2 + $0xa10] sm:$0xff]
    %v434 = vld [vmem:[#allocation2 + $0xa18] sm:$0xff]
    %v435 = vld [vmem:[#allocation2 + $0xa20] sm:$0xff]
    %v436 = vld [vmem:[#allocation2 + $0xa28] sm:$0xff]
    %v437 = vld [vmem:[#allocation2 + $0xa30] sm:$0xff]
    %v438 = vld [vmem:[#allocation2 + $0xa38] sm:$0xff]
    %v439 = vld [vmem:[#allocation2 + $0xa40] sm:$0xff]
    %v440 = vld [vmem:[#allocation2 + $0xa48] sm:$0xff]
    %v441 = vld [vmem:[#allocation2 + $0xa50] sm:$0xff]
    %v442 = vld [vmem:[#allocation2 + $0xa58] sm:$0xff]
    %v443 = vld [vmem:[#allocation2 + $0xa60] sm:$0xff]
    %v444 = vld [vmem:[#allocation2 + $0xa68] sm:$0xff]
    %v445 = vld [vmem:[#allocation2 + $0xa70] sm:$0xff]
    %v446 = vld [vmem:[#allocation2 + $0xa78] sm:$0xff]
    %v447 = vld [vmem:[#allocation2 + $0xa80] sm:$0xff]
    %v448 = vld [vmem:[#allocation2 + $0xa88] sm:$0xff]
    %v449 = vld [vmem:[#allocation2 + $0xa90] sm:$0xff]
    %v450 = vld [vmem:[#allocation2 + $0xa98] sm:$0xff]
    %v451 = vld [vmem:[#allocation2 + $0xaa0] sm:$0xff]
    %v452 = vld [vmem:[#allocation2 + $0xaa8] sm:$0xff]
    %v453 = vld [vmem:[#allocation2 + $0xab0] sm:$0xff]
    %v454 = vld [vmem:[#allocation2 + $0xab8] sm:$0xff]
    %v455 = vld [vmem:[#allocation2 + $0xac0] sm:$0xff]
    %v456 = vld [vmem:[#allocation2 + $0xac8] sm:$0xff]
    %v457 = vld [vmem:[#allocation2 + $0xad0] sm:$0xff]
    %v458 = vld [vmem:[#allocation2 + $0xad8] sm:$0xff]
    %v459 = vld [vmem:[#allocation2 + $0xae0] sm:$0xff]
    %v460 = vld [vmem:[#allocation2 + $0xae8] sm:$0xff]
    %v461 = vld [vmem:[#allocation2 + $0xaf0] sm:$0xff]
    %v462 = vld [vmem:[#allocation2 + $0xaf8] sm:$0xff]
    %v463 = vld [vmem:[#allocation2 + $0xb00] sm:$0xff]
    %v464 = vld [vmem:[#allocation2 + $0xb08] sm:$0xff]
    %v465 = vld [vmem:[#allocation2 + $0xb10] sm:$0xff]
    %v466 = vld [vmem:[#allocation2 + $0xb18] sm:$0xff]
    %v467 = vld [vmem:[#allocation2 + $0xb20] sm:$0xff]
    %v468 = vld [vmem:[#allocation2 + $0xb28] sm:$0xff]
    %v469 = vld [vmem:[#allocation2 + $0xb30] sm:$0xff]
    %v470 = vld [vmem:[#allocation2 + $0xb38] sm:$0xff]
    %v471 = vld [vmem:[#allocation2 + $0xb40] sm:$0xff]
    %v472 = vld [vmem:[#allocation2 + $0xb48] sm:$0xff]
    %v473 = vld [vmem:[#allocation2 + $0xb50] sm:$0xff]
    %v474 = vld [vmem:[#allocation2 + $0xb58] sm:$0xff]
    %v475 = vld [vmem:[#allocation2 + $0xb60] sm:$0xff]
    %v476 = vld [vmem:[#allocation2 + $0xb68] sm:$0xff]
    %v477 = vld [vmem:[#allocation2 + $0xb70] sm:$0xff]
    %v478 = vld [vmem:[#allocation2 + $0xb78] sm:$0xff]
    %v479 = vld [vmem:[#allocation2 + $0xb80] sm:$0xff]
    %v480 = vld [vmem:[#allocation2 + $0xb88] sm:$0xff]
    %v481 = vld [vmem:[#allocation2 + $0xb90] sm:$0xff]
    %v482 = vld [vmem:[#allocation2 + $0xb98] sm:$0xff]
    %v483 = vld [vmem:[#allocation2 + $0xba0] sm:$0xff]
    %v484 = vld [vmem:[#allocation2 + $0xba8] sm:$0xff]
    %v485 = vld [vmem:[#allocation2 + $0xbb0] sm:$0xff]
    %v486 = vld [vmem:[#allocation2 + $0xbb8] sm:$0xff]
    %v487 = vld [vmem:[#allocation2 + $0xbc0] sm:$0xff]
    %v488 = vld [vmem:[#allocation2 + $0xbc8] sm:$0xff]
    %v489 = vld [vmem:[#allocation2 + $0xbd0] sm:$0xff]
    %v490 = vld [vmem:[#allocation2 + $0xbd8] sm:$0xff]
    %v491 = vld [vmem:[#allocation2 + $0xbe0] sm:$0xff]
    %v492 = vld [vmem:[#allocation2 + $0xbe8] sm:$0xff]
    %v493 = vld [vmem:[#allocation2 + $0xbf0] sm:$0xff]
    %v494 = vld [vmem:[#allocation2 + $0xbf8] sm:$0xff]
    %v495 = vld [vmem:[#allocation2 + $0xc00] sm:$0xff]
    %v496 = vld [vmem:[#allocation2 + $0xc08] sm:$0xff]
    %v497 = vld [vmem:[#allocation2 + $0xc10] sm:$0xff]
    %v498 = vld [vmem:[#allocation2 + $0xc18] sm:$0xff]
    %v499 = vld [vmem:[#allocation2 + $0xc20] sm:$0xff]
    %v500 = vld [vmem:[#allocation2 + $0xc28] sm:$0xff]
    %v501 = vld [vmem:[#allocation2 + $0xc30] sm:$0xff]
    %v502 = vld [vmem:[#allocation2 + $0xc38] sm:$0xff]
    %v503 = vld [vmem:[#allocation2 + $0xc40] sm:$0xff]
    %v504 = vld [vmem:[#allocation2 + $0xc48] sm:$0xff]
    %v505 = vld [vmem:[#allocation2 + $0xc50] sm:$0xff]
    %v506 = vld [vmem:[#allocation2 + $0xc58] sm:$0xff]
    %v507 = vld [vmem:[#allocation2 + $0xc60] sm:$0xff]
    %v508 = vld [vmem:[#allocation2 + $0xc68] sm:$0xff]
    %v509 = vld [vmem:[#allocation2 + $0xc70] sm:$0xff]
    %v510 = vld [vmem:[#allocation2 + $0xc78] sm:$0xff]
    %v511 = vld [vmem:[#allocation2 + $0xc80] sm:$0xff]
    %v512 = vld [vmem:[#allocation2 + $0xc88] sm:$0xff]
    %v513 = vld [vmem:[#allocation2 + $0xc90] sm:$0xff]
    %v514 = vld [vmem:[#allocation2 + $0xc98] sm:$0xff]
    %v515 = vld [vmem:[#allocation2 + $0xca0] sm:$0xff]
    %v516 = vld [vmem:[#allocation2 + $0xca8] sm:$0xff]
    %v517 = vld [vmem:[#allocation2 + $0xcb0] sm:$0xff]
    %v518 = vld [vmem:[#allocation2 + $0xcb8] sm:$0xff]
    %v519 = vld [vmem:[#allocation2 + $0xcc0] sm:$0xff]
    %v520 = vld [vmem:[#allocation2 + $0xcc8] sm:$0xff]
    %v521 = vld [vmem:[#allocation2 + $0xcd0] sm:$0xff]
    %v522 = vld [vmem:[#allocation2 + $0xcd8] sm:$0xff]
    %v523 = vld [vmem:[#allocation2 + $0xce0] sm:$0xff]
    %v524 = vld [vmem:[#allocation2 + $0xce8] sm:$0xff]
    %v525 = vld [vmem:[#allocation2 + $0xcf0] sm:$0xff]
    %v526 = vld [vmem:[#allocation2 + $0xcf8] sm:$0xff]
    %v527 = vld [vmem:[#allocation2 + $0xd00] sm:$0xff]
    %v528 = vld [vmem:[#allocation2 + $0xd08] sm:$0xff]
    %v529 = vld [vmem:[#allocation2 + $0xd10] sm:$0xff]
    %v530 = vld [vmem:[#allocation2 + $0xd18] sm:$0xff]
    %v531 = vld [vmem:[#allocation2 + $0xd20] sm:$0xff]
    %v532 = vld [vmem:[#allocation2 + $0xd28] sm:$0xff]
    %v533 = vld [vmem:[#allocation2 + $0xd30] sm:$0xff]
    %v534 = vld [vmem:[#allocation2 + $0xd38] sm:$0xff]
    %v535 = vld [vmem:[#allocation2 + $0xd40] sm:$0xff]
    %v536 = vld [vmem:[#allocation2 + $0xd48] sm:$0xff]
    %v537 = vld [vmem:[#allocation2 + $0xd50] sm:$0xff]
    %v538 = vld [vmem:[#allocation2 + $0xd58] sm:$0xff]
    %v539 = vld [vmem:[#allocation2 + $0xd60] sm:$0xff]
    %v540 = vld [vmem:[#allocation2 + $0xd68] sm:$0xff]
    %v541 = vld [vmem:[#allocation2 + $0xd70] sm:$0xff]
    %v542 = vld [vmem:[#allocation2 + $0xd78] sm:$0xff]
    %v543 = vld [vmem:[#allocation2 + $0xd80] sm:$0xff]
    %v544 = vld [vmem:[#allocation2 + $0xd88] sm:$0xff]
    %v545 = vld [vmem:[#allocation2 + $0xd90] sm:$0xff]
    %v546 = vld [vmem:[#allocation2 + $0xd98] sm:$0xff]
    %v547 = vld [vmem:[#allocation2 + $0xda0] sm:$0xff]
    %v548 = vld [vmem:[#allocation2 + $0xda8] sm:$0xff]
    %v549 = vld [vmem:[#allocation2 + $0xdb0] sm:$0xff]
    %v550 = vld [vmem:[#allocation2 + $0xdb8] sm:$0xff]
    %v551 = vld [vmem:[#allocation2 + $0xdc0] sm:$0xff]
    %v552 = vld [vmem:[#allocation2 + $0xdc8] sm:$0xff]
    %v553 = vld [vmem:[#allocation2 + $0xdd0] sm:$0xff]
    %v554 = vld [vmem:[#allocation2 + $0xdd8] sm:$0xff]
    %v555 = vld [vmem:[#allocation2 + $0xde0] sm:$0xff]
    %v556 = vld [vmem:[#allocation2 + $0xde8] sm:$0xff]
    %v557 = vld [vmem:[#allocation2 + $0xdf0] sm:$0xff]
    %v558 = vld [vmem:[#allocation2 + $0xdf8] sm:$0xff]
    %v559 = vld [vmem:[#allocation2 + $0xe00] sm:$0xff]
    %v560 = vld [vmem:[#allocation2 + $0xe08] sm:$0xff]
    %v561 = vld [vmem:[#allocation2 + $0xe10] sm:$0xff]
    %v562 = vld [vmem:[#allocation2 + $0xe18] sm:$0xff]
    %v563 = vld [vmem:[#allocation2 + $0xe20] sm:$0xff]
    %v564 = vld [vmem:[#allocation2 + $0xe28] sm:$0xff]
    %v565 = vld [vmem:[#allocation2 + $0xe30] sm:$0xff]
    %v566 = vld [vmem:[#allocation2 + $0xe38] sm:$0xff]
    %v567 = vld [vmem:[#allocation2 + $0xe40] sm:$0xff]
    %v568 = vld [vmem:[#allocation2 + $0xe48] sm:$0xff]
    %v569 = vld [vmem:[#allocation2 + $0xe50] sm:$0xff]
    %v570 = vld [vmem:[#allocation2 + $0xe58] sm:$0xff]
    %v571 = vld [vmem:[#allocation2 + $0xe60] sm:$0xff]
    %v572 = vld [vmem:[#allocation2 + $0xe68] sm:$0xff]
    %v573 = vld [vmem:[#allocation2 + $0xe70] sm:$0xff]
    %v574 = vld [vmem:[#allocation2 + $0xe78] sm:$0xff]
    %v575 = vld [vmem:[#allocation2 + $0xe80] sm:$0xff]
    %v576 = vld [vmem:[#allocation2 + $0xe88] sm:$0xff]
    %v577 = vld [vmem:[#allocation2 + $0xe90] sm:$0xff]
    %v578 = vld [vmem:[#allocation2 + $0xe98] sm:$0xff]
    %v579 = vld [vmem:[#allocation2 + $0xea0] sm:$0xff]
    %v580 = vld [vmem:[#allocation2 + $0xea8] sm:$0xff]
    %v581 = vld [vmem:[#allocation2 + $0xeb0] sm:$0xff]
    %v582 = vld [vmem:[#allocation2 + $0xeb8] sm:$0xff]
    %v583 = vld [vmem:[#allocation2 + $0xec0] sm:$0xff]
    %v584 = vld [vmem:[#allocation2 + $0xec8] sm:$0xff]
    %v585 = vld [vmem:[#allocation2 + $0xed0] sm:$0xff]
    %v586 = vld [vmem:[#allocation2 + $0xed8] sm:$0xff]
    %v587 = vld [vmem:[#allocation2 + $0xee0] sm:$0xff]
    %v588 = vld [vmem:[#allocation2 + $0xee8] sm:$0xff]
    %v589 = vld [vmem:[#allocation2 + $0xef0] sm:$0xff]
    %v590 = vld [vmem:[#allocation2 + $0xef8] sm:$0xff]
    %v591 = vld [vmem:[#allocation2 + $0xf00] sm:$0xff]
    %v592 = vld [vmem:[#allocation2 + $0xf08] sm:$0xff]
    %v593 = vld [vmem:[#allocation2 + $0xf10] sm:$0xff]
    %v594 = vld [vmem:[#allocation2 + $0xf18] sm:$0xff]
    %v595 = vld [vmem:[#allocation2 + $0xf20] sm:$0xff]
    %v596 = vld [vmem:[#allocation2 + $0xf28] sm:$0xff]
    %v597 = vld [vmem:[#allocation2 + $0xf30] sm:$0xff]
    %v598 = vld [vmem:[#allocation2 + $0xf38] sm:$0xff]
    %v599 = vld [vmem:[#allocation2 + $0xf40] sm:$0xff]
    %v600 = vld [vmem:[#allocation2 + $0xf48] sm:$0xff]
    %v601 = vld [vmem:[#allocation2 + $0xf50] sm:$0xff]
    %v602 = vld [vmem:[#allocation2 + $0xf58] sm:$0xff]
    %v603 = vld [vmem:[#allocation2 + $0xf60] sm:$0xff]
    %v604 = vld [vmem:[#allocation2 + $0xf68] sm:$0xff]
    %v605 = vld [vmem:[#allocation2 + $0xf70] sm:$0xff]
    %v606 = vld [vmem:[#allocation2 + $0xf78] sm:$0xff]
    %v607 = vld [vmem:[#allocation2 + $0xf80] sm:$0xff]
    %v608 = vld [vmem:[#allocation2 + $0xf88] sm:$0xff]
    %v609 = vld [vmem:[#allocation2 + $0xf90] sm:$0xff]
    %v610 = vld [vmem:[#allocation2 + $0xf98] sm:$0xff]
    %v611 = vld [vmem:[#allocation2 + $0xfa0] sm:$0xff]
    %v612 = vld [vmem:[#allocation2 + $0xfa8] sm:$0xff]
    %v613 = vld [vmem:[#allocation2 + $0xfb0] sm:$0xff]
    %v614 = vld [vmem:[#allocation2 + $0xfb8] sm:$0xff]
    %v615 = vld [vmem:[#allocation2 + $0xfc0] sm:$0xff]
    %v616 = vld [vmem:[#allocation2 + $0xfc8] sm:$0xff]
    %v617 = vld [vmem:[#allocation2 + $0xfd0] sm:$0xff]
    %v618 = vld [vmem:[#allocation2 + $0xfd8] sm:$0xff]
    %v619 = vld [vmem:[#allocation2 + $0xfe0] sm:$0xff]
    %v620 = vld [vmem:[#allocation2 + $0xfe8] sm:$0xff]
    %v621 = vld [vmem:[#allocation2 + $0xff0] sm:$0xff]
    %v622 = vld [vmem:[#allocation2 + $0xff8] sm:$0xff]
    %v623 = vld [vmem:[#allocation4] sm:$0xff]
    %v625 = vlaneseq
    %v626 = vshrl.u32 %v625, 7
    %v627 = vsub.s32 0, %v626
    %v628 = vrot.slane %v623, %v627
    %v629 = vlaneseq
    %v630 = vshrl.u32 %v629, 7
    %v631 = vsub.s32 1, %v630
    %v632 = vrot.slane %v623, %v631
    %v633 = vlaneseq
    %v634 = vshrl.u32 %v633, 7
    %v635 = vsub.s32 2, %v634
    %v636 = vrot.slane %v623, %v635
    %v637 = vlaneseq
    %v638 = vshrl.u32 %v637, 7
    %v639 = vsub.s32 3, %v638
    %v640 = vrot.slane %v623, %v639
    %v641 = vlaneseq
    %v642 = vshrl.u32 %v641, 7
    %v643 = vsub.s32 4, %v642
    %v644 = vrot.slane %v623, %v643
    %v645 = vlaneseq
    %v646 = vshrl.u32 %v645, 7
    %v647 = vsub.s32 5, %v646
    %v648 = vrot.slane %v623, %v647
    %v649 = vlaneseq
    %v650 = vshrl.u32 %v649, 7
    %v651 = vsub.s32 6, %v650
    %v652 = vrot.slane %v623, %v651
    %v653 = vlaneseq
    %v654 = vshrl.u32 %v653, 7
    %v655 = vsub.s32 7, %v654
    %v656 = vrot.slane %v623, %v655
    %v673 = vunpack.c.l.b16 %v103
    %v674 = vunpack.c.h.b16 %v103
    %v675 = vunpack.c.l.b16 %v104
    %v676 = vunpack.c.h.b16 %v104
    %v677 = vunpack.c.l.b16 %v105
    %v678 = vunpack.c.h.b16 %v105
    %v679 = vunpack.c.l.b16 %v106
    %v680 = vunpack.c.h.b16 %v106
    %v681 = vunpack.c.l.b16 %v107
    %v682 = vunpack.c.h.b16 %v107
    %v683 = vunpack.c.l.b16 %v108
    %v684 = vunpack.c.h.b16 %v108
    %v685 = vunpack.c.l.b16 %v109
    %v686 = vunpack.c.h.b16 %v109
    %v687 = vunpack.c.l.b16 %v110
    %v688 = vunpack.c.h.b16 %v110
    %v689 = vpack.c.b16 %v681, %v673
    %v690 = vpack.c.b16 %v682, %v674
    %v691 = vpack.c.b16 %v683, %v675
    %v692 = vpack.c.b16 %v684, %v676
    %v693 = vpack.c.b16 %v685, %v677
    %v694 = vpack.c.b16 %v686, %v678
    %v695 = vpack.c.b16 %v687, %v679
    %v696 = vpack.c.b16 %v688, %v680
    %v1217 = vunpack.c.l.b16 %v111
    %v1218 = vunpack.c.h.b16 %v111
    %v1219 = vunpack.c.l.b16 %v112
    %v1220 = vunpack.c.h.b16 %v112
    %v1221 = vunpack.c.l.b16 %v113
    %v1222 = vunpack.c.h.b16 %v113
    %v1223 = vunpack.c.l.b16 %v114
    %v1224 = vunpack.c.h.b16 %v114
    %v1225 = vunpack.c.l.b16 %v115
    %v1226 = vunpack.c.h.b16 %v115
    %v1227 = vunpack.c.l.b16 %v116
    %v1228 = vunpack.c.h.b16 %v116
    %v1229 = vunpack.c.l.b16 %v117
    %v1230 = vunpack.c.h.b16 %v117
    %v1231 = vunpack.c.l.b16 %v118
    %v1232 = vunpack.c.h.b16 %v118
    %v1233 = vunpack.c.l.b16 %v119
    %v1234 = vunpack.c.h.b16 %v119
    %v1235 = vunpack.c.l.b16 %v120
    %v1236 = vunpack.c.h.b16 %v120
    %v1237 = vunpack.c.l.b16 %v121
    %v1238 = vunpack.c.h.b16 %v121
    %v1239 = vunpack.c.l.b16 %v122
    %v1240 = vunpack.c.h.b16 %v122
    %v1241 = vunpack.c.l.b16 %v123
    %v1242 = vunpack.c.h.b16 %v123
    %v1243 = vunpack.c.l.b16 %v124
    %v1244 = vunpack.c.h.b16 %v124
    %v1245 = vunpack.c.l.b16 %v125
    %v1246 = vunpack.c.h.b16 %v125
    %v1247 = vunpack.c.l.b16 %v126
    %v1248 = vunpack.c.h.b16 %v126
    %v1249 = vunpack.c.l.b16 %v127
    %v1250 = vunpack.c.h.b16 %v127
    %v1251 = vunpack.c.l.b16 %v128
    %v1252 = vunpack.c.h.b16 %v128
    %v1253 = vunpack.c.l.b16 %v129
    %v1254 = vunpack.c.h.b16 %v129
    %v1255 = vunpack.c.l.b16 %v130
    %v1256 = vunpack.c.h.b16 %v130
    %v1257 = vunpack.c.l.b16 %v131
    %v1258 = vunpack.c.h.b16 %v131
    %v1259 = vunpack.c.l.b16 %v132
    %v1260 = vunpack.c.h.b16 %v132
    %v1261 = vunpack.c.l.b16 %v133
    %v1262 = vunpack.c.h.b16 %v133
    %v1263 = vunpack.c.l.b16 %v134
    %v1264 = vunpack.c.h.b16 %v134
    %v1265 = vunpack.c.l.b16 %v135
    %v1266 = vunpack.c.h.b16 %v135
    %v1267 = vunpack.c.l.b16 %v136
    %v1268 = vunpack.c.h.b16 %v136
    %v1269 = vunpack.c.l.b16 %v137
    %v1270 = vunpack.c.h.b16 %v137
    %v1271 = vunpack.c.l.b16 %v138
    %v1272 = vunpack.c.h.b16 %v138
    %v1273 = vunpack.c.l.b16 %v139
    %v1274 = vunpack.c.h.b16 %v139
    %v1275 = vunpack.c.l.b16 %v140
    %v1276 = vunpack.c.h.b16 %v140
    %v1277 = vunpack.c.l.b16 %v141
    %v1278 = vunpack.c.h.b16 %v141
    %v1279 = vunpack.c.l.b16 %v142
    %v1280 = vunpack.c.h.b16 %v142
    %v1281 = vunpack.c.l.b16 %v143
    %v1282 = vunpack.c.h.b16 %v143
    %v1283 = vunpack.c.l.b16 %v144
    %v1284 = vunpack.c.h.b16 %v144
    %v1285 = vunpack.c.l.b16 %v145
    %v1286 = vunpack.c.h.b16 %v145
    %v1287 = vunpack.c.l.b16 %v146
    %v1288 = vunpack.c.h.b16 %v146
    %v1289 = vunpack.c.l.b16 %v147
    %v1290 = vunpack.c.h.b16 %v147
    %v1291 = vunpack.c.l.b16 %v148
    %v1292 = vunpack.c.h.b16 %v148
    %v1293 = vunpack.c.l.b16 %v149
    %v1294 = vunpack.c.h.b16 %v149
    %v1295 = vunpack.c.l.b16 %v150
    %v1296 = vunpack.c.h.b16 %v150
    %v1297 = vunpack.c.l.b16 %v151
    %v1298 = vunpack.c.h.b16 %v151
    %v1299 = vunpack.c.l.b16 %v152
    %v1300 = vunpack.c.h.b16 %v152
    %v1301 = vunpack.c.l.b16 %v153
    %v1302 = vunpack.c.h.b16 %v153
    %v1303 = vunpack.c.l.b16 %v154
    %v1304 = vunpack.c.h.b16 %v154
    %v1305 = vunpack.c.l.b16 %v155
    %v1306 = vunpack.c.h.b16 %v155
    %v1307 = vunpack.c.l.b16 %v156
    %v1308 = vunpack.c.h.b16 %v156
    %v1309 = vunpack.c.l.b16 %v157
    %v1310 = vunpack.c.h.b16 %v157
    %v1311 = vunpack.c.l.b16 %v158
    %v1312 = vunpack.c.h.b16 %v158
    %v1313 = vunpack.c.l.b16 %v159
    %v1314 = vunpack.c.h.b16 %v159
    %v1315 = vunpack.c.l.b16 %v160
    %v1316 = vunpack.c.h.b16 %v160
    %v1317 = vunpack.c.l.b16 %v161
    %v1318 = vunpack.c.h.b16 %v161
    %v1319 = vunpack.c.l.b16 %v162
    %v1320 = vunpack.c.h.b16 %v162
    %v1321 = vunpack.c.l.b16 %v163
    %v1322 = vunpack.c.h.b16 %v163
    %v1323 = vunpack.c.l.b16 %v164
    %v1324 = vunpack.c.h.b16 %v164
    %v1325 = vunpack.c.l.b16 %v165
    %v1326 = vunpack.c.h.b16 %v165
    %v1327 = vunpack.c.l.b16 %v166
    %v1328 = vunpack.c.h.b16 %v166
    %v1329 = vunpack.c.l.b16 %v167
    %v1330 = vunpack.c.h.b16 %v167
    %v1331 = vunpack.c.l.b16 %v168
    %v1332 = vunpack.c.h.b16 %v168
    %v1333 = vunpack.c.l.b16 %v169
    %v1334 = vunpack.c.h.b16 %v169
    %v1335 = vunpack.c.l.b16 %v170
    %v1336 = vunpack.c.h.b16 %v170
    %v1337 = vunpack.c.l.b16 %v171
    %v1338 = vunpack.c.h.b16 %v171
    %v1339 = vunpack.c.l.b16 %v172
    %v1340 = vunpack.c.h.b16 %v172
    %v1341 = vunpack.c.l.b16 %v173
    %v1342 = vunpack.c.h.b16 %v173
    %v1343 = vunpack.c.l.b16 %v174
    %v1344 = vunpack.c.h.b16 %v174
    %v1345 = vunpack.c.l.b16 %v175
    %v1346 = vunpack.c.h.b16 %v175
    %v1347 = vunpack.c.l.b16 %v176
    %v1348 = vunpack.c.h.b16 %v176
    %v1349 = vunpack.c.l.b16 %v177
    %v1350 = vunpack.c.h.b16 %v177
    %v1351 = vunpack.c.l.b16 %v178
    %v1352 = vunpack.c.h.b16 %v178
    %v1353 = vunpack.c.l.b16 %v179
    %v1354 = vunpack.c.h.b16 %v179
    %v1355 = vunpack.c.l.b16 %v180
    %v1356 = vunpack.c.h.b16 %v180
    %v1357 = vunpack.c.l.b16 %v181
    %v1358 = vunpack.c.h.b16 %v181
    %v1359 = vunpack.c.l.b16 %v182
    %v1360 = vunpack.c.h.b16 %v182
    %v1361 = vunpack.c.l.b16 %v183
    %v1362 = vunpack.c.h.b16 %v183
    %v1363 = vunpack.c.l.b16 %v184
    %v1364 = vunpack.c.h.b16 %v184
    %v1365 = vunpack.c.l.b16 %v185
    %v1366 = vunpack.c.h.b16 %v185
    %v1367 = vunpack.c.l.b16 %v186
    %v1368 = vunpack.c.h.b16 %v186
    %v1369 = vunpack.c.l.b16 %v187
    %v1370 = vunpack.c.h.b16 %v187
    %v1371 = vunpack.c.l.b16 %v188
    %v1372 = vunpack.c.h.b16 %v188
    %v1373 = vunpack.c.l.b16 %v189
    %v1374 = vunpack.c.h.b16 %v189
    %v1375 = vunpack.c.l.b16 %v190
    %v1376 = vunpack.c.h.b16 %v190
    %v1377 = vunpack.c.l.b16 %v191
    %v1378 = vunpack.c.h.b16 %v191
    %v1379 = vunpack.c.l.b16 %v192
    %v1380 = vunpack.c.h.b16 %v192
    %v1381 = vunpack.c.l.b16 %v193
    %v1382 = vunpack.c.h.b16 %v193
    %v1383 = vunpack.c.l.b16 %v194
    %v1384 = vunpack.c.h.b16 %v194
    %v1385 = vunpack.c.l.b16 %v195
    %v1386 = vunpack.c.h.b16 %v195
    %v1387 = vunpack.c.l.b16 %v196
    %v1388 = vunpack.c.h.b16 %v196
    %v1389 = vunpack.c.l.b16 %v197
    %v1390 = vunpack.c.h.b16 %v197
    %v1391 = vunpack.c.l.b16 %v198
    %v1392 = vunpack.c.h.b16 %v198
    %v1393 = vunpack.c.l.b16 %v199
    %v1394 = vunpack.c.h.b16 %v199
    %v1395 = vunpack.c.l.b16 %v200
    %v1396 = vunpack.c.h.b16 %v200
    %v1397 = vunpack.c.l.b16 %v201
    %v1398 = vunpack.c.h.b16 %v201
    %v1399 = vunpack.c.l.b16 %v202
    %v1400 = vunpack.c.h.b16 %v202
    %v1401 = vunpack.c.l.b16 %v203
    %v1402 = vunpack.c.h.b16 %v203
    %v1403 = vunpack.c.l.b16 %v204
    %v1404 = vunpack.c.h.b16 %v204
    %v1405 = vunpack.c.l.b16 %v205
    %v1406 = vunpack.c.h.b16 %v205
    %v1407 = vunpack.c.l.b16 %v206
    %v1408 = vunpack.c.h.b16 %v206
    %v1409 = vunpack.c.l.b16 %v207
    %v1410 = vunpack.c.h.b16 %v207
    %v1411 = vunpack.c.l.b16 %v208
    %v1412 = vunpack.c.h.b16 %v208
    %v1413 = vunpack.c.l.b16 %v209
    %v1414 = vunpack.c.h.b16 %v209
    %v1415 = vunpack.c.l.b16 %v210
    %v1416 = vunpack.c.h.b16 %v210
    %v1417 = vunpack.c.l.b16 %v211
    %v1418 = vunpack.c.h.b16 %v211
    %v1419 = vunpack.c.l.b16 %v212
    %v1420 = vunpack.c.h.b16 %v212
    %v1421 = vunpack.c.l.b16 %v213
    %v1422 = vunpack.c.h.b16 %v213
    %v1423 = vunpack.c.l.b16 %v214
    %v1424 = vunpack.c.h.b16 %v214
    %v1425 = vunpack.c.l.b16 %v215
    %v1426 = vunpack.c.h.b16 %v215
    %v1427 = vunpack.c.l.b16 %v216
    %v1428 = vunpack.c.h.b16 %v216
    %v1429 = vunpack.c.l.b16 %v217
    %v1430 = vunpack.c.h.b16 %v217
    %v1431 = vunpack.c.l.b16 %v218
    %v1432 = vunpack.c.h.b16 %v218
    %v1433 = vunpack.c.l.b16 %v219
    %v1434 = vunpack.c.h.b16 %v219
    %v1435 = vunpack.c.l.b16 %v220
    %v1436 = vunpack.c.h.b16 %v220
    %v1437 = vunpack.c.l.b16 %v221
    %v1438 = vunpack.c.h.b16 %v221
    %v1439 = vunpack.c.l.b16 %v222
    %v1440 = vunpack.c.h.b16 %v222
    %v1441 = vunpack.c.l.b16 %v223
    %v1442 = vunpack.c.h.b16 %v223
    %v1443 = vunpack.c.l.b16 %v224
    %v1444 = vunpack.c.h.b16 %v224
    %v1445 = vunpack.c.l.b16 %v225
    %v1446 = vunpack.c.h.b16 %v225
    %v1447 = vunpack.c.l.b16 %v226
    %v1448 = vunpack.c.h.b16 %v226
    %v1449 = vunpack.c.l.b16 %v227
    %v1450 = vunpack.c.h.b16 %v227
    %v1451 = vunpack.c.l.b16 %v228
    %v1452 = vunpack.c.h.b16 %v228
    %v1453 = vunpack.c.l.b16 %v229
    %v1454 = vunpack.c.h.b16 %v229
    %v1455 = vunpack.c.l.b16 %v230
    %v1456 = vunpack.c.h.b16 %v230
    %v1457 = vunpack.c.l.b16 %v231
    %v1458 = vunpack.c.h.b16 %v231
    %v1459 = vunpack.c.l.b16 %v232
    %v1460 = vunpack.c.h.b16 %v232
    %v1461 = vunpack.c.l.b16 %v233
    %v1462 = vunpack.c.h.b16 %v233
    %v1463 = vunpack.c.l.b16 %v234
    %v1464 = vunpack.c.h.b16 %v234
    %v1465 = vunpack.c.l.b16 %v235
    %v1466 = vunpack.c.h.b16 %v235
    %v1467 = vunpack.c.l.b16 %v236
    %v1468 = vunpack.c.h.b16 %v236
    %v1469 = vunpack.c.l.b16 %v237
    %v1470 = vunpack.c.h.b16 %v237
    %v1471 = vunpack.c.l.b16 %v238
    %v1472 = vunpack.c.h.b16 %v238
    %v1473 = vunpack.c.l.b16 %v239
    %v1474 = vunpack.c.h.b16 %v239
    %v1475 = vunpack.c.l.b16 %v240
    %v1476 = vunpack.c.h.b16 %v240
    %v1477 = vunpack.c.l.b16 %v241
    %v1478 = vunpack.c.h.b16 %v241
    %v1479 = vunpack.c.l.b16 %v242
    %v1480 = vunpack.c.h.b16 %v242
    %v1481 = vunpack.c.l.b16 %v243
    %v1482 = vunpack.c.h.b16 %v243
    %v1483 = vunpack.c.l.b16 %v244
    %v1484 = vunpack.c.h.b16 %v244
    %v1485 = vunpack.c.l.b16 %v245
    %v1486 = vunpack.c.h.b16 %v245
    %v1487 = vunpack.c.l.b16 %v246
    %v1488 = vunpack.c.h.b16 %v246
    %v1489 = vunpack.c.l.b16 %v247
    %v1490 = vunpack.c.h.b16 %v247
    %v1491 = vunpack.c.l.b16 %v248
    %v1492 = vunpack.c.h.b16 %v248
    %v1493 = vunpack.c.l.b16 %v249
    %v1494 = vunpack.c.h.b16 %v249
    %v1495 = vunpack.c.l.b16 %v250
    %v1496 = vunpack.c.h.b16 %v250
    %v1497 = vunpack.c.l.b16 %v251
    %v1498 = vunpack.c.h.b16 %v251
    %v1499 = vunpack.c.l.b16 %v252
    %v1500 = vunpack.c.h.b16 %v252
    %v1501 = vunpack.c.l.b16 %v253
    %v1502 = vunpack.c.h.b16 %v253
    %v1503 = vunpack.c.l.b16 %v254
    %v1504 = vunpack.c.h.b16 %v254
    %v1505 = vunpack.c.l.b16 %v255
    %v1506 = vunpack.c.h.b16 %v255
    %v1507 = vunpack.c.l.b16 %v256
    %v1508 = vunpack.c.h.b16 %v256
    %v1509 = vunpack.c.l.b16 %v257
    %v1510 = vunpack.c.h.b16 %v257
    %v1511 = vunpack.c.l.b16 %v258
    %v1512 = vunpack.c.h.b16 %v258
    %v1513 = vunpack.c.l.b16 %v259
    %v1514 = vunpack.c.h.b16 %v259
    %v1515 = vunpack.c.l.b16 %v260
    %v1516 = vunpack.c.h.b16 %v260
    %v1517 = vunpack.c.l.b16 %v261
    %v1518 = vunpack.c.h.b16 %v261
    %v1519 = vunpack.c.l.b16 %v262
    %v1520 = vunpack.c.h.b16 %v262
    %v1521 = vunpack.c.l.b16 %v263
    %v1522 = vunpack.c.h.b16 %v263
    %v1523 = vunpack.c.l.b16 %v264
    %v1524 = vunpack.c.h.b16 %v264
    %v1525 = vunpack.c.l.b16 %v265
    %v1526 = vunpack.c.h.b16 %v265
    %v1527 = vunpack.c.l.b16 %v266
    %v1528 = vunpack.c.h.b16 %v266
    %v1529 = vunpack.c.l.b16 %v267
    %v1530 = vunpack.c.h.b16 %v267
    %v1531 = vunpack.c.l.b16 %v268
    %v1532 = vunpack.c.h.b16 %v268
    %v1533 = vunpack.c.l.b16 %v269
    %v1534 = vunpack.c.h.b16 %v269
    %v1535 = vunpack.c.l.b16 %v270
    %v1536 = vunpack.c.h.b16 %v270
    %v1537 = vunpack.c.l.b16 %v271
    %v1538 = vunpack.c.h.b16 %v271
    %v1539 = vunpack.c.l.b16 %v272
    %v1540 = vunpack.c.h.b16 %v272
    %v1541 = vunpack.c.l.b16 %v273
    %v1542 = vunpack.c.h.b16 %v273
    %v1543 = vunpack.c.l.b16 %v274
    %v1544 = vunpack.c.h.b16 %v274
    %v1545 = vunpack.c.l.b16 %v275
    %v1546 = vunpack.c.h.b16 %v275
    %v1547 = vunpack.c.l.b16 %v276
    %v1548 = vunpack.c.h.b16 %v276
    %v1549 = vunpack.c.l.b16 %v277
    %v1550 = vunpack.c.h.b16 %v277
    %v1551 = vunpack.c.l.b16 %v278
    %v1552 = vunpack.c.h.b16 %v278
    %v1553 = vunpack.c.l.b16 %v279
    %v1554 = vunpack.c.h.b16 %v279
    %v1555 = vunpack.c.l.b16 %v280
    %v1556 = vunpack.c.h.b16 %v280
    %v1557 = vunpack.c.l.b16 %v281
    %v1558 = vunpack.c.h.b16 %v281
    %v1559 = vunpack.c.l.b16 %v282
    %v1560 = vunpack.c.h.b16 %v282
    %v1561 = vunpack.c.l.b16 %v283
    %v1562 = vunpack.c.h.b16 %v283
    %v1563 = vunpack.c.l.b16 %v284
    %v1564 = vunpack.c.h.b16 %v284
    %v1565 = vunpack.c.l.b16 %v285
    %v1566 = vunpack.c.h.b16 %v285
    %v1567 = vunpack.c.l.b16 %v286
    %v1568 = vunpack.c.h.b16 %v286
    %v1569 = vunpack.c.l.b16 %v287
    %v1570 = vunpack.c.h.b16 %v287
    %v1571 = vunpack.c.l.b16 %v288
    %v1572 = vunpack.c.h.b16 %v288
    %v1573 = vunpack.c.l.b16 %v289
    %v1574 = vunpack.c.h.b16 %v289
    %v1575 = vunpack.c.l.b16 %v290
    %v1576 = vunpack.c.h.b16 %v290
    %v1577 = vunpack.c.l.b16 %v291
    %v1578 = vunpack.c.h.b16 %v291
    %v1579 = vunpack.c.l.b16 %v292
    %v1580 = vunpack.c.h.b16 %v292
    %v1581 = vunpack.c.l.b16 %v293
    %v1582 = vunpack.c.h.b16 %v293
    %v1583 = vunpack.c.l.b16 %v294
    %v1584 = vunpack.c.h.b16 %v294
    %v1585 = vunpack.c.l.b16 %v295
    %v1586 = vunpack.c.h.b16 %v295
    %v1587 = vunpack.c.l.b16 %v296
    %v1588 = vunpack.c.h.b16 %v296
    %v1589 = vunpack.c.l.b16 %v297
    %v1590 = vunpack.c.h.b16 %v297
    %v1591 = vunpack.c.l.b16 %v298
    %v1592 = vunpack.c.h.b16 %v298
    %v1593 = vunpack.c.l.b16 %v299
    %v1594 = vunpack.c.h.b16 %v299
    %v1595 = vunpack.c.l.b16 %v300
    %v1596 = vunpack.c.h.b16 %v300
    %v1597 = vunpack.c.l.b16 %v301
    %v1598 = vunpack.c.h.b16 %v301
    %v1599 = vunpack.c.l.b16 %v302
    %v1600 = vunpack.c.h.b16 %v302
    %v1601 = vunpack.c.l.b16 %v303
    %v1602 = vunpack.c.h.b16 %v303
    %v1603 = vunpack.c.l.b16 %v304
    %v1604 = vunpack.c.h.b16 %v304
    %v1605 = vunpack.c.l.b16 %v305
    %v1606 = vunpack.c.h.b16 %v305
    %v1607 = vunpack.c.l.b16 %v306
    %v1608 = vunpack.c.h.b16 %v306
    %v1609 = vunpack.c.l.b16 %v307
    %v1610 = vunpack.c.h.b16 %v307
    %v1611 = vunpack.c.l.b16 %v308
    %v1612 = vunpack.c.h.b16 %v308
    %v1613 = vunpack.c.l.b16 %v309
    %v1614 = vunpack.c.h.b16 %v309
    %v1615 = vunpack.c.l.b16 %v310
    %v1616 = vunpack.c.h.b16 %v310
    %v1617 = vunpack.c.l.b16 %v311
    %v1618 = vunpack.c.h.b16 %v311
    %v1619 = vunpack.c.l.b16 %v312
    %v1620 = vunpack.c.h.b16 %v312
    %v1621 = vunpack.c.l.b16 %v313
    %v1622 = vunpack.c.h.b16 %v313
    %v1623 = vunpack.c.l.b16 %v314
    %v1624 = vunpack.c.h.b16 %v314
    %v1625 = vunpack.c.l.b16 %v315
    %v1626 = vunpack.c.h.b16 %v315
    %v1627 = vunpack.c.l.b16 %v316
    %v1628 = vunpack.c.h.b16 %v316
    %v1629 = vunpack.c.l.b16 %v317
    %v1630 = vunpack.c.h.b16 %v317
    %v1631 = vunpack.c.l.b16 %v318
    %v1632 = vunpack.c.h.b16 %v318
    %v1633 = vunpack.c.l.b16 %v319
    %v1634 = vunpack.c.h.b16 %v319
    %v1635 = vunpack.c.l.b16 %v320
    %v1636 = vunpack.c.h.b16 %v320
    %v1637 = vunpack.c.l.b16 %v321
    %v1638 = vunpack.c.h.b16 %v321
    %v1639 = vunpack.c.l.b16 %v322
    %v1640 = vunpack.c.h.b16 %v322
    %v1641 = vunpack.c.l.b16 %v323
    %v1642 = vunpack.c.h.b16 %v323
    %v1643 = vunpack.c.l.b16 %v324
    %v1644 = vunpack.c.h.b16 %v324
    %v1645 = vunpack.c.l.b16 %v325
    %v1646 = vunpack.c.h.b16 %v325
    %v1647 = vunpack.c.l.b16 %v326
    %v1648 = vunpack.c.h.b16 %v326
    %v1649 = vunpack.c.l.b16 %v327
    %v1650 = vunpack.c.h.b16 %v327
    %v1651 = vunpack.c.l.b16 %v328
    %v1652 = vunpack.c.h.b16 %v328
    %v1653 = vunpack.c.l.b16 %v329
    %v1654 = vunpack.c.h.b16 %v329
    %v1655 = vunpack.c.l.b16 %v330
    %v1656 = vunpack.c.h.b16 %v330
    %v1657 = vunpack.c.l.b16 %v331
    %v1658 = vunpack.c.h.b16 %v331
    %v1659 = vunpack.c.l.b16 %v332
    %v1660 = vunpack.c.h.b16 %v332
    %v1661 = vunpack.c.l.b16 %v333
    %v1662 = vunpack.c.h.b16 %v333
    %v1663 = vunpack.c.l.b16 %v334
    %v1664 = vunpack.c.h.b16 %v334
    %v1665 = vunpack.c.l.b16 %v335
    %v1666 = vunpack.c.h.b16 %v335
    %v1667 = vunpack.c.l.b16 %v336
    %v1668 = vunpack.c.h.b16 %v336
    %v1669 = vunpack.c.l.b16 %v337
    %v1670 = vunpack.c.h.b16 %v337
    %v1671 = vunpack.c.l.b16 %v338
    %v1672 = vunpack.c.h.b16 %v338
    %v1673 = vunpack.c.l.b16 %v339
    %v1674 = vunpack.c.h.b16 %v339
    %v1675 = vunpack.c.l.b16 %v340
    %v1676 = vunpack.c.h.b16 %v340
    %v1677 = vunpack.c.l.b16 %v341
    %v1678 = vunpack.c.h.b16 %v341
    %v1679 = vunpack.c.l.b16 %v342
    %v1680 = vunpack.c.h.b16 %v342
    %v1681 = vunpack.c.l.b16 %v343
    %v1682 = vunpack.c.h.b16 %v343
    %v1683 = vunpack.c.l.b16 %v344
    %v1684 = vunpack.c.h.b16 %v344
    %v1685 = vunpack.c.l.b16 %v345
    %v1686 = vunpack.c.h.b16 %v345
    %v1687 = vunpack.c.l.b16 %v346
    %v1688 = vunpack.c.h.b16 %v346
    %v1689 = vunpack.c.l.b16 %v347
    %v1690 = vunpack.c.h.b16 %v347
    %v1691 = vunpack.c.l.b16 %v348
    %v1692 = vunpack.c.h.b16 %v348
    %v1693 = vunpack.c.l.b16 %v349
    %v1694 = vunpack.c.h.b16 %v349
    %v1695 = vunpack.c.l.b16 %v350
    %v1696 = vunpack.c.h.b16 %v350
    %v1697 = vunpack.c.l.b16 %v351
    %v1698 = vunpack.c.h.b16 %v351
    %v1699 = vunpack.c.l.b16 %v352
    %v1700 = vunpack.c.h.b16 %v352
    %v1701 = vunpack.c.l.b16 %v353
    %v1702 = vunpack.c.h.b16 %v353
    %v1703 = vunpack.c.l.b16 %v354
    %v1704 = vunpack.c.h.b16 %v354
    %v1705 = vunpack.c.l.b16 %v355
    %v1706 = vunpack.c.h.b16 %v355
    %v1707 = vunpack.c.l.b16 %v356
    %v1708 = vunpack.c.h.b16 %v356
    %v1709 = vunpack.c.l.b16 %v357
    %v1710 = vunpack.c.h.b16 %v357
    %v1711 = vunpack.c.l.b16 %v358
    %v1712 = vunpack.c.h.b16 %v358
    %v1713 = vunpack.c.l.b16 %v359
    %v1714 = vunpack.c.h.b16 %v359
    %v1715 = vunpack.c.l.b16 %v360
    %v1716 = vunpack.c.h.b16 %v360
    %v1717 = vunpack.c.l.b16 %v361
    %v1718 = vunpack.c.h.b16 %v361
    %v1719 = vunpack.c.l.b16 %v362
    %v1720 = vunpack.c.h.b16 %v362
    %v1721 = vunpack.c.l.b16 %v363
    %v1722 = vunpack.c.h.b16 %v363
    %v1723 = vunpack.c.l.b16 %v364
    %v1724 = vunpack.c.h.b16 %v364
    %v1725 = vunpack.c.l.b16 %v365
    %v1726 = vunpack.c.h.b16 %v365
    %v1727 = vunpack.c.l.b16 %v366
    %v1728 = vunpack.c.h.b16 %v366
    %v1729 = vunpack.c.l.b16 %v367
    %v1730 = vunpack.c.h.b16 %v367
    %v1731 = vunpack.c.l.b16 %v368
    %v1732 = vunpack.c.h.b16 %v368
    %v1733 = vunpack.c.l.b16 %v369
    %v1734 = vunpack.c.h.b16 %v369
    %v1735 = vunpack.c.l.b16 %v370
    %v1736 = vunpack.c.h.b16 %v370
    %v1737 = vunpack.c.l.b16 %v371
    %v1738 = vunpack.c.h.b16 %v371
    %v1739 = vunpack.c.l.b16 %v372
    %v1740 = vunpack.c.h.b16 %v372
    %v1741 = vunpack.c.l.b16 %v373
    %v1742 = vunpack.c.h.b16 %v373
    %v1743 = vunpack.c.l.b16 %v374
    %v1744 = vunpack.c.h.b16 %v374
    %v1745 = vunpack.c.l.b16 %v375
    %v1746 = vunpack.c.h.b16 %v375
    %v1747 = vunpack.c.l.b16 %v376
    %v1748 = vunpack.c.h.b16 %v376
    %v1749 = vunpack.c.l.b16 %v377
    %v1750 = vunpack.c.h.b16 %v377
    %v1751 = vunpack.c.l.b16 %v378
    %v1752 = vunpack.c.h.b16 %v378
    %v1753 = vunpack.c.l.b16 %v379
    %v1754 = vunpack.c.h.b16 %v379
    %v1755 = vunpack.c.l.b16 %v380
    %v1756 = vunpack.c.h.b16 %v380
    %v1757 = vunpack.c.l.b16 %v381
    %v1758 = vunpack.c.h.b16 %v381
    %v1759 = vunpack.c.l.b16 %v382
    %v1760 = vunpack.c.h.b16 %v382
    %v1761 = vunpack.c.l.b16 %v383
    %v1762 = vunpack.c.h.b16 %v383
    %v1763 = vunpack.c.l.b16 %v384
    %v1764 = vunpack.c.h.b16 %v384
    %v1765 = vunpack.c.l.b16 %v385
    %v1766 = vunpack.c.h.b16 %v385
    %v1767 = vunpack.c.l.b16 %v386
    %v1768 = vunpack.c.h.b16 %v386
    %v1769 = vunpack.c.l.b16 %v387
    %v1770 = vunpack.c.h.b16 %v387
    %v1771 = vunpack.c.l.b16 %v388
    %v1772 = vunpack.c.h.b16 %v388
    %v1773 = vunpack.c.l.b16 %v389
    %v1774 = vunpack.c.h.b16 %v389
    %v1775 = vunpack.c.l.b16 %v390
    %v1776 = vunpack.c.h.b16 %v390
    %v1777 = vunpack.c.l.b16 %v391
    %v1778 = vunpack.c.h.b16 %v391
    %v1779 = vunpack.c.l.b16 %v392
    %v1780 = vunpack.c.h.b16 %v392
    %v1781 = vunpack.c.l.b16 %v393
    %v1782 = vunpack.c.h.b16 %v393
    %v1783 = vunpack.c.l.b16 %v394
    %v1784 = vunpack.c.h.b16 %v394
    %v1785 = vunpack.c.l.b16 %v395
    %v1786 = vunpack.c.h.b16 %v395
    %v1787 = vunpack.c.l.b16 %v396
    %v1788 = vunpack.c.h.b16 %v396
    %v1789 = vunpack.c.l.b16 %v397
    %v1790 = vunpack.c.h.b16 %v397
    %v1791 = vunpack.c.l.b16 %v398
    %v1792 = vunpack.c.h.b16 %v398
    %v1793 = vunpack.c.l.b16 %v399
    %v1794 = vunpack.c.h.b16 %v399
    %v1795 = vunpack.c.l.b16 %v400
    %v1796 = vunpack.c.h.b16 %v400
    %v1797 = vunpack.c.l.b16 %v401
    %v1798 = vunpack.c.h.b16 %v401
    %v1799 = vunpack.c.l.b16 %v402
    %v1800 = vunpack.c.h.b16 %v402
    %v1801 = vunpack.c.l.b16 %v403
    %v1802 = vunpack.c.h.b16 %v403
    %v1803 = vunpack.c.l.b16 %v404
    %v1804 = vunpack.c.h.b16 %v404
    %v1805 = vunpack.c.l.b16 %v405
    %v1806 = vunpack.c.h.b16 %v405
    %v1807 = vunpack.c.l.b16 %v406
    %v1808 = vunpack.c.h.b16 %v406
    %v1809 = vunpack.c.l.b16 %v407
    %v1810 = vunpack.c.h.b16 %v407
    %v1811 = vunpack.c.l.b16 %v408
    %v1812 = vunpack.c.h.b16 %v408
    %v1813 = vunpack.c.l.b16 %v409
    %v1814 = vunpack.c.h.b16 %v409
    %v1815 = vunpack.c.l.b16 %v410
    %v1816 = vunpack.c.h.b16 %v410
    %v1817 = vunpack.c.l.b16 %v411
    %v1818 = vunpack.c.h.b16 %v411
    %v1819 = vunpack.c.l.b16 %v412
    %v1820 = vunpack.c.h.b16 %v412
    %v1821 = vunpack.c.l.b16 %v413
    %v1822 = vunpack.c.h.b16 %v413
    %v1823 = vunpack.c.l.b16 %v414
    %v1824 = vunpack.c.h.b16 %v414
    %v1825 = vunpack.c.l.b16 %v415
    %v1826 = vunpack.c.h.b16 %v415
    %v1827 = vunpack.c.l.b16 %v416
    %v1828 = vunpack.c.h.b16 %v416
    %v1829 = vunpack.c.l.b16 %v417
    %v1830 = vunpack.c.h.b16 %v417
    %v1831 = vunpack.c.l.b16 %v418
    %v1832 = vunpack.c.h.b16 %v418
    %v1833 = vunpack.c.l.b16 %v419
    %v1834 = vunpack.c.h.b16 %v419
    %v1835 = vunpack.c.l.b16 %v420
    %v1836 = vunpack.c.h.b16 %v420
    %v1837 = vunpack.c.l.b16 %v421
    %v1838 = vunpack.c.h.b16 %v421
    %v1839 = vunpack.c.l.b16 %v422
    %v1840 = vunpack.c.h.b16 %v422
    %v1841 = vunpack.c.l.b16 %v423
    %v1842 = vunpack.c.h.b16 %v423
    %v1843 = vunpack.c.l.b16 %v424
    %v1844 = vunpack.c.h.b16 %v424
    %v1845 = vunpack.c.l.b16 %v425
    %v1846 = vunpack.c.h.b16 %v425
    %v1847 = vunpack.c.l.b16 %v426
    %v1848 = vunpack.c.h.b16 %v426
    %v1849 = vunpack.c.l.b16 %v427
    %v1850 = vunpack.c.h.b16 %v427
    %v1851 = vunpack.c.l.b16 %v428
    %v1852 = vunpack.c.h.b16 %v428
    %v1853 = vunpack.c.l.b16 %v429
    %v1854 = vunpack.c.h.b16 %v429
    %v1855 = vunpack.c.l.b16 %v430
    %v1856 = vunpack.c.h.b16 %v430
    %v1857 = vunpack.c.l.b16 %v431
    %v1858 = vunpack.c.h.b16 %v431
    %v1859 = vunpack.c.l.b16 %v432
    %v1860 = vunpack.c.h.b16 %v432
    %v1861 = vunpack.c.l.b16 %v433
    %v1862 = vunpack.c.h.b16 %v433
    %v1863 = vunpack.c.l.b16 %v434
    %v1864 = vunpack.c.h.b16 %v434
    %v1865 = vunpack.c.l.b16 %v435
    %v1866 = vunpack.c.h.b16 %v435
    %v1867 = vunpack.c.l.b16 %v436
    %v1868 = vunpack.c.h.b16 %v436
    %v1869 = vunpack.c.l.b16 %v437
    %v1870 = vunpack.c.h.b16 %v437
    %v1871 = vunpack.c.l.b16 %v438
    %v1872 = vunpack.c.h.b16 %v438
    %v1873 = vunpack.c.l.b16 %v439
    %v1874 = vunpack.c.h.b16 %v439
    %v1875 = vunpack.c.l.b16 %v440
    %v1876 = vunpack.c.h.b16 %v440
    %v1877 = vunpack.c.l.b16 %v441
    %v1878 = vunpack.c.h.b16 %v441
    %v1879 = vunpack.c.l.b16 %v442
    %v1880 = vunpack.c.h.b16 %v442
    %v1881 = vunpack.c.l.b16 %v443
    %v1882 = vunpack.c.h.b16 %v443
    %v1883 = vunpack.c.l.b16 %v444
    %v1884 = vunpack.c.h.b16 %v444
    %v1885 = vunpack.c.l.b16 %v445
    %v1886 = vunpack.c.h.b16 %v445
    %v1887 = vunpack.c.l.b16 %v446
    %v1888 = vunpack.c.h.b16 %v446
    %v1889 = vunpack.c.l.b16 %v447
    %v1890 = vunpack.c.h.b16 %v447
    %v1891 = vunpack.c.l.b16 %v448
    %v1892 = vunpack.c.h.b16 %v448
    %v1893 = vunpack.c.l.b16 %v449
    %v1894 = vunpack.c.h.b16 %v449
    %v1895 = vunpack.c.l.b16 %v450
    %v1896 = vunpack.c.h.b16 %v450
    %v1897 = vunpack.c.l.b16 %v451
    %v1898 = vunpack.c.h.b16 %v451
    %v1899 = vunpack.c.l.b16 %v452
    %v1900 = vunpack.c.h.b16 %v452
    %v1901 = vunpack.c.l.b16 %v453
    %v1902 = vunpack.c.h.b16 %v453
    %v1903 = vunpack.c.l.b16 %v454
    %v1904 = vunpack.c.h.b16 %v454
    %v1905 = vunpack.c.l.b16 %v455
    %v1906 = vunpack.c.h.b16 %v455
    %v1907 = vunpack.c.l.b16 %v456
    %v1908 = vunpack.c.h.b16 %v456
    %v1909 = vunpack.c.l.b16 %v457
    %v1910 = vunpack.c.h.b16 %v457
    %v1911 = vunpack.c.l.b16 %v458
    %v1912 = vunpack.c.h.b16 %v458
    %v1913 = vunpack.c.l.b16 %v459
    %v1914 = vunpack.c.h.b16 %v459
    %v1915 = vunpack.c.l.b16 %v460
    %v1916 = vunpack.c.h.b16 %v460
    %v1917 = vunpack.c.l.b16 %v461
    %v1918 = vunpack.c.h.b16 %v461
    %v1919 = vunpack.c.l.b16 %v462
    %v1920 = vunpack.c.h.b16 %v462
    %v1921 = vunpack.c.l.b16 %v463
    %v1922 = vunpack.c.h.b16 %v463
    %v1923 = vunpack.c.l.b16 %v464
    %v1924 = vunpack.c.h.b16 %v464
    %v1925 = vunpack.c.l.b16 %v465
    %v1926 = vunpack.c.h.b16 %v465
    %v1927 = vunpack.c.l.b16 %v466
    %v1928 = vunpack.c.h.b16 %v466
    %v1929 = vunpack.c.l.b16 %v467
    %v1930 = vunpack.c.h.b16 %v467
    %v1931 = vunpack.c.l.b16 %v468
    %v1932 = vunpack.c.h.b16 %v468
    %v1933 = vunpack.c.l.b16 %v469
    %v1934 = vunpack.c.h.b16 %v469
    %v1935 = vunpack.c.l.b16 %v470
    %v1936 = vunpack.c.h.b16 %v470
    %v1937 = vunpack.c.l.b16 %v471
    %v1938 = vunpack.c.h.b16 %v471
    %v1939 = vunpack.c.l.b16 %v472
    %v1940 = vunpack.c.h.b16 %v472
    %v1941 = vunpack.c.l.b16 %v473
    %v1942 = vunpack.c.h.b16 %v473
    %v1943 = vunpack.c.l.b16 %v474
    %v1944 = vunpack.c.h.b16 %v474
    %v1945 = vunpack.c.l.b16 %v475
    %v1946 = vunpack.c.h.b16 %v475
    %v1947 = vunpack.c.l.b16 %v476
    %v1948 = vunpack.c.h.b16 %v476
    %v1949 = vunpack.c.l.b16 %v477
    %v1950 = vunpack.c.h.b16 %v477
    %v1951 = vunpack.c.l.b16 %v478
    %v1952 = vunpack.c.h.b16 %v478
    %v1953 = vunpack.c.l.b16 %v479
    %v1954 = vunpack.c.h.b16 %v479
    %v1955 = vunpack.c.l.b16 %v480
    %v1956 = vunpack.c.h.b16 %v480
    %v1957 = vunpack.c.l.b16 %v481
    %v1958 = vunpack.c.h.b16 %v481
    %v1959 = vunpack.c.l.b16 %v482
    %v1960 = vunpack.c.h.b16 %v482
    %v1961 = vunpack.c.l.b16 %v483
    %v1962 = vunpack.c.h.b16 %v483
    %v1963 = vunpack.c.l.b16 %v484
    %v1964 = vunpack.c.h.b16 %v484
    %v1965 = vunpack.c.l.b16 %v485
    %v1966 = vunpack.c.h.b16 %v485
    %v1967 = vunpack.c.l.b16 %v486
    %v1968 = vunpack.c.h.b16 %v486
    %v1969 = vunpack.c.l.b16 %v487
    %v1970 = vunpack.c.h.b16 %v487
    %v1971 = vunpack.c.l.b16 %v488
    %v1972 = vunpack.c.h.b16 %v488
    %v1973 = vunpack.c.l.b16 %v489
    %v1974 = vunpack.c.h.b16 %v489
    %v1975 = vunpack.c.l.b16 %v490
    %v1976 = vunpack.c.h.b16 %v490
    %v1977 = vunpack.c.l.b16 %v491
    %v1978 = vunpack.c.h.b16 %v491
    %v1979 = vunpack.c.l.b16 %v492
    %v1980 = vunpack.c.h.b16 %v492
    %v1981 = vunpack.c.l.b16 %v493
    %v1982 = vunpack.c.h.b16 %v493
    %v1983 = vunpack.c.l.b16 %v494
    %v1984 = vunpack.c.h.b16 %v494
    %v1985 = vunpack.c.l.b16 %v495
    %v1986 = vunpack.c.h.b16 %v495
    %v1987 = vunpack.c.l.b16 %v496
    %v1988 = vunpack.c.h.b16 %v496
    %v1989 = vunpack.c.l.b16 %v497
    %v1990 = vunpack.c.h.b16 %v497
    %v1991 = vunpack.c.l.b16 %v498
    %v1992 = vunpack.c.h.b16 %v498
    %v1993 = vunpack.c.l.b16 %v499
    %v1994 = vunpack.c.h.b16 %v499
    %v1995 = vunpack.c.l.b16 %v500
    %v1996 = vunpack.c.h.b16 %v500
    %v1997 = vunpack.c.l.b16 %v501
    %v1998 = vunpack.c.h.b16 %v501
    %v1999 = vunpack.c.l.b16 %v502
    %v2000 = vunpack.c.h.b16 %v502
    %v2001 = vunpack.c.l.b16 %v503
    %v2002 = vunpack.c.h.b16 %v503
    %v2003 = vunpack.c.l.b16 %v504
    %v2004 = vunpack.c.h.b16 %v504
    %v2005 = vunpack.c.l.b16 %v505
    %v2006 = vunpack.c.h.b16 %v505
    %v2007 = vunpack.c.l.b16 %v506
    %v2008 = vunpack.c.h.b16 %v506
    %v2009 = vunpack.c.l.b16 %v507
    %v2010 = vunpack.c.h.b16 %v507
    %v2011 = vunpack.c.l.b16 %v508
    %v2012 = vunpack.c.h.b16 %v508
    %v2013 = vunpack.c.l.b16 %v509
    %v2014 = vunpack.c.h.b16 %v509
    %v2015 = vunpack.c.l.b16 %v510
    %v2016 = vunpack.c.h.b16 %v510
    %v2017 = vunpack.c.l.b16 %v511
    %v2018 = vunpack.c.h.b16 %v511
    %v2019 = vunpack.c.l.b16 %v512
    %v2020 = vunpack.c.h.b16 %v512
    %v2021 = vunpack.c.l.b16 %v513
    %v2022 = vunpack.c.h.b16 %v513
    %v2023 = vunpack.c.l.b16 %v514
    %v2024 = vunpack.c.h.b16 %v514
    %v2025 = vunpack.c.l.b16 %v515
    %v2026 = vunpack.c.h.b16 %v515
    %v2027 = vunpack.c.l.b16 %v516
    %v2028 = vunpack.c.h.b16 %v516
    %v2029 = vunpack.c.l.b16 %v517
    %v2030 = vunpack.c.h.b16 %v517
    %v2031 = vunpack.c.l.b16 %v518
    %v2032 = vunpack.c.h.b16 %v518
    %v2033 = vunpack.c.l.b16 %v519
    %v2034 = vunpack.c.h.b16 %v519
    %v2035 = vunpack.c.l.b16 %v520
    %v2036 = vunpack.c.h.b16 %v520
    %v2037 = vunpack.c.l.b16 %v521
    %v2038 = vunpack.c.h.b16 %v521
    %v2039 = vunpack.c.l.b16 %v522
    %v2040 = vunpack.c.h.b16 %v522
    %v2041 = vunpack.c.l.b16 %v523
    %v2042 = vunpack.c.h.b16 %v523
    %v2043 = vunpack.c.l.b16 %v524
    %v2044 = vunpack.c.h.b16 %v524
    %v2045 = vunpack.c.l.b16 %v525
    %v2046 = vunpack.c.h.b16 %v525
    %v2047 = vunpack.c.l.b16 %v526
    %v2048 = vunpack.c.h.b16 %v526
    %v2049 = vunpack.c.l.b16 %v527
    %v2050 = vunpack.c.h.b16 %v527
    %v2051 = vunpack.c.l.b16 %v528
    %v2052 = vunpack.c.h.b16 %v528
    %v2053 = vunpack.c.l.b16 %v529
    %v2054 = vunpack.c.h.b16 %v529
    %v2055 = vunpack.c.l.b16 %v530
    %v2056 = vunpack.c.h.b16 %v530
    %v2057 = vunpack.c.l.b16 %v531
    %v2058 = vunpack.c.h.b16 %v531
    %v2059 = vunpack.c.l.b16 %v532
    %v2060 = vunpack.c.h.b16 %v532
    %v2061 = vunpack.c.l.b16 %v533
    %v2062 = vunpack.c.h.b16 %v533
    %v2063 = vunpack.c.l.b16 %v534
    %v2064 = vunpack.c.h.b16 %v534
    %v2065 = vunpack.c.l.b16 %v535
    %v2066 = vunpack.c.h.b16 %v535
    %v2067 = vunpack.c.l.b16 %v536
    %v2068 = vunpack.c.h.b16 %v536
    %v2069 = vunpack.c.l.b16 %v537
    %v2070 = vunpack.c.h.b16 %v537
    %v2071 = vunpack.c.l.b16 %v538
    %v2072 = vunpack.c.h.b16 %v538
    %v2073 = vunpack.c.l.b16 %v539
    %v2074 = vunpack.c.h.b16 %v539
    %v2075 = vunpack.c.l.b16 %v540
    %v2076 = vunpack.c.h.b16 %v540
    %v2077 = vunpack.c.l.b16 %v541
    %v2078 = vunpack.c.h.b16 %v541
    %v2079 = vunpack.c.l.b16 %v542
    %v2080 = vunpack.c.h.b16 %v542
    %v2081 = vunpack.c.l.b16 %v543
    %v2082 = vunpack.c.h.b16 %v543
    %v2083 = vunpack.c.l.b16 %v544
    %v2084 = vunpack.c.h.b16 %v544
    %v2085 = vunpack.c.l.b16 %v545
    %v2086 = vunpack.c.h.b16 %v545
    %v2087 = vunpack.c.l.b16 %v546
    %v2088 = vunpack.c.h.b16 %v546
    %v2089 = vunpack.c.l.b16 %v547
    %v2090 = vunpack.c.h.b16 %v547
    %v2091 = vunpack.c.l.b16 %v548
    %v2092 = vunpack.c.h.b16 %v548
    %v2093 = vunpack.c.l.b16 %v549
    %v2094 = vunpack.c.h.b16 %v549
    %v2095 = vunpack.c.l.b16 %v550
    %v2096 = vunpack.c.h.b16 %v550
    %v2097 = vunpack.c.l.b16 %v551
    %v2098 = vunpack.c.h.b16 %v551
    %v2099 = vunpack.c.l.b16 %v552
    %v2100 = vunpack.c.h.b16 %v552
    %v2101 = vunpack.c.l.b16 %v553
    %v2102 = vunpack.c.h.b16 %v553
    %v2103 = vunpack.c.l.b16 %v554
    %v2104 = vunpack.c.h.b16 %v554
    %v2105 = vunpack.c.l.b16 %v555
    %v2106 = vunpack.c.h.b16 %v555
    %v2107 = vunpack.c.l.b16 %v556
    %v2108 = vunpack.c.h.b16 %v556
    %v2109 = vunpack.c.l.b16 %v557
    %v2110 = vunpack.c.h.b16 %v557
    %v2111 = vunpack.c.l.b16 %v558
    %v2112 = vunpack.c.h.b16 %v558
    %v2113 = vunpack.c.l.b16 %v559
    %v2114 = vunpack.c.h.b16 %v559
    %v2115 = vunpack.c.l.b16 %v560
    %v2116 = vunpack.c.h.b16 %v560
    %v2117 = vunpack.c.l.b16 %v561
    %v2118 = vunpack.c.h.b16 %v561
    %v2119 = vunpack.c.l.b16 %v562
    %v2120 = vunpack.c.h.b16 %v562
    %v2121 = vunpack.c.l.b16 %v563
    %v2122 = vunpack.c.h.b16 %v563
    %v2123 = vunpack.c.l.b16 %v564
    %v2124 = vunpack.c.h.b16 %v564
    %v2125 = vunpack.c.l.b16 %v565
    %v2126 = vunpack.c.h.b16 %v565
    %v2127 = vunpack.c.l.b16 %v566
    %v2128 = vunpack.c.h.b16 %v566
    %v2129 = vunpack.c.l.b16 %v567
    %v2130 = vunpack.c.h.b16 %v567
    %v2131 = vunpack.c.l.b16 %v568
    %v2132 = vunpack.c.h.b16 %v568
    %v2133 = vunpack.c.l.b16 %v569
    %v2134 = vunpack.c.h.b16 %v569
    %v2135 = vunpack.c.l.b16 %v570
    %v2136 = vunpack.c.h.b16 %v570
    %v2137 = vunpack.c.l.b16 %v571
    %v2138 = vunpack.c.h.b16 %v571
    %v2139 = vunpack.c.l.b16 %v572
    %v2140 = vunpack.c.h.b16 %v572
    %v2141 = vunpack.c.l.b16 %v573
    %v2142 = vunpack.c.h.b16 %v573
    %v2143 = vunpack.c.l.b16 %v574
    %v2144 = vunpack.c.h.b16 %v574
    %v2145 = vunpack.c.l.b16 %v575
    %v2146 = vunpack.c.h.b16 %v575
    %v2147 = vunpack.c.l.b16 %v576
    %v2148 = vunpack.c.h.b16 %v576
    %v2149 = vunpack.c.l.b16 %v577
    %v2150 = vunpack.c.h.b16 %v577
    %v2151 = vunpack.c.l.b16 %v578
    %v2152 = vunpack.c.h.b16 %v578
    %v2153 = vunpack.c.l.b16 %v579
    %v2154 = vunpack.c.h.b16 %v579
    %v2155 = vunpack.c.l.b16 %v580
    %v2156 = vunpack.c.h.b16 %v580
    %v2157 = vunpack.c.l.b16 %v581
    %v2158 = vunpack.c.h.b16 %v581
    %v2159 = vunpack.c.l.b16 %v582
    %v2160 = vunpack.c.h.b16 %v582
    %v2161 = vunpack.c.l.b16 %v583
    %v2162 = vunpack.c.h.b16 %v583
    %v2163 = vunpack.c.l.b16 %v584
    %v2164 = vunpack.c.h.b16 %v584
    %v2165 = vunpack.c.l.b16 %v585
    %v2166 = vunpack.c.h.b16 %v585
    %v2167 = vunpack.c.l.b16 %v586
    %v2168 = vunpack.c.h.b16 %v586
    %v2169 = vunpack.c.l.b16 %v587
    %v2170 = vunpack.c.h.b16 %v587
    %v2171 = vunpack.c.l.b16 %v588
    %v2172 = vunpack.c.h.b16 %v588
    %v2173 = vunpack.c.l.b16 %v589
    %v2174 = vunpack.c.h.b16 %v589
    %v2175 = vunpack.c.l.b16 %v590
    %v2176 = vunpack.c.h.b16 %v590
    %v2177 = vunpack.c.l.b16 %v591
    %v2178 = vunpack.c.h.b16 %v591
    %v2179 = vunpack.c.l.b16 %v592
    %v2180 = vunpack.c.h.b16 %v592
    %v2181 = vunpack.c.l.b16 %v593
    %v2182 = vunpack.c.h.b16 %v593
    %v2183 = vunpack.c.l.b16 %v594
    %v2184 = vunpack.c.h.b16 %v594
    %v2185 = vunpack.c.l.b16 %v595
    %v2186 = vunpack.c.h.b16 %v595
    %v2187 = vunpack.c.l.b16 %v596
    %v2188 = vunpack.c.h.b16 %v596
    %v2189 = vunpack.c.l.b16 %v597
    %v2190 = vunpack.c.h.b16 %v597
    %v2191 = vunpack.c.l.b16 %v598
    %v2192 = vunpack.c.h.b16 %v598
    %v2193 = vunpack.c.l.b16 %v599
    %v2194 = vunpack.c.h.b16 %v599
    %v2195 = vunpack.c.l.b16 %v600
    %v2196 = vunpack.c.h.b16 %v600
    %v2197 = vunpack.c.l.b16 %v601
    %v2198 = vunpack.c.h.b16 %v601
    %v2199 = vunpack.c.l.b16 %v602
    %v2200 = vunpack.c.h.b16 %v602
    %v2201 = vunpack.c.l.b16 %v603
    %v2202 = vunpack.c.h.b16 %v603
    %v2203 = vunpack.c.l.b16 %v604
    %v2204 = vunpack.c.h.b16 %v604
    %v2205 = vunpack.c.l.b16 %v605
    %v2206 = vunpack.c.h.b16 %v605
    %v2207 = vunpack.c.l.b16 %v606
    %v2208 = vunpack.c.h.b16 %v606
    %v2209 = vunpack.c.l.b16 %v607
    %v2210 = vunpack.c.h.b16 %v607
    %v2211 = vunpack.c.l.b16 %v608
    %v2212 = vunpack.c.h.b16 %v608
    %v2213 = vunpack.c.l.b16 %v609
    %v2214 = vunpack.c.h.b16 %v609
    %v2215 = vunpack.c.l.b16 %v610
    %v2216 = vunpack.c.h.b16 %v610
    %v2217 = vunpack.c.l.b16 %v611
    %v2218 = vunpack.c.h.b16 %v611
    %v2219 = vunpack.c.l.b16 %v612
    %v2220 = vunpack.c.h.b16 %v612
    %v2221 = vunpack.c.l.b16 %v613
    %v2222 = vunpack.c.h.b16 %v613
    %v2223 = vunpack.c.l.b16 %v614
    %v2224 = vunpack.c.h.b16 %v614
    %v2225 = vunpack.c.l.b16 %v615
    %v2226 = vunpack.c.h.b16 %v615
    %v2227 = vunpack.c.l.b16 %v616
    %v2228 = vunpack.c.h.b16 %v616
    %v2229 = vunpack.c.l.b16 %v617
    %v2230 = vunpack.c.h.b16 %v617
    %v2231 = vunpack.c.l.b16 %v618
    %v2232 = vunpack.c.h.b16 %v618
    %v2233 = vunpack.c.l.b16 %v619
    %v2234 = vunpack.c.h.b16 %v619
    %v2235 = vunpack.c.l.b16 %v620
    %v2236 = vunpack.c.h.b16 %v620
    %v2237 = vunpack.c.l.b16 %v621
    %v2238 = vunpack.c.h.b16 %v621
    %v2239 = vunpack.c.l.b16 %v622
    %v2240 = vunpack.c.h.b16 %v622
    %v2241 = vpack.c.b16 %v1225, %v1217
    %v2242 = vpack.c.b16 %v1226, %v1218
    %v2243 = vpack.c.b16 %v1227, %v1219
    %v2244 = vpack.c.b16 %v1228, %v1220
    %v2245 = vpack.c.b16 %v1229, %v1221
    %v2246 = vpack.c.b16 %v1230, %v1222
    %v2247 = vpack.c.b16 %v1231, %v1223
    %v2248 = vpack.c.b16 %v1232, %v1224
    %v2249 = vpack.c.b16 %v1241, %v1233
    %v2250 = vpack.c.b16 %v1242, %v1234
    %v2251 = vpack.c.b16 %v1243, %v1235
    %v2252 = vpack.c.b16 %v1244, %v1236
    %v2253 = vpack.c.b16 %v1245, %v1237
    %v2254 = vpack.c.b16 %v1246, %v1238
    %v2255 = vpack.c.b16 %v1247, %v1239
    %v2256 = vpack.c.b16 %v1248, %v1240
    %v2257 = vpack.c.b16 %v1257, %v1249
    %v2258 = vpack.c.b16 %v1258, %v1250
    %v2259 = vpack.c.b16 %v1259, %v1251
    %v2260 = vpack.c.b16 %v1260, %v1252
    %v2261 = vpack.c.b16 %v1261, %v1253
    %v2262 = vpack.c.b16 %v1262, %v1254
    %v2263 = vpack.c.b16 %v1263, %v1255
    %v2264 = vpack.c.b16 %v1264, %v1256
    %v2265 = vpack.c.b16 %v1273, %v1265
    %v2266 = vpack.c.b16 %v1274, %v1266
    %v2267 = vpack.c.b16 %v1275, %v1267
    %v2268 = vpack.c.b16 %v1276, %v1268
    %v2269 = vpack.c.b16 %v1277, %v1269
    %v2270 = vpack.c.b16 %v1278, %v1270
    %v2271 = vpack.c.b16 %v1279, %v1271
    %v2272 = vpack.c.b16 %v1280, %v1272
    %v2273 = vpack.c.b16 %v1289, %v1281
    %v2274 = vpack.c.b16 %v1290, %v1282
    %v2275 = vpack.c.b16 %v1291, %v1283
    %v2276 = vpack.c.b16 %v1292, %v1284
    %v2277 = vpack.c.b16 %v1293, %v1285
    %v2278 = vpack.c.b16 %v1294, %v1286
    %v2279 = vpack.c.b16 %v1295, %v1287
    %v2280 = vpack.c.b16 %v1296, %v1288
    %v2281 = vpack.c.b16 %v1305, %v1297
    %v2282 = vpack.c.b16 %v1306, %v1298
    %v2283 = vpack.c.b16 %v1307, %v1299
    %v2284 = vpack.c.b16 %v1308, %v1300
    %v2285 = vpack.c.b16 %v1309, %v1301
    %v2286 = vpack.c.b16 %v1310, %v1302
    %v2287 = vpack.c.b16 %v1311, %v1303
    %v2288 = vpack.c.b16 %v1312, %v1304
    %v2289 = vpack.c.b16 %v1321, %v1313
    %v2290 = vpack.c.b16 %v1322, %v1314
    %v2291 = vpack.c.b16 %v1323, %v1315
    %v2292 = vpack.c.b16 %v1324, %v1316
    %v2293 = vpack.c.b16 %v1325, %v1317
    %v2294 = vpack.c.b16 %v1326, %v1318
    %v2295 = vpack.c.b16 %v1327, %v1319
    %v2296 = vpack.c.b16 %v1328, %v1320
    %v2297 = vpack.c.b16 %v1337, %v1329
    %v2298 = vpack.c.b16 %v1338, %v1330
    %v2299 = vpack.c.b16 %v1339, %v1331
    %v2300 = vpack.c.b16 %v1340, %v1332
    %v2301 = vpack.c.b16 %v1341, %v1333
    %v2302 = vpack.c.b16 %v1342, %v1334
    %v2303 = vpack.c.b16 %v1343, %v1335
    %v2304 = vpack.c.b16 %v1344, %v1336
    %v2305 = vpack.c.b16 %v1353, %v1345
    %v2306 = vpack.c.b16 %v1354, %v1346
    %v2307 = vpack.c.b16 %v1355, %v1347
    %v2308 = vpack.c.b16 %v1356, %v1348
    %v2309 = vpack.c.b16 %v1357, %v1349
    %v2310 = vpack.c.b16 %v1358, %v1350
    %v2311 = vpack.c.b16 %v1359, %v1351
    %v2312 = vpack.c.b16 %v1360, %v1352
    %v2313 = vpack.c.b16 %v1369, %v1361
    %v2314 = vpack.c.b16 %v1370, %v1362
    %v2315 = vpack.c.b16 %v1371, %v1363
    %v2316 = vpack.c.b16 %v1372, %v1364
    %v2317 = vpack.c.b16 %v1373, %v1365
    %v2318 = vpack.c.b16 %v1374, %v1366
    %v2319 = vpack.c.b16 %v1375, %v1367
    %v2320 = vpack.c.b16 %v1376, %v1368
    %v2321 = vpack.c.b16 %v1385, %v1377
    %v2322 = vpack.c.b16 %v1386, %v1378
    %v2323 = vpack.c.b16 %v1387, %v1379
    %v2324 = vpack.c.b16 %v1388, %v1380
    %v2325 = vpack.c.b16 %v1389, %v1381
    %v2326 = vpack.c.b16 %v1390, %v1382
    %v2327 = vpack.c.b16 %v1391, %v1383
    %v2328 = vpack.c.b16 %v1392, %v1384
    %v2329 = vpack.c.b16 %v1401, %v1393
    %v2330 = vpack.c.b16 %v1402, %v1394
    %v2331 = vpack.c.b16 %v1403, %v1395
    %v2332 = vpack.c.b16 %v1404, %v1396
    %v2333 = vpack.c.b16 %v1405, %v1397
    %v2334 = vpack.c.b16 %v1406, %v1398
    %v2335 = vpack.c.b16 %v1407, %v1399
    %v2336 = vpack.c.b16 %v1408, %v1400
    %v2337 = vpack.c.b16 %v1417, %v1409
    %v2338 = vpack.c.b16 %v1418, %v1410
    %v2339 = vpack.c.b16 %v1419, %v1411
    %v2340 = vpack.c.b16 %v1420, %v1412
    %v2341 = vpack.c.b16 %v1421, %v1413
    %v2342 = vpack.c.b16 %v1422, %v1414
    %v2343 = vpack.c.b16 %v1423, %v1415
    %v2344 = vpack.c.b16 %v1424, %v1416
    %v2345 = vpack.c.b16 %v1433, %v1425
    %v2346 = vpack.c.b16 %v1434, %v1426
    %v2347 = vpack.c.b16 %v1435, %v1427
    %v2348 = vpack.c.b16 %v1436, %v1428
    %v2349 = vpack.c.b16 %v1437, %v1429
    %v2350 = vpack.c.b16 %v1438, %v1430
    %v2351 = vpack.c.b16 %v1439, %v1431
    %v2352 = vpack.c.b16 %v1440, %v1432
    %v2353 = vpack.c.b16 %v1449, %v1441
    %v2354 = vpack.c.b16 %v1450, %v1442
    %v2355 = vpack.c.b16 %v1451, %v1443
    %v2356 = vpack.c.b16 %v1452, %v1444
    %v2357 = vpack.c.b16 %v1453, %v1445
    %v2358 = vpack.c.b16 %v1454, %v1446
    %v2359 = vpack.c.b16 %v1455, %v1447
    %v2360 = vpack.c.b16 %v1456, %v1448
    %v2361 = vpack.c.b16 %v1465, %v1457
    %v2362 = vpack.c.b16 %v1466, %v1458
    %v2363 = vpack.c.b16 %v1467, %v1459
    %v2364 = vpack.c.b16 %v1468, %v1460
    %v2365 = vpack.c.b16 %v1469, %v1461
    %v2366 = vpack.c.b16 %v1470, %v1462
    %v2367 = vpack.c.b16 %v1471, %v1463
    %v2368 = vpack.c.b16 %v1472, %v1464
    %v2369 = vpack.c.b16 %v1481, %v1473
    %v2370 = vpack.c.b16 %v1482, %v1474
    %v2371 = vpack.c.b16 %v1483, %v1475
    %v2372 = vpack.c.b16 %v1484, %v1476
    %v2373 = vpack.c.b16 %v1485, %v1477
    %v2374 = vpack.c.b16 %v1486, %v1478
    %v2375 = vpack.c.b16 %v1487, %v1479
    %v2376 = vpack.c.b16 %v1488, %v1480
    %v2377 = vpack.c.b16 %v1497, %v1489
    %v2378 = vpack.c.b16 %v1498, %v1490
    %v2379 = vpack.c.b16 %v1499, %v1491
    %v2380 = vpack.c.b16 %v1500, %v1492
    %v2381 = vpack.c.b16 %v1501, %v1493
    %v2382 = vpack.c.b16 %v1502, %v1494
    %v2383 = vpack.c.b16 %v1503, %v1495
    %v2384 = vpack.c.b16 %v1504, %v1496
    %v2385 = vpack.c.b16 %v1513, %v1505
    %v2386 = vpack.c.b16 %v1514, %v1506
    %v2387 = vpack.c.b16 %v1515, %v1507
    %v2388 = vpack.c.b16 %v1516, %v1508
    %v2389 = vpack.c.b16 %v1517, %v1509
    %v2390 = vpack.c.b16 %v1518, %v1510
    %v2391 = vpack.c.b16 %v1519, %v1511
    %v2392 = vpack.c.b16 %v1520, %v1512
    %v2393 = vpack.c.b16 %v1529, %v1521
    %v2394 = vpack.c.b16 %v1530, %v1522
    %v2395 = vpack.c.b16 %v1531, %v1523
    %v2396 = vpack.c.b16 %v1532, %v1524
    %v2397 = vpack.c.b16 %v1533, %v1525
    %v2398 = vpack.c.b16 %v1534, %v1526
    %v2399 = vpack.c.b16 %v1535, %v1527
    %v2400 = vpack.c.b16 %v1536, %v1528
    %v2401 = vpack.c.b16 %v1545, %v1537
    %v2402 = vpack.c.b16 %v1546, %v1538
    %v2403 = vpack.c.b16 %v1547, %v1539
    %v2404 = vpack.c.b16 %v1548, %v1540
    %v2405 = vpack.c.b16 %v1549, %v1541
    %v2406 = vpack.c.b16 %v1550, %v1542
    %v2407 = vpack.c.b16 %v1551, %v1543
    %v2408 = vpack.c.b16 %v1552, %v1544
    %v2409 = vpack.c.b16 %v1561, %v1553
    %v2410 = vpack.c.b16 %v1562, %v1554
    %v2411 = vpack.c.b16 %v1563, %v1555
    %v2412 = vpack.c.b16 %v1564, %v1556
    %v2413 = vpack.c.b16 %v1565, %v1557
    %v2414 = vpack.c.b16 %v1566, %v1558
    %v2415 = vpack.c.b16 %v1567, %v1559
    %v2416 = vpack.c.b16 %v1568, %v1560
    %v2417 = vpack.c.b16 %v1577, %v1569
    %v2418 = vpack.c.b16 %v1578, %v1570
    %v2419 = vpack.c.b16 %v1579, %v1571
    %v2420 = vpack.c.b16 %v1580, %v1572
    %v2421 = vpack.c.b16 %v1581, %v1573
    %v2422 = vpack.c.b16 %v1582, %v1574
    %v2423 = vpack.c.b16 %v1583, %v1575
    %v2424 = vpack.c.b16 %v1584, %v1576
    %v2425 = vpack.c.b16 %v1593, %v1585
    %v2426 = vpack.c.b16 %v1594, %v1586
    %v2427 = vpack.c.b16 %v1595, %v1587
    %v2428 = vpack.c.b16 %v1596, %v1588
    %v2429 = vpack.c.b16 %v1597, %v1589
    %v2430 = vpack.c.b16 %v1598, %v1590
    %v2431 = vpack.c.b16 %v1599, %v1591
    %v2432 = vpack.c.b16 %v1600, %v1592
    %v2433 = vpack.c.b16 %v1609, %v1601
    %v2434 = vpack.c.b16 %v1610, %v1602
    %v2435 = vpack.c.b16 %v1611, %v1603
    %v2436 = vpack.c.b16 %v1612, %v1604
    %v2437 = vpack.c.b16 %v1613, %v1605
    %v2438 = vpack.c.b16 %v1614, %v1606
    %v2439 = vpack.c.b16 %v1615, %v1607
    %v2440 = vpack.c.b16 %v1616, %v1608
    %v2441 = vpack.c.b16 %v1625, %v1617
    %v2442 = vpack.c.b16 %v1626, %v1618
    %v2443 = vpack.c.b16 %v1627, %v1619
    %v2444 = vpack.c.b16 %v1628, %v1620
    %v2445 = vpack.c.b16 %v1629, %v1621
    %v2446 = vpack.c.b16 %v1630, %v1622
    %v2447 = vpack.c.b16 %v1631, %v1623
    %v2448 = vpack.c.b16 %v1632, %v1624
    %v2449 = vpack.c.b16 %v1641, %v1633
    %v2450 = vpack.c.b16 %v1642, %v1634
    %v2451 = vpack.c.b16 %v1643, %v1635
    %v2452 = vpack.c.b16 %v1644, %v1636
    %v2453 = vpack.c.b16 %v1645, %v1637
    %v2454 = vpack.c.b16 %v1646, %v1638
    %v2455 = vpack.c.b16 %v1647, %v1639
    %v2456 = vpack.c.b16 %v1648, %v1640
    %v2457 = vpack.c.b16 %v1657, %v1649
    %v2458 = vpack.c.b16 %v1658, %v1650
    %v2459 = vpack.c.b16 %v1659, %v1651
    %v2460 = vpack.c.b16 %v1660, %v1652
    %v2461 = vpack.c.b16 %v1661, %v1653
    %v2462 = vpack.c.b16 %v1662, %v1654
    %v2463 = vpack.c.b16 %v1663, %v1655
    %v2464 = vpack.c.b16 %v1664, %v1656
    %v2465 = vpack.c.b16 %v1673, %v1665
    %v2466 = vpack.c.b16 %v1674, %v1666
    %v2467 = vpack.c.b16 %v1675, %v1667
    %v2468 = vpack.c.b16 %v1676, %v1668
    %v2469 = vpack.c.b16 %v1677, %v1669
    %v2470 = vpack.c.b16 %v1678, %v1670
    %v2471 = vpack.c.b16 %v1679, %v1671
    %v2472 = vpack.c.b16 %v1680, %v1672
    %v2473 = vpack.c.b16 %v1689, %v1681
    %v2474 = vpack.c.b16 %v1690, %v1682
    %v2475 = vpack.c.b16 %v1691, %v1683
    %v2476 = vpack.c.b16 %v1692, %v1684
    %v2477 = vpack.c.b16 %v1693, %v1685
    %v2478 = vpack.c.b16 %v1694, %v1686
    %v2479 = vpack.c.b16 %v1695, %v1687
    %v2480 = vpack.c.b16 %v1696, %v1688
    %v2481 = vpack.c.b16 %v1705, %v1697
    %v2482 = vpack.c.b16 %v1706, %v1698
    %v2483 = vpack.c.b16 %v1707, %v1699
    %v2484 = vpack.c.b16 %v1708, %v1700
    %v2485 = vpack.c.b16 %v1709, %v1701
    %v2486 = vpack.c.b16 %v1710, %v1702
    %v2487 = vpack.c.b16 %v1711, %v1703
    %v2488 = vpack.c.b16 %v1712, %v1704
    %v2489 = vpack.c.b16 %v1721, %v1713
    %v2490 = vpack.c.b16 %v1722, %v1714
    %v2491 = vpack.c.b16 %v1723, %v1715
    %v2492 = vpack.c.b16 %v1724, %v1716
    %v2493 = vpack.c.b16 %v1725, %v1717
    %v2494 = vpack.c.b16 %v1726, %v1718
    %v2495 = vpack.c.b16 %v1727, %v1719
    %v2496 = vpack.c.b16 %v1728, %v1720
    %v2497 = vpack.c.b16 %v1737, %v1729
    %v2498 = vpack.c.b16 %v1738, %v1730
    %v2499 = vpack.c.b16 %v1739, %v1731
    %v2500 = vpack.c.b16 %v1740, %v1732
    %v2501 = vpack.c.b16 %v1741, %v1733
    %v2502 = vpack.c.b16 %v1742, %v1734
    %v2503 = vpack.c.b16 %v1743, %v1735
    %v2504 = vpack.c.b16 %v1744, %v1736
    %v2505 = vpack.c.b16 %v1753, %v1745
    %v2506 = vpack.c.b16 %v1754, %v1746
    %v2507 = vpack.c.b16 %v1755, %v1747
    %v2508 = vpack.c.b16 %v1756, %v1748
    %v2509 = vpack.c.b16 %v1757, %v1749
    %v2510 = vpack.c.b16 %v1758, %v1750
    %v2511 = vpack.c.b16 %v1759, %v1751
    %v2512 = vpack.c.b16 %v1760, %v1752
    %v2513 = vpack.c.b16 %v1769, %v1761
    %v2514 = vpack.c.b16 %v1770, %v1762
    %v2515 = vpack.c.b16 %v1771, %v1763
    %v2516 = vpack.c.b16 %v1772, %v1764
    %v2517 = vpack.c.b16 %v1773, %v1765
    %v2518 = vpack.c.b16 %v1774, %v1766
    %v2519 = vpack.c.b16 %v1775, %v1767
    %v2520 = vpack.c.b16 %v1776, %v1768
    %v2521 = vpack.c.b16 %v1785, %v1777
    %v2522 = vpack.c.b16 %v1786, %v1778
    %v2523 = vpack.c.b16 %v1787, %v1779
    %v2524 = vpack.c.b16 %v1788, %v1780
    %v2525 = vpack.c.b16 %v1789, %v1781
    %v2526 = vpack.c.b16 %v1790, %v1782
    %v2527 = vpack.c.b16 %v1791, %v1783
    %v2528 = vpack.c.b16 %v1792, %v1784
    %v2529 = vpack.c.b16 %v1801, %v1793
    %v2530 = vpack.c.b16 %v1802, %v1794
    %v2531 = vpack.c.b16 %v1803, %v1795
    %v2532 = vpack.c.b16 %v1804, %v1796
    %v2533 = vpack.c.b16 %v1805, %v1797
    %v2534 = vpack.c.b16 %v1806, %v1798
    %v2535 = vpack.c.b16 %v1807, %v1799
    %v2536 = vpack.c.b16 %v1808, %v1800
    %v2537 = vpack.c.b16 %v1817, %v1809
    %v2538 = vpack.c.b16 %v1818, %v1810
    %v2539 = vpack.c.b16 %v1819, %v1811
    %v2540 = vpack.c.b16 %v1820, %v1812
    %v2541 = vpack.c.b16 %v1821, %v1813
    %v2542 = vpack.c.b16 %v1822, %v1814
    %v2543 = vpack.c.b16 %v1823, %v1815
    %v2544 = vpack.c.b16 %v1824, %v1816
    %v2545 = vpack.c.b16 %v1833, %v1825
    %v2546 = vpack.c.b16 %v1834, %v1826
    %v2547 = vpack.c.b16 %v1835, %v1827
    %v2548 = vpack.c.b16 %v1836, %v1828
    %v2549 = vpack.c.b16 %v1837, %v1829
    %v2550 = vpack.c.b16 %v1838, %v1830
    %v2551 = vpack.c.b16 %v1839, %v1831
    %v2552 = vpack.c.b16 %v1840, %v1832
    %v2553 = vpack.c.b16 %v1849, %v1841
    %v2554 = vpack.c.b16 %v1850, %v1842
    %v2555 = vpack.c.b16 %v1851, %v1843
    %v2556 = vpack.c.b16 %v1852, %v1844
    %v2557 = vpack.c.b16 %v1853, %v1845
    %v2558 = vpack.c.b16 %v1854, %v1846
    %v2559 = vpack.c.b16 %v1855, %v1847
    %v2560 = vpack.c.b16 %v1856, %v1848
    %v2561 = vpack.c.b16 %v1865, %v1857
    %v2562 = vpack.c.b16 %v1866, %v1858
    %v2563 = vpack.c.b16 %v1867, %v1859
    %v2564 = vpack.c.b16 %v1868, %v1860
    %v2565 = vpack.c.b16 %v1869, %v1861
    %v2566 = vpack.c.b16 %v1870, %v1862
    %v2567 = vpack.c.b16 %v1871, %v1863
    %v2568 = vpack.c.b16 %v1872, %v1864
    %v2569 = vpack.c.b16 %v1881, %v1873
    %v2570 = vpack.c.b16 %v1882, %v1874
    %v2571 = vpack.c.b16 %v1883, %v1875
    %v2572 = vpack.c.b16 %v1884, %v1876
    %v2573 = vpack.c.b16 %v1885, %v1877
    %v2574 = vpack.c.b16 %v1886, %v1878
    %v2575 = vpack.c.b16 %v1887, %v1879
    %v2576 = vpack.c.b16 %v1888, %v1880
    %v2577 = vpack.c.b16 %v1897, %v1889
    %v2578 = vpack.c.b16 %v1898, %v1890
    %v2579 = vpack.c.b16 %v1899, %v1891
    %v2580 = vpack.c.b16 %v1900, %v1892
    %v2581 = vpack.c.b16 %v1901, %v1893
    %v2582 = vpack.c.b16 %v1902, %v1894
    %v2583 = vpack.c.b16 %v1903, %v1895
    %v2584 = vpack.c.b16 %v1904, %v1896
    %v2585 = vpack.c.b16 %v1913, %v1905
    %v2586 = vpack.c.b16 %v1914, %v1906
    %v2587 = vpack.c.b16 %v1915, %v1907
    %v2588 = vpack.c.b16 %v1916, %v1908
    %v2589 = vpack.c.b16 %v1917, %v1909
    %v2590 = vpack.c.b16 %v1918, %v1910
    %v2591 = vpack.c.b16 %v1919, %v1911
    %v2592 = vpack.c.b16 %v1920, %v1912
    %v2593 = vpack.c.b16 %v1929, %v1921
    %v2594 = vpack.c.b16 %v1930, %v1922
    %v2595 = vpack.c.b16 %v1931, %v1923
    %v2596 = vpack.c.b16 %v1932, %v1924
    %v2597 = vpack.c.b16 %v1933, %v1925
    %v2598 = vpack.c.b16 %v1934, %v1926
    %v2599 = vpack.c.b16 %v1935, %v1927
    %v2600 = vpack.c.b16 %v1936, %v1928
    %v2601 = vpack.c.b16 %v1945, %v1937
    %v2602 = vpack.c.b16 %v1946, %v1938
    %v2603 = vpack.c.b16 %v1947, %v1939
    %v2604 = vpack.c.b16 %v1948, %v1940
    %v2605 = vpack.c.b16 %v1949, %v1941
    %v2606 = vpack.c.b16 %v1950, %v1942
    %v2607 = vpack.c.b16 %v1951, %v1943
    %v2608 = vpack.c.b16 %v1952, %v1944
    %v2609 = vpack.c.b16 %v1961, %v1953
    %v2610 = vpack.c.b16 %v1962, %v1954
    %v2611 = vpack.c.b16 %v1963, %v1955
    %v2612 = vpack.c.b16 %v1964, %v1956
    %v2613 = vpack.c.b16 %v1965, %v1957
    %v2614 = vpack.c.b16 %v1966, %v1958
    %v2615 = vpack.c.b16 %v1967, %v1959
    %v2616 = vpack.c.b16 %v1968, %v1960
    %v2617 = vpack.c.b16 %v1977, %v1969
    %v2618 = vpack.c.b16 %v1978, %v1970
    %v2619 = vpack.c.b16 %v1979, %v1971
    %v2620 = vpack.c.b16 %v1980, %v1972
    %v2621 = vpack.c.b16 %v1981, %v1973
    %v2622 = vpack.c.b16 %v1982, %v1974
    %v2623 = vpack.c.b16 %v1983, %v1975
    %v2624 = vpack.c.b16 %v1984, %v1976
    %v2625 = vpack.c.b16 %v1993, %v1985
    %v2626 = vpack.c.b16 %v1994, %v1986
    %v2627 = vpack.c.b16 %v1995, %v1987
    %v2628 = vpack.c.b16 %v1996, %v1988
    %v2629 = vpack.c.b16 %v1997, %v1989
    %v2630 = vpack.c.b16 %v1998, %v1990
    %v2631 = vpack.c.b16 %v1999, %v1991
    %v2632 = vpack.c.b16 %v2000, %v1992
    %v2633 = vpack.c.b16 %v2009, %v2001
    %v2634 = vpack.c.b16 %v2010, %v2002
    %v2635 = vpack.c.b16 %v2011, %v2003
    %v2636 = vpack.c.b16 %v2012, %v2004
    %v2637 = vpack.c.b16 %v2013, %v2005
    %v2638 = vpack.c.b16 %v2014, %v2006
    %v2639 = vpack.c.b16 %v2015, %v2007
    %v2640 = vpack.c.b16 %v2016, %v2008
    %v2641 = vpack.c.b16 %v2025, %v2017
    %v2642 = vpack.c.b16 %v2026, %v2018
    %v2643 = vpack.c.b16 %v2027, %v2019
    %v2644 = vpack.c.b16 %v2028, %v2020
    %v2645 = vpack.c.b16 %v2029, %v2021
    %v2646 = vpack.c.b16 %v2030, %v2022
    %v2647 = vpack.c.b16 %v2031, %v2023
    %v2648 = vpack.c.b16 %v2032, %v2024
    %v2649 = vpack.c.b16 %v2041, %v2033
    %v2650 = vpack.c.b16 %v2042, %v2034
    %v2651 = vpack.c.b16 %v2043, %v2035
    %v2652 = vpack.c.b16 %v2044, %v2036
    %v2653 = vpack.c.b16 %v2045, %v2037
    %v2654 = vpack.c.b16 %v2046, %v2038
    %v2655 = vpack.c.b16 %v2047, %v2039
    %v2656 = vpack.c.b16 %v2048, %v2040
    %v2657 = vpack.c.b16 %v2057, %v2049
    %v2658 = vpack.c.b16 %v2058, %v2050
    %v2659 = vpack.c.b16 %v2059, %v2051
    %v2660 = vpack.c.b16 %v2060, %v2052
    %v2661 = vpack.c.b16 %v2061, %v2053
    %v2662 = vpack.c.b16 %v2062, %v2054
    %v2663 = vpack.c.b16 %v2063, %v2055
    %v2664 = vpack.c.b16 %v2064, %v2056
    %v2665 = vpack.c.b16 %v2073, %v2065
    %v2666 = vpack.c.b16 %v2074, %v2066
    %v2667 = vpack.c.b16 %v2075, %v2067
    %v2668 = vpack.c.b16 %v2076, %v2068
    %v2669 = vpack.c.b16 %v2077, %v2069
    %v2670 = vpack.c.b16 %v2078, %v2070
    %v2671 = vpack.c.b16 %v2079, %v2071
    %v2672 = vpack.c.b16 %v2080, %v2072
    %v2673 = vpack.c.b16 %v2089, %v2081
    %v2674 = vpack.c.b16 %v2090, %v2082
    %v2675 = vpack.c.b16 %v2091, %v2083
    %v2676 = vpack.c.b16 %v2092, %v2084
    %v2677 = vpack.c.b16 %v2093, %v2085
    %v2678 = vpack.c.b16 %v2094, %v2086
    %v2679 = vpack.c.b16 %v2095, %v2087
    %v2680 = vpack.c.b16 %v2096, %v2088
    %v2681 = vpack.c.b16 %v2105, %v2097
    %v2682 = vpack.c.b16 %v2106, %v2098
    %v2683 = vpack.c.b16 %v2107, %v2099
    %v2684 = vpack.c.b16 %v2108, %v2100
    %v2685 = vpack.c.b16 %v2109, %v2101
    %v2686 = vpack.c.b16 %v2110, %v2102
    %v2687 = vpack.c.b16 %v2111, %v2103
    %v2688 = vpack.c.b16 %v2112, %v2104
    %v2689 = vpack.c.b16 %v2121, %v2113
    %v2690 = vpack.c.b16 %v2122, %v2114
    %v2691 = vpack.c.b16 %v2123, %v2115
    %v2692 = vpack.c.b16 %v2124, %v2116
    %v2693 = vpack.c.b16 %v2125, %v2117
    %v2694 = vpack.c.b16 %v2126, %v2118
    %v2695 = vpack.c.b16 %v2127, %v2119
    %v2696 = vpack.c.b16 %v2128, %v2120
    %v2697 = vpack.c.b16 %v2137, %v2129
    %v2698 = vpack.c.b16 %v2138, %v2130
    %v2699 = vpack.c.b16 %v2139, %v2131
    %v2700 = vpack.c.b16 %v2140, %v2132
    %v2701 = vpack.c.b16 %v2141, %v2133
    %v2702 = vpack.c.b16 %v2142, %v2134
    %v2703 = vpack.c.b16 %v2143, %v2135
    %v2704 = vpack.c.b16 %v2144, %v2136
    %v2705 = vpack.c.b16 %v2153, %v2145
    %v2706 = vpack.c.b16 %v2154, %v2146
    %v2707 = vpack.c.b16 %v2155, %v2147
    %v2708 = vpack.c.b16 %v2156, %v2148
    %v2709 = vpack.c.b16 %v2157, %v2149
    %v2710 = vpack.c.b16 %v2158, %v2150
    %v2711 = vpack.c.b16 %v2159, %v2151
    %v2712 = vpack.c.b16 %v2160, %v2152
    %v2713 = vpack.c.b16 %v2169, %v2161
    %v2714 = vpack.c.b16 %v2170, %v2162
    %v2715 = vpack.c.b16 %v2171, %v2163
    %v2716 = vpack.c.b16 %v2172, %v2164
    %v2717 = vpack.c.b16 %v2173, %v2165
    %v2718 = vpack.c.b16 %v2174, %v2166
    %v2719 = vpack.c.b16 %v2175, %v2167
    %v2720 = vpack.c.b16 %v2176, %v2168
    %v2721 = vpack.c.b16 %v2185, %v2177
    %v2722 = vpack.c.b16 %v2186, %v2178
    %v2723 = vpack.c.b16 %v2187, %v2179
    %v2724 = vpack.c.b16 %v2188, %v2180
    %v2725 = vpack.c.b16 %v2189, %v2181
    %v2726 = vpack.c.b16 %v2190, %v2182
    %v2727 = vpack.c.b16 %v2191, %v2183
    %v2728 = vpack.c.b16 %v2192, %v2184
    %v2729 = vpack.c.b16 %v2201, %v2193
    %v2730 = vpack.c.b16 %v2202, %v2194
    %v2731 = vpack.c.b16 %v2203, %v2195
    %v2732 = vpack.c.b16 %v2204, %v2196
    %v2733 = vpack.c.b16 %v2205, %v2197
    %v2734 = vpack.c.b16 %v2206, %v2198
    %v2735 = vpack.c.b16 %v2207, %v2199
    %v2736 = vpack.c.b16 %v2208, %v2200
    %v2737 = vpack.c.b16 %v2217, %v2209
    %v2738 = vpack.c.b16 %v2218, %v2210
    %v2739 = vpack.c.b16 %v2219, %v2211
    %v2740 = vpack.c.b16 %v2220, %v2212
    %v2741 = vpack.c.b16 %v2221, %v2213
    %v2742 = vpack.c.b16 %v2222, %v2214
    %v2743 = vpack.c.b16 %v2223, %v2215
    %v2744 = vpack.c.b16 %v2224, %v2216
    %v2745 = vpack.c.b16 %v2233, %v2225
    %v2746 = vpack.c.b16 %v2234, %v2226
    %v2747 = vpack.c.b16 %v2235, %v2227
    %v2748 = vpack.c.b16 %v2236, %v2228
    %v2749 = vpack.c.b16 %v2237, %v2229
    %v2750 = vpack.c.b16 %v2238, %v2230
    %v2751 = vpack.c.b16 %v2239, %v2231
    %v2752 = vpack.c.b16 %v2240, %v2232
    %3265 = vmatprep.subr.bf16.mxu0 %v2242
    %3266 = vmatpush1.bf16.msra.mxu0 %v2241
    %3267 = vmatprep.subr.bf16.mxu0 %v2250
    %3268 = vmatpush1.bf16.msra.mxu0 %v2249
    %3269 = vmatprep.subr.bf16.mxu0 %v2258
    %3270 = vmatpush1.bf16.msra.mxu0 %v2257
    %3271 = vmatprep.subr.bf16.mxu0 %v2266
    %3272 = vmatpush1.bf16.msra.mxu0 %v2265
    %3273 = vmatprep.subr.bf16.mxu0 %v2274
    %3274 = vmatpush1.bf16.msra.mxu0 %v2273
    %3275 = vmatprep.subr.bf16.mxu0 %v2282
    %3276 = vmatpush1.bf16.msra.mxu0 %v2281
    %3277 = vmatprep.subr.bf16.mxu0 %v2290
    %3278 = vmatpush1.bf16.msra.mxu0 %v2289
    %3279 = vmatprep.subr.bf16.mxu0 %v2298
    %3280 = vmatpush1.bf16.msra.mxu0 %v2297
    %3281 = vmatprep.subr.bf16.mxu0 %v2306
    %3282 = vmatpush1.bf16.msra.mxu0 %v2305
    %3283 = vmatprep.subr.bf16.mxu0 %v2314
    %3284 = vmatpush1.bf16.msra.mxu0 %v2313
    %3285 = vmatprep.subr.bf16.mxu0 %v2322
    %3286 = vmatpush1.bf16.msra.mxu0 %v2321
    %3287 = vmatprep.subr.bf16.mxu0 %v2330
    %3288 = vmatpush1.bf16.msra.mxu0 %v2329
    %3289 = vmatprep.subr.bf16.mxu0 %v2338
    %3290 = vmatpush1.bf16.msra.mxu0 %v2337
    %3291 = vmatprep.subr.bf16.mxu0 %v2346
    %3292 = vmatpush1.bf16.msra.mxu0 %v2345
    %3293 = vmatprep.subr.bf16.mxu0 %v2354
    %3294 = vmatpush1.bf16.msra.mxu0 %v2353
    %3295 = vmatprep.subr.bf16.mxu0 %v2362
    %3296 = vmatpush1.bf16.msra.mxu0 %v2361
    %3297 = vmatprep.mubr.bf16.mxu0 %v690
    %3298 = vmatmul.mubr.bf16.gmra.mrb[0].mxu0 %v689
    %v3299 = vpop.f32.mrb[0].mxu0
    %v3300 = vadd.f32 %v628, %v3299
    %v3301 = vpop.f32.mrb[0].mxu0
    %v3302 = vadd.f32 %v632, %v3301
    %v3303 = vpop.f32.mrb[0].mxu0
    %v3304 = vadd.f32 %v628, %v3303
    %v3305 = vpop.f32.mrb[0].mxu0
    %v3306 = vadd.f32 %v632, %v3305
    %3307 = vdwg.mxu0
    %3308 = vmatprep.subr.bf16.mxu0 %v2370
    %3309 = vmatpush1.bf16.msra.mxu0 %v2369
    %3310 = vmatprep.subr.bf16.mxu0 %v2378
    %3311 = vmatpush1.bf16.msra.mxu0 %v2377
    %3312 = vmatprep.subr.bf16.mxu0 %v2386
    %3313 = vmatpush1.bf16.msra.mxu0 %v2385
    %3314 = vmatprep.subr.bf16.mxu0 %v2394
    %3315 = vmatpush1.bf16.msra.mxu0 %v2393
    %3316 = vmatprep.subr.bf16.mxu0 %v2402
    %3317 = vmatpush1.bf16.msra.mxu0 %v2401
    %3318 = vmatprep.subr.bf16.mxu0 %v2410
    %3319 = vmatpush1.bf16.msra.mxu0 %v2409
    %3320 = vmatprep.subr.bf16.mxu0 %v2418
    %3321 = vmatpush1.bf16.msra.mxu0 %v2417
    %3322 = vmatprep.subr.bf16.mxu0 %v2426
    %3323 = vmatpush1.bf16.msra.mxu0 %v2425
    %3324 = vmatprep.subr.bf16.mxu0 %v2434
    %3325 = vmatpush1.bf16.msra.mxu0 %v2433
    %3326 = vmatprep.subr.bf16.mxu0 %v2442
    %3327 = vmatpush1.bf16.msra.mxu0 %v2441
    %3328 = vmatprep.subr.bf16.mxu0 %v2450
    %3329 = vmatpush1.bf16.msra.mxu0 %v2449
    %3330 = vmatprep.subr.bf16.mxu0 %v2458
    %3331 = vmatpush1.bf16.msra.mxu0 %v2457
    %3332 = vmatprep.subr.bf16.mxu0 %v2466
    %3333 = vmatpush1.bf16.msra.mxu0 %v2465
    %3334 = vmatprep.subr.bf16.mxu0 %v2474
    %3335 = vmatpush1.bf16.msra.mxu0 %v2473
    %3336 = vmatprep.subr.bf16.mxu0 %v2482
    %3337 = vmatpush1.bf16.msra.mxu0 %v2481
    %3338 = vmatprep.subr.bf16.mxu0 %v2490
    %3339 = vmatpush1.bf16.msra.mxu0 %v2489
    %3340 = vmatprep.mubr.bf16.mxu0 %v692
    %3341 = vmatmul.mubr.bf16.gmra.mrb[0].mxu0 %v691
    %v3342 = vpop.f32.mrb[0].mxu0
    %v3343 = vadd.f32 %v3300, %v3342
    %v3344 = vpop.f32.mrb[0].mxu0
    %v3345 = vadd.f32 %v3302, %v3344
    %v3346 = vpop.f32.mrb[0].mxu0
    %v3347 = vadd.f32 %v3304, %v3346
    %v3348 = vpop.f32.mrb[0].mxu0
    %v3349 = vadd.f32 %v3306, %v3348
    %3350 = vdwg.mxu0
    %3351 = vmatprep.subr.bf16.mxu0 %v2498
    %3352 = vmatpush1.bf16.msra.mxu0 %v2497
    %3353 = vmatprep.subr.bf16.mxu0 %v2506
    %3354 = vmatpush1.bf16.msra.mxu0 %v2505
    %3355 = vmatprep.subr.bf16.mxu0 %v2514
    %3356 = vmatpush1.bf16.msra.mxu0 %v2513
    %3357 = vmatprep.subr.bf16.mxu0 %v2522
    %3358 = vmatpush1.bf16.msra.mxu0 %v2521
    %3359 = vmatprep.subr.bf16.mxu0 %v2530
    %3360 = vmatpush1.bf16.msra.mxu0 %v2529
    %3361 = vmatprep.subr.bf16.mxu0 %v2538
    %3362 = vmatpush1.bf16.msra.mxu0 %v2537
    %3363 = vmatprep.subr.bf16.mxu0 %v2546
    %3364 = vmatpush1.bf16.msra.mxu0 %v2545
    %3365 = vmatprep.subr.bf16.mxu0 %v2554
    %3366 = vmatpush1.bf16.msra.mxu0 %v2553
    %3367 = vmatprep.subr.bf16.mxu0 %v2562
    %3368 = vmatpush1.bf16.msra.mxu0 %v2561
    %3369 = vmatprep.subr.bf16.mxu0 %v2570
    %3370 = vmatpush1.bf16.msra.mxu0 %v2569
    %3371 = vmatprep.subr.bf16.mxu0 %v2578
    %3372 = vmatpush1.bf16.msra.mxu0 %v2577
    %3373 = vmatprep.subr.bf16.mxu0 %v2586
    %3374 = vmatpush1.bf16.msra.mxu0 %v2585
    %3375 = vmatprep.subr.bf16.mxu0 %v2594
    %3376 = vmatpush1.bf16.msra.mxu0 %v2593
    %3377 = vmatprep.subr.bf16.mxu0 %v2602
    %3378 = vmatpush1.bf16.msra.mxu0 %v2601
    %3379 = vmatprep.subr.bf16.mxu0 %v2610
    %3380 = vmatpush1.bf16.msra.mxu0 %v2609
    %3381 = vmatprep.subr.bf16.mxu0 %v2618
    %3382 = vmatpush1.bf16.msra.mxu0 %v2617
    %3383 = vmatprep.mubr.bf16.mxu0 %v694
    %3384 = vmatmul.mubr.bf16.gmra.mrb[0].mxu0 %v693
    %v3385 = vpop.f32.mrb[0].mxu0
    %v3386 = vadd.f32 %v3343, %v3385
    %v3387 = vpop.f32.mrb[0].mxu0
    %v3388 = vadd.f32 %v3345, %v3387
    %v3389 = vpop.f32.mrb[0].mxu0
    %v3390 = vadd.f32 %v3347, %v3389
    %v3391 = vpop.f32.mrb[0].mxu0
    %v3392 = vadd.f32 %v3349, %v3391
    %3393 = vdwg.mxu0
    %3394 = vmatprep.subr.bf16.mxu0 %v2626
    %3395 = vmatpush1.bf16.msra.mxu0 %v2625
    %3396 = vmatprep.subr.bf16.mxu0 %v2634
    %3397 = vmatpush1.bf16.msra.mxu0 %v2633
    %3398 = vmatprep.subr.bf16.mxu0 %v2642
    %3399 = vmatpush1.bf16.msra.mxu0 %v2641
    %3400 = vmatprep.subr.bf16.mxu0 %v2650
    %3401 = vmatpush1.bf16.msra.mxu0 %v2649
    %3402 = vmatprep.subr.bf16.mxu0 %v2658
    %3403 = vmatpush1.bf16.msra.mxu0 %v2657
    %3404 = vmatprep.subr.bf16.mxu0 %v2666
    %3405 = vmatpush1.bf16.msra.mxu0 %v2665
    %3406 = vmatprep.subr.bf16.mxu0 %v2674
    %3407 = vmatpush1.bf16.msra.mxu0 %v2673
    %3408 = vmatprep.subr.bf16.mxu0 %v2682
    %3409 = vmatpush1.bf16.msra.mxu0 %v2681
    %3410 = vmatprep.subr.bf16.mxu0 %v2690
    %3411 = vmatpush1.bf16.msra.mxu0 %v2689
    %3412 = vmatprep.subr.bf16.mxu0 %v2698
    %3413 = vmatpush1.bf16.msra.mxu0 %v2697
    %3414 = vmatprep.subr.bf16.mxu0 %v2706
    %3415 = vmatpush1.bf16.msra.mxu0 %v2705
    %3416 = vmatprep.subr.bf16.mxu0 %v2714
    %3417 = vmatpush1.bf16.msra.mxu0 %v2713
    %3418 = vmatprep.subr.bf16.mxu0 %v2722
    %3419 = vmatpush1.bf16.msra.mxu0 %v2721
    %3420 = vmatprep.subr.bf16.mxu0 %v2730
    %3421 = vmatpush1.bf16.msra.mxu0 %v2729
    %3422 = vmatprep.subr.bf16.mxu0 %v2738
    %3423 = vmatpush1.bf16.msra.mxu0 %v2737
    %3424 = vmatprep.subr.bf16.mxu0 %v2746
    %3425 = vmatpush1.bf16.msra.mxu0 %v2745
    %3426 = vmatprep.mubr.bf16.mxu0 %v696
    %3427 = vmatmul.mubr.bf16.gmra.mrb[0].mxu0 %v695
    %v3428 = vpop.f32.mrb[0].mxu0
    %v3429 = vadd.f32 %v3386, %v3428
    %v3430 = vpop.f32.mrb[0].mxu0
    %v3431 = vadd.f32 %v3388, %v3430
    %v3432 = vpop.f32.mrb[0].mxu0
    %v3433 = vadd.f32 %v3390, %v3432
    %v3434 = vpop.f32.mrb[0].mxu0
    %v3435 = vadd.f32 %v3392, %v3434
    %3436 = vdwg.mxu0
    %3437 = vmatprep.subr.bf16.mxu0 %v2244
    %3438 = vmatpush1.bf16.msra.mxu0 %v2243
    %3439 = vmatprep.subr.bf16.mxu0 %v2252
    %3440 = vmatpush1.bf16.msra.mxu0 %v2251
    %3441 = vmatprep.subr.bf16.mxu0 %v2260
    %3442 = vmatpush1.bf16.msra.mxu0 %v2259
    %3443 = vmatprep.subr.bf16.mxu0 %v2268
    %3444 = vmatpush1.bf16.msra.mxu0 %v2267
    %3445 = vmatprep.subr.bf16.mxu0 %v2276
    %3446 = vmatpush1.bf16.msra.mxu0 %v2275
    %3447 = vmatprep.subr.bf16.mxu0 %v2284
    %3448 = vmatpush1.bf16.msra.mxu0 %v2283
    %3449 = vmatprep.subr.bf16.mxu0 %v2292
    %3450 = vmatpush1.bf16.msra.mxu0 %v2291
    %3451 = vmatprep.subr.bf16.mxu0 %v2300
    %3452 = vmatpush1.bf16.msra.mxu0 %v2299
    %3453 = vmatprep.subr.bf16.mxu0 %v2308
    %3454 = vmatpush1.bf16.msra.mxu0 %v2307
    %3455 = vmatprep.subr.bf16.mxu0 %v2316
    %3456 = vmatpush1.bf16.msra.mxu0 %v2315
    %3457 = vmatprep.subr.bf16.mxu0 %v2324
    %3458 = vmatpush1.bf16.msra.mxu0 %v2323
    %3459 = vmatprep.subr.bf16.mxu0 %v2332
    %3460 = vmatpush1.bf16.msra.mxu0 %v2331
    %3461 = vmatprep.subr.bf16.mxu0 %v2340
    %3462 = vmatpush1.bf16.msra.mxu0 %v2339
    %3463 = vmatprep.subr.bf16.mxu0 %v2348
    %3464 = vmatpush1.bf16.msra.mxu0 %v2347
    %3465 = vmatprep.subr.bf16.mxu0 %v2356
    %3466 = vmatpush1.bf16.msra.mxu0 %v2355
    %3467 = vmatprep.subr.bf16.mxu0 %v2364
    %3468 = vmatpush1.bf16.msra.mxu0 %v2363
    %3469 = vmatprep.mubr.bf16.mxu0 %v690
    %3470 = vmatmul.mubr.bf16.gmra.mrb[0].mxu0 %v689
    %v3471 = vpop.f32.mrb[0].mxu0
    %v3472 = vadd.f32 %v636, %v3471
    %v3473 = vpop.f32.mrb[0].mxu0
    %v3474 = vadd.f32 %v640, %v3473
    %v3475 = vpop.f32.mrb[0].mxu0
    %v3476 = vadd.f32 %v636, %v3475
    %v3477 = vpop.f32.mrb[0].mxu0
    %v3478 = vadd.f32 %v640, %v3477
    %3479 = vdwg.mxu0
    %3480 = vmatprep.subr.bf16.mxu0 %v2372
    %3481 = vmatpush1.bf16.msra.mxu0 %v2371
    %3482 = vmatprep.subr.bf16.mxu0 %v2380
    %3483 = vmatpush1.bf16.msra.mxu0 %v2379
    %3484 = vmatprep.subr.bf16.mxu0 %v2388
    %3485 = vmatpush1.bf16.msra.mxu0 %v2387
    %3486 = vmatprep.subr.bf16.mxu0 %v2396
    %3487 = vmatpush1.bf16.msra.mxu0 %v2395
    %3488 = vmatprep.subr.bf16.mxu0 %v2404
    %3489 = vmatpush1.bf16.msra.mxu0 %v2403
    %3490 = vmatprep.subr.bf16.mxu0 %v2412
    %3491 = vmatpush1.bf16.msra.mxu0 %v2411
    %3492 = vmatprep.subr.bf16.mxu0 %v2420
    %3493 = vmatpush1.bf16.msra.mxu0 %v2419
    %3494 = vmatprep.subr.bf16.mxu0 %v2428
    %3495 = vmatpush1.bf16.msra.mxu0 %v2427
    %3496 = vmatprep.subr.bf16.mxu0 %v2436
    %3497 = vmatpush1.bf16.msra.mxu0 %v2435
    %3498 = vmatprep.subr.bf16.mxu0 %v2444
    %3499 = vmatpush1.bf16.msra.mxu0 %v2443
    %3500 = vmatprep.subr.bf16.mxu0 %v2452
    %3501 = vmatpush1.bf16.msra.mxu0 %v2451
    %3502 = vmatprep.subr.bf16.mxu0 %v2460
    %3503 = vmatpush1.bf16.msra.mxu0 %v2459
    %3504 = vmatprep.subr.bf16.mxu0 %v2468
    %3505 = vmatpush1.bf16.msra.mxu0 %v2467
    %3506 = vmatprep.subr.bf16.mxu0 %v2476
    %3507 = vmatpush1.bf16.msra.mxu0 %v2475
    %3508 = vmatprep.subr.bf16.mxu0 %v2484
    %3509 = vmatpush1.bf16.msra.mxu0 %v2483
    %3510 = vmatprep.subr.bf16.mxu0 %v2492
    %3511 = vmatpush1.bf16.msra.mxu0 %v2491
    %3512 = vmatprep.mubr.bf16.mxu0 %v692
    %3513 = vmatmul.mubr.bf16.gmra.mrb[0].mxu0 %v691
    %v3514 = vpop.f32.mrb[0].mxu0
    %v3515 = vadd.f32 %v3472, %v3514
    %v3516 = vpop.f32.mrb[0].mxu0
    %v3517 = vadd.f32 %v3474, %v3516
    %v3518 = vpop.f32.mrb[0].mxu0
    %v3519 = vadd.f32 %v3476, %v3518
    %v3520 = vpop.f32.mrb[0].mxu0
    %v3521 = vadd.f32 %v3478, %v3520
    %3522 = vdwg.mxu0
    %3523 = vmatprep.subr.bf16.mxu0 %v2500
    %3524 = vmatpush1.bf16.msra.mxu0 %v2499
    %3525 = vmatprep.subr.bf16.mxu0 %v2508
    %3526 = vmatpush1.bf16.msra.mxu0 %v2507
    %3527 = vmatprep.subr.bf16.mxu0 %v2516
    %3528 = vmatpush1.bf16.msra.mxu0 %v2515
    %3529 = vmatprep.subr.bf16.mxu0 %v2524
    %3530 = vmatpush1.bf16.msra.mxu0 %v2523
    %3531 = vmatprep.subr.bf16.mxu0 %v2532
    %3532 = vmatpush1.bf16.msra.mxu0 %v2531
    %3533 = vmatprep.subr.bf16.mxu0 %v2540
    %3534 = vmatpush1.bf16.msra.mxu0 %v2539
    %3535 = vmatprep.subr.bf16.mxu0 %v2548
    %3536 = vmatpush1.bf16.msra.mxu0 %v2547
    %3537 = vmatprep.subr.bf16.mxu0 %v2556
    %3538 = vmatpush1.bf16.msra.mxu0 %v2555
    %3539 = vmatprep.subr.bf16.mxu0 %v2564
    %3540 = vmatpush1.bf16.msra.mxu0 %v2563
    %3541 = vmatprep.subr.bf16.mxu0 %v2572
    %3542 = vmatpush1.bf16.msra.mxu0 %v2571
    %3543 = vmatprep.subr.bf16.mxu0 %v2580
    %3544 = vmatpush1.bf16.msra.mxu0 %v2579
    %3545 = vmatprep.subr.bf16.mxu0 %v2588
    %3546 = vmatpush1.bf16.msra.mxu0 %v2587
    %3547 = vmatprep.subr.bf16.mxu0 %v2596
    %3548 = vmatpush1.bf16.msra.mxu0 %v2595
    %3549 = vmatprep.subr.bf16.mxu0 %v2604
    %3550 = vmatpush1.bf16.msra.mxu0 %v2603
    %3551 = vmatprep.subr.bf16.mxu0 %v2612
    %3552 = vmatpush1.bf16.msra.mxu0 %v2611
    %3553 = vmatprep.subr.bf16.mxu0 %v2620
    %3554 = vmatpush1.bf16.msra.mxu0 %v2619
    %3555 = vmatprep.mubr.bf16.mxu0 %v694
    %3556 = vmatmul.mubr.bf16.gmra.mrb[0].mxu0 %v693
    %v3557 = vpop.f32.mrb[0].mxu0
    %v3558 = vadd.f32 %v3515, %v3557
    %v3559 = vpop.f32.mrb[0].mxu0
    %v3560 = vadd.f32 %v3517, %v3559
    %v3561 = vpop.f32.mrb[0].mxu0
    %v3562 = vadd.f32 %v3519, %v3561
    %v3563 = vpop.f32.mrb[0].mxu0
    %v3564 = vadd.f32 %v3521, %v3563
    %3565 = vdwg.mxu0
    %3566 = vmatprep.subr.bf16.mxu0 %v2628
    %3567 = vmatpush1.bf16.msra.mxu0 %v2627
    %3568 = vmatprep.subr.bf16.mxu0 %v2636
    %3569 = vmatpush1.bf16.msra.mxu0 %v2635
    %3570 = vmatprep.subr.bf16.mxu0 %v2644
    %3571 = vmatpush1.bf16.msra.mxu0 %v2643
    %3572 = vmatprep.subr.bf16.mxu0 %v2652
    %3573 = vmatpush1.bf16.msra.mxu0 %v2651
    %3574 = vmatprep.subr.bf16.mxu0 %v2660
    %3575 = vmatpush1.bf16.msra.mxu0 %v2659
    %3576 = vmatprep.subr.bf16.mxu0 %v2668
    %3577 = vmatpush1.bf16.msra.mxu0 %v2667
    %3578 = vmatprep.subr.bf16.mxu0 %v2676
    %3579 = vmatpush1.bf16.msra.mxu0 %v2675
    %3580 = vmatprep.subr.bf16.mxu0 %v2684
    %3581 = vmatpush1.bf16.msra.mxu0 %v2683
    %3582 = vmatprep.subr.bf16.mxu0 %v2692
    %3583 = vmatpush1.bf16.msra.mxu0 %v2691
    %3584 = vmatprep.subr.bf16.mxu0 %v2700
    %3585 = vmatpush1.bf16.msra.mxu0 %v2699
    %3586 = vmatprep.subr.bf16.mxu0 %v2708
    %3587 = vmatpush1.bf16.msra.mxu0 %v2707
    %3588 = vmatprep.subr.bf16.mxu0 %v2716
    %3589 = vmatpush1.bf16.msra.mxu0 %v2715
    %3590 = vmatprep.subr.bf16.mxu0 %v2724
    %3591 = vmatpush1.bf16.msra.mxu0 %v2723
    %3592 = vmatprep.subr.bf16.mxu0 %v2732
    %3593 = vmatpush1.bf16.msra.mxu0 %v2731
    %3594 = vmatprep.subr.bf16.mxu0 %v2740
    %3595 = vmatpush1.bf16.msra.mxu0 %v2739
    %3596 = vmatprep.subr.bf16.mxu0 %v2748
    %3597 = vmatpush1.bf16.msra.mxu0 %v2747
    %3598 = vmatprep.mubr.bf16.mxu0 %v696
    %3599 = vmatmul.mubr.bf16.gmra.mrb[0].mxu0 %v695
    %v3600 = vpop.f32.mrb[0].mxu0
    %v3601 = vadd.f32 %v3558, %v3600
    %v3602 = vpop.f32.mrb[0].mxu0
    %v3603 = vadd.f32 %v3560, %v3602
    %v3604 = vpop.f32.mrb[0].mxu0
    %v3605 = vadd.f32 %v3562, %v3604
    %v3606 = vpop.f32.mrb[0].mxu0
    %v3607 = vadd.f32 %v3564, %v3606
    %3608 = vdwg.mxu0
    %3609 = vmatprep.subr.bf16.mxu0 %v2246
    %3610 = vmatpush1.bf16.msra.mxu0 %v2245
    %3611 = vmatprep.subr.bf16.mxu0 %v2254
    %3612 = vmatpush1.bf16.msra.mxu0 %v2253
    %3613 = vmatprep.subr.bf16.mxu0 %v2262
    %3614 = vmatpush1.bf16.msra.mxu0 %v2261
    %3615 = vmatprep.subr.bf16.mxu0 %v2270
    %3616 = vmatpush1.bf16.msra.mxu0 %v2269
    %3617 = vmatprep.subr.bf16.mxu0 %v2278
    %3618 = vmatpush1.bf16.msra.mxu0 %v2277
    %3619 = vmatprep.subr.bf16.mxu0 %v2286
    %3620 = vmatpush1.bf16.msra.mxu0 %v2285
    %3621 = vmatprep.subr.bf16.mxu0 %v2294
    %3622 = vmatpush1.bf16.msra.mxu0 %v2293
    %3623 = vmatprep.subr.bf16.mxu0 %v2302
    %3624 = vmatpush1.bf16.msra.mxu0 %v2301
    %3625 = vmatprep.subr.bf16.mxu0 %v2310
    %3626 = vmatpush1.bf16.msra.mxu0 %v2309
    %3627 = vmatprep.subr.bf16.mxu0 %v2318
    %3628 = vmatpush1.bf16.msra.mxu0 %v2317
    %3629 = vmatprep.subr.bf16.mxu0 %v2326
    %3630 = vmatpush1.bf16.msra.mxu0 %v2325
    %3631 = vmatprep.subr.bf16.mxu0 %v2334
    %3632 = vmatpush1.bf16.msra.mxu0 %v2333
    %3633 = vmatprep.subr.bf16.mxu0 %v2342
    %3634 = vmatpush1.bf16.msra.mxu0 %v2341
    %3635 = vmatprep.subr.bf16.mxu0 %v2350
    %3636 = vmatpush1.bf16.msra.mxu0 %v2349
    %3637 = vmatprep.subr.bf16.mxu0 %v2358
    %3638 = vmatpush1.bf16.msra.mxu0 %v2357
    %3639 = vmatprep.subr.bf16.mxu0 %v2366
    %3640 = vmatpush1.bf16.msra.mxu0 %v2365
    %3641 = vmatprep.mubr.bf16.mxu0 %v690
    %3642 = vmatmul.mubr.bf16.gmra.mrb[0].mxu0 %v689
    %v3643 = vpop.f32.mrb[0].mxu0
    %v3644 = vadd.f32 %v644, %v3643
    %v3645 = vpop.f32.mrb[0].mxu0
    %v3646 = vadd.f32 %v648, %v3645
    %v3647 = vpop.f32.mrb[0].mxu0
    %v3648 = vadd.f32 %v644, %v3647
    %v3649 = vpop.f32.mrb[0].mxu0
    %v3650 = vadd.f32 %v648, %v3649
    %3651 = vdwg.mxu0
    %3652 = vmatprep.subr.bf16.mxu0 %v2374
    %3653 = vmatpush1.bf16.msra.mxu0 %v2373
    %3654 = vmatprep.subr.bf16.mxu0 %v2382
    %3655 = vmatpush1.bf16.msra.mxu0 %v2381
    %3656 = vmatprep.subr.bf16.mxu0 %v2390
    %3657 = vmatpush1.bf16.msra.mxu0 %v2389
    %3658 = vmatprep.subr.bf16.mxu0 %v2398
    %3659 = vmatpush1.bf16.msra.mxu0 %v2397
    %3660 = vmatprep.subr.bf16.mxu0 %v2406
    %3661 = vmatpush1.bf16.msra.mxu0 %v2405
    %3662 = vmatprep.subr.bf16.mxu0 %v2414
    %3663 = vmatpush1.bf16.msra.mxu0 %v2413
    %3664 = vmatprep.subr.bf16.mxu0 %v2422
    %3665 = vmatpush1.bf16.msra.mxu0 %v2421
    %3666 = vmatprep.subr.bf16.mxu0 %v2430
    %3667 = vmatpush1.bf16.msra.mxu0 %v2429
    %3668 = vmatprep.subr.bf16.mxu0 %v2438
    %3669 = vmatpush1.bf16.msra.mxu0 %v2437
    %3670 = vmatprep.subr.bf16.mxu0 %v2446
    %3671 = vmatpush1.bf16.msra.mxu0 %v2445
    %3672 = vmatprep.subr.bf16.mxu0 %v2454
    %3673 = vmatpush1.bf16.msra.mxu0 %v2453
    %3674 = vmatprep.subr.bf16.mxu0 %v2462
    %3675 = vmatpush1.bf16.msra.mxu0 %v2461
    %3676 = vmatprep.subr.bf16.mxu0 %v2470
    %3677 = vmatpush1.bf16.msra.mxu0 %v2469
    %3678 = vmatprep.subr.bf16.mxu0 %v2478
    %3679 = vmatpush1.bf16.msra.mxu0 %v2477
    %3680 = vmatprep.subr.bf16.mxu0 %v2486
    %3681 = vmatpush1.bf16.msra.mxu0 %v2485
    %3682 = vmatprep.subr.bf16.mxu0 %v2494
    %3683 = vmatpush1.bf16.msra.mxu0 %v2493
    %3684 = vmatprep.mubr.bf16.mxu0 %v692
    %3685 = vmatmul.mubr.bf16.gmra.mrb[0].mxu0 %v691
    %v3686 = vpop.f32.mrb[0].mxu0
    %v3687 = vadd.f32 %v3644, %v3686
    %v3688 = vpop.f32.mrb[0].mxu0
    %v3689 = vadd.f32 %v3646, %v3688
    %v3690 = vpop.f32.mrb[0].mxu0
    %v3691 = vadd.f32 %v3648, %v3690
    %v3692 = vpop.f32.mrb[0].mxu0
    %v3693 = vadd.f32 %v3650, %v3692
    %3694 = vdwg.mxu0
    %3695 = vmatprep.subr.bf16.mxu0 %v2502
    %3696 = vmatpush1.bf16.msra.mxu0 %v2501
    %3697 = vmatprep.subr.bf16.mxu0 %v2510
    %3698 = vmatpush1.bf16.msra.mxu0 %v2509
    %3699 = vmatprep.subr.bf16.mxu0 %v2518
    %3700 = vmatpush1.bf16.msra.mxu0 %v2517
    %3701 = vmatprep.subr.bf16.mxu0 %v2526
    %3702 = vmatpush1.bf16.msra.mxu0 %v2525
    %3703 = vmatprep.subr.bf16.mxu0 %v2534
    %3704 = vmatpush1.bf16.msra.mxu0 %v2533
    %3705 = vmatprep.subr.bf16.mxu0 %v2542
    %3706 = vmatpush1.bf16.msra.mxu0 %v2541
    %3707 = vmatprep.subr.bf16.mxu0 %v2550
    %3708 = vmatpush1.bf16.msra.mxu0 %v2549
    %3709 = vmatprep.subr.bf16.mxu0 %v2558
    %3710 = vmatpush1.bf16.msra.mxu0 %v2557
    %3711 = vmatprep.subr.bf16.mxu0 %v2566
    %3712 = vmatpush1.bf16.msra.mxu0 %v2565
    %3713 = vmatprep.subr.bf16.mxu0 %v2574
    %3714 = vmatpush1.bf16.msra.mxu0 %v2573
    %3715 = vmatprep.subr.bf16.mxu0 %v2582
    %3716 = vmatpush1.bf16.msra.mxu0 %v2581
    %3717 = vmatprep.subr.bf16.mxu0 %v2590
    %3718 = vmatpush1.bf16.msra.mxu0 %v2589
    %3719 = vmatprep.subr.bf16.mxu0 %v2598
    %3720 = vmatpush1.bf16.msra.mxu0 %v2597
    %3721 = vmatprep.subr.bf16.mxu0 %v2606
    %3722 = vmatpush1.bf16.msra.mxu0 %v2605
    %3723 = vmatprep.subr.bf16.mxu0 %v2614
    %3724 = vmatpush1.bf16.msra.mxu0 %v2613
    %3725 = vmatprep.subr.bf16.mxu0 %v2622
    %3726 = vmatpush1.bf16.msra.mxu0 %v2621
    %3727 = vmatprep.mubr.bf16.mxu0 %v694
    %3728 = vmatmul.mubr.bf16.gmra.mrb[0].mxu0 %v693
    %v3729 = vpop.f32.mrb[0].mxu0
    %v3730 = vadd.f32 %v3687, %v3729
    %v3731 = vpop.f32.mrb[0].mxu0
    %v3732 = vadd.f32 %v3689, %v3731
    %v3733 = vpop.f32.mrb[0].mxu0
    %v3734 = vadd.f32 %v3691, %v3733
    %v3735 = vpop.f32.mrb[0].mxu0
    %v3736 = vadd.f32 %v3693, %v3735
    %3737 = vdwg.mxu0
    %3738 = vmatprep.subr.bf16.mxu0 %v2630
    %3739 = vmatpush1.bf16.msra.mxu0 %v2629
    %3740 = vmatprep.subr.bf16.mxu0 %v2638
    %3741 = vmatpush1.bf16.msra.mxu0 %v2637
    %3742 = vmatprep.subr.bf16.mxu0 %v2646
    %3743 = vmatpush1.bf16.msra.mxu0 %v2645
    %3744 = vmatprep.subr.bf16.mxu0 %v2654
    %3745 = vmatpush1.bf16.msra.mxu0 %v2653
    %3746 = vmatprep.subr.bf16.mxu0 %v2662
    %3747 = vmatpush1.bf16.msra.mxu0 %v2661
    %3748 = vmatprep.subr.bf16.mxu0 %v2670
    %3749 = vmatpush1.bf16.msra.mxu0 %v2669
    %3750 = vmatprep.subr.bf16.mxu0 %v2678
    %3751 = vmatpush1.bf16.msra.mxu0 %v2677
    %3752 = vmatprep.subr.bf16.mxu0 %v2686
    %3753 = vmatpush1.bf16.msra.mxu0 %v2685
    %3754 = vmatprep.subr.bf16.mxu0 %v2694
    %3755 = vmatpush1.bf16.msra.mxu0 %v2693
    %3756 = vmatprep.subr.bf16.mxu0 %v2702
    %3757 = vmatpush1.bf16.msra.mxu0 %v2701
    %3758 = vmatprep.subr.bf16.mxu0 %v2710
    %3759 = vmatpush1.bf16.msra.mxu0 %v2709
    %3760 = vmatprep.subr.bf16.mxu0 %v2718
    %3761 = vmatpush1.bf16.msra.mxu0 %v2717
    %3762 = vmatprep.subr.bf16.mxu0 %v2726
    %3763 = vmatpush1.bf16.msra.mxu0 %v2725
    %3764 = vmatprep.subr.bf16.mxu0 %v2734
    %3765 = vmatpush1.bf16.msra.mxu0 %v2733
    %3766 = vmatprep.subr.bf16.mxu0 %v2742
    %3767 = vmatpush1.bf16.msra.mxu0 %v2741
    %3768 = vmatprep.subr.bf16.mxu0 %v2750
    %3769 = vmatpush1.bf16.msra.mxu0 %v2749
    %3770 = vmatprep.mubr.bf16.mxu0 %v696
    %3771 = vmatmul.mubr.bf16.gmra.mrb[0].mxu0 %v695
    %v3772 = vpop.f32.mrb[0].mxu0
    %v3773 = vadd.f32 %v3730, %v3772
    %v3774 = vpop.f32.mrb[0].mxu0
    %v3775 = vadd.f32 %v3732, %v3774
    %v3776 = vpop.f32.mrb[0].mxu0
    %v3777 = vadd.f32 %v3734, %v3776
    %v3778 = vpop.f32.mrb[0].mxu0
    %v3779 = vadd.f32 %v3736, %v3778
    %3780 = vdwg.mxu0
    %3781 = vmatprep.subr.bf16.mxu0 %v2248
    %3782 = vmatpush1.bf16.msra.mxu0 %v2247
    %3783 = vmatprep.subr.bf16.mxu0 %v2256
    %3784 = vmatpush1.bf16.msra.mxu0 %v2255
    %3785 = vmatprep.subr.bf16.mxu0 %v2264
    %3786 = vmatpush1.bf16.msra.mxu0 %v2263
    %3787 = vmatprep.subr.bf16.mxu0 %v2272
    %3788 = vmatpush1.bf16.msra.mxu0 %v2271
    %3789 = vmatprep.subr.bf16.mxu0 %v2280
    %3790 = vmatpush1.bf16.msra.mxu0 %v2279
    %3791 = vmatprep.subr.bf16.mxu0 %v2288
    %3792 = vmatpush1.bf16.msra.mxu0 %v2287
    %3793 = vmatprep.subr.bf16.mxu0 %v2296
    %3794 = vmatpush1.bf16.msra.mxu0 %v2295
    %3795 = vmatprep.subr.bf16.mxu0 %v2304
    %3796 = vmatpush1.bf16.msra.mxu0 %v2303
    %3797 = vmatprep.subr.bf16.mxu0 %v2312
    %3798 = vmatpush1.bf16.msra.mxu0 %v2311
    %3799 = vmatprep.subr.bf16.mxu0 %v2320
    %3800 = vmatpush1.bf16.msra.mxu0 %v2319
    %3801 = vmatprep.subr.bf16.mxu0 %v2328
    %3802 = vmatpush1.bf16.msra.mxu0 %v2327
    %3803 = vmatprep.subr.bf16.mxu0 %v2336
    %3804 = vmatpush1.bf16.msra.mxu0 %v2335
    %3805 = vmatprep.subr.bf16.mxu0 %v2344
    %3806 = vmatpush1.bf16.msra.mxu0 %v2343
    %3807 = vmatprep.subr.bf16.mxu0 %v2352
    %3808 = vmatpush1.bf16.msra.mxu0 %v2351
    %3809 = vmatprep.subr.bf16.mxu0 %v2360
    %3810 = vmatpush1.bf16.msra.mxu0 %v2359
    %3811 = vmatprep.subr.bf16.mxu0 %v2368
    %3812 = vmatpush1.bf16.msra.mxu0 %v2367
    %3813 = vmatprep.mubr.bf16.mxu0 %v690
    %3814 = vmatmul.mubr.bf16.gmra.mrb[0].mxu0 %v689
    %v3815 = vpop.f32.mrb[0].mxu0
    %v3816 = vadd.f32 %v652, %v3815
    %v3817 = vpop.f32.mrb[0].mxu0
    %v3818 = vadd.f32 %v656, %v3817
    %v3819 = vpop.f32.mrb[0].mxu0
    %v3820 = vadd.f32 %v652, %v3819
    %v3821 = vpop.f32.mrb[0].mxu0
    %v3822 = vadd.f32 %v656, %v3821
    %3823 = vdwg.mxu0
    %3824 = vmatprep.subr.bf16.mxu0 %v2376
    %3825 = vmatpush1.bf16.msra.mxu0 %v2375
    %3826 = vmatprep.subr.bf16.mxu0 %v2384
    %3827 = vmatpush1.bf16.msra.mxu0 %v2383
    %3828 = vmatprep.subr.bf16.mxu0 %v2392
    %3829 = vmatpush1.bf16.msra.mxu0 %v2391
    %3830 = vmatprep.subr.bf16.mxu0 %v2400
    %3831 = vmatpush1.bf16.msra.mxu0 %v2399
    %3832 = vmatprep.subr.bf16.mxu0 %v2408
    %3833 = vmatpush1.bf16.msra.mxu0 %v2407
    %3834 = vmatprep.subr.bf16.mxu0 %v2416
    %3835 = vmatpush1.bf16.msra.mxu0 %v2415
    %3836 = vmatprep.subr.bf16.mxu0 %v2424
    %3837 = vmatpush1.bf16.msra.mxu0 %v2423
    %3838 = vmatprep.subr.bf16.mxu0 %v2432
    %3839 = vmatpush1.bf16.msra.mxu0 %v2431
    %3840 = vmatprep.subr.bf16.mxu0 %v2440
    %3841 = vmatpush1.bf16.msra.mxu0 %v2439
    %3842 = vmatprep.subr.bf16.mxu0 %v2448
    %3843 = vmatpush1.bf16.msra.mxu0 %v2447
    %3844 = vmatprep.subr.bf16.mxu0 %v2456
    %3845 = vmatpush1.bf16.msra.mxu0 %v2455
    %3846 = vmatprep.subr.bf16.mxu0 %v2464
    %3847 = vmatpush1.bf16.msra.mxu0 %v2463
    %3848 = vmatprep.subr.bf16.mxu0 %v2472
    %3849 = vmatpush1.bf16.msra.mxu0 %v2471
    %3850 = vmatprep.subr.bf16.mxu0 %v2480
    %3851 = vmatpush1.bf16.msra.mxu0 %v2479
    %3852 = vmatprep.subr.bf16.mxu0 %v2488
    %3853 = vmatpush1.bf16.msra.mxu0 %v2487
    %3854 = vmatprep.subr.bf16.mxu0 %v2496
    %3855 = vmatpush1.bf16.msra.mxu0 %v2495
    %3856 = vmatprep.mubr.bf16.mxu0 %v692
    %3857 = vmatmul.mubr.bf16.gmra.mrb[0].mxu0 %v691
    %v3858 = vpop.f32.mrb[0].mxu0
    %v3859 = vadd.f32 %v3816, %v3858
    %v3860 = vpop.f32.mrb[0].mxu0
    %v3861 = vadd.f32 %v3818, %v3860
    %v3862 = vpop.f32.mrb[0].mxu0
    %v3863 = vadd.f32 %v3820, %v3862
    %v3864 = vpop.f32.mrb[0].mxu0
    %v3865 = vadd.f32 %v3822, %v3864
    %3866 = vdwg.mxu0
    %3867 = vmatprep.subr.bf16.mxu0 %v2504
    %3868 = vmatpush1.bf16.msra.mxu0 %v2503
    %3869 = vmatprep.subr.bf16.mxu0 %v2512
    %3870 = vmatpush1.bf16.msra.mxu0 %v2511
    %3871 = vmatprep.subr.bf16.mxu0 %v2520
    %3872 = vmatpush1.bf16.msra.mxu0 %v2519
    %3873 = vmatprep.subr.bf16.mxu0 %v2528
    %3874 = vmatpush1.bf16.msra.mxu0 %v2527
    %3875 = vmatprep.subr.bf16.mxu0 %v2536
    %3876 = vmatpush1.bf16.msra.mxu0 %v2535
    %3877 = vmatprep.subr.bf16.mxu0 %v2544
    %3878 = vmatpush1.bf16.msra.mxu0 %v2543
    %3879 = vmatprep.subr.bf16.mxu0 %v2552
    %3880 = vmatpush1.bf16.msra.mxu0 %v2551
    %3881 = vmatprep.subr.bf16.mxu0 %v2560
    %3882 = vmatpush1.bf16.msra.mxu0 %v2559
    %3883 = vmatprep.subr.bf16.mxu0 %v2568
    %3884 = vmatpush1.bf16.msra.mxu0 %v2567
    %3885 = vmatprep.subr.bf16.mxu0 %v2576
    %3886 = vmatpush1.bf16.msra.mxu0 %v2575
    %3887 = vmatprep.subr.bf16.mxu0 %v2584
    %3888 = vmatpush1.bf16.msra.mxu0 %v2583
    %3889 = vmatprep.subr.bf16.mxu0 %v2592
    %3890 = vmatpush1.bf16.msra.mxu0 %v2591
    %3891 = vmatprep.subr.bf16.mxu0 %v2600
    %3892 = vmatpush1.bf16.msra.mxu0 %v2599
    %3893 = vmatprep.subr.bf16.mxu0 %v2608
    %3894 = vmatpush1.bf16.msra.mxu0 %v2607
    %3895 = vmatprep.subr.bf16.mxu0 %v2616
    %3896 = vmatpush1.bf16.msra.mxu0 %v2615
    %3897 = vmatprep.subr.bf16.mxu0 %v2624
    %3898 = vmatpush1.bf16.msra.mxu0 %v2623
    %3899 = vmatprep.mubr.bf16.mxu0 %v694
    %3900 = vmatmul.mubr.bf16.gmra.mrb[0].mxu0 %v693
    %v3901 = vpop.f32.mrb[0].mxu0
    %v3902 = vadd.f32 %v3859, %v3901
    %v3903 = vpop.f32.mrb[0].mxu0
    %v3904 = vadd.f32 %v3861, %v3903
    %v3905 = vpop.f32.mrb[0].mxu0
    %v3906 = vadd.f32 %v3863, %v3905
    %v3907 = vpop.f32.mrb[0].mxu0
    %v3908 = vadd.f32 %v3865, %v3907
    %3909 = vdwg.mxu0
    %3910 = vmatprep.subr.bf16.mxu0 %v2632
    %3911 = vmatpush1.bf16.msra.mxu0 %v2631
    %3912 = vmatprep.subr.bf16.mxu0 %v2640
    %3913 = vmatpush1.bf16.msra.mxu0 %v2639
    %3914 = vmatprep.subr.bf16.mxu0 %v2648
    %3915 = vmatpush1.bf16.msra.mxu0 %v2647
    %3916 = vmatprep.subr.bf16.mxu0 %v2656
    %3917 = vmatpush1.bf16.msra.mxu0 %v2655
    %3918 = vmatprep.subr.bf16.mxu0 %v2664
    %3919 = vmatpush1.bf16.msra.mxu0 %v2663
    %3920 = vmatprep.subr.bf16.mxu0 %v2672
    %3921 = vmatpush1.bf16.msra.mxu0 %v2671
    %3922 = vmatprep.subr.bf16.mxu0 %v2680
    %3923 = vmatpush1.bf16.msra.mxu0 %v2679
    %3924 = vmatprep.subr.bf16.mxu0 %v2688
    %3925 = vmatpush1.bf16.msra.mxu0 %v2687
    %3926 = vmatprep.subr.bf16.mxu0 %v2696
    %3927 = vmatpush1.bf16.msra.mxu0 %v2695
    %3928 = vmatprep.subr.bf16.mxu0 %v2704
    %3929 = vmatpush1.bf16.msra.mxu0 %v2703
    %3930 = vmatprep.subr.bf16.mxu0 %v2712
    %3931 = vmatpush1.bf16.msra.mxu0 %v2711
    %3932 = vmatprep.subr.bf16.mxu0 %v2720
    %3933 = vmatpush1.bf16.msra.mxu0 %v2719
    %3934 = vmatprep.subr.bf16.mxu0 %v2728
    %3935 = vmatpush1.bf16.msra.mxu0 %v2727
    %3936 = vmatprep.subr.bf16.mxu0 %v2736
    %3937 = vmatpush1.bf16.msra.mxu0 %v2735
    %3938 = vmatprep.subr.bf16.mxu0 %v2744
    %3939 = vmatpush1.bf16.msra.mxu0 %v2743
    %3940 = vmatprep.subr.bf16.mxu0 %v2752
    %3941 = vmatpush1.bf16.msra.mxu0 %v2751
    %3942 = vmatprep.mubr.bf16.mxu0 %v696
    %3943 = vmatmul.mubr.bf16.gmra.mrb[0].mxu0 %v695
    %v3944 = vpop.f32.mrb[0].mxu0
    %v3945 = vadd.f32 %v3902, %v3944
    %v3946 = vpop.f32.mrb[0].mxu0
    %v3947 = vadd.f32 %v3904, %v3946
    %v3948 = vpop.f32.mrb[0].mxu0
    %v3949 = vadd.f32 %v3906, %v3948
    %v3950 = vpop.f32.mrb[0].mxu0
    %v3951 = vadd.f32 %v3908, %v3950
    %3952 = vdwg.mxu0
    %vm3953 = vcmp.ge.f32.partialorder %v3429, 0.0
    %vm3954 = vcmp.ge.f32.partialorder %v3431, 0.0
    %vm3955 = vcmp.ge.f32.partialorder %v3601, 0.0
    %vm3956 = vcmp.ge.f32.partialorder %v3603, 0.0
    %vm3957 = vcmp.ge.f32.partialorder %v3773, 0.0
    %vm3958 = vcmp.ge.f32.partialorder %v3775, 0.0
    %vm3959 = vcmp.ge.f32.partialorder %v3945, 0.0
    %vm3960 = vcmp.ge.f32.partialorder %v3947, 0.0
    %vm3961 = vcmp.ge.f32.partialorder %v3433, 0.0
    %vm3962 = vcmp.ge.f32.partialorder %v3435, 0.0
    %vm3963 = vcmp.ge.f32.partialorder %v3605, 0.0
    %vm3964 = vcmp.ge.f32.partialorder %v3607, 0.0
    %vm3965 = vcmp.ge.f32.partialorder %v3777, 0.0
    %vm3966 = vcmp.ge.f32.partialorder %v3779, 0.0
    %vm3967 = vcmp.ge.f32.partialorder %v3949, 0.0
    %vm3968 = vcmp.ge.f32.partialorder %v3951, 0.0
    %v3969 = vmul.f32 %v3429, 0.1
    %v3970 = vmul.f32 %v3431, 0.1
    %v3971 = vmul.f32 %v3601, 0.1
    %v3972 = vmul.f32 %v3603, 0.1
    %v3973 = vmul.f32 %v3773, 0.1
    %v3974 = vmul.f32 %v3775, 0.1
    %v3975 = vmul.f32 %v3945, 0.1
    %v3976 = vmul.f32 %v3947, 0.1
    %v3977 = vmul.f32 %v3433, 0.1
    %v3978 = vmul.f32 %v3435, 0.1
    %v3979 = vmul.f32 %v3605, 0.1
    %v3980 = vmul.f32 %v3607, 0.1
    %v3981 = vmul.f32 %v3777, 0.1
    %v3982 = vmul.f32 %v3779, 0.1
    %v3983 = vmul.f32 %v3949, 0.1
    %v3984 = vmul.f32 %v3951, 0.1
    %v3985 = vsel %vm3953, %v3429, %v3969
    %v3986 = vsel %vm3954, %v3431, %v3970
    %v3987 = vsel %vm3955, %v3601, %v3971
    %v3988 = vsel %vm3956, %v3603, %v3972
    %v3989 = vsel %vm3957, %v3773, %v3973
    %v3990 = vsel %vm3958, %v3775, %v3974
    %v3991 = vsel %vm3959, %v3945, %v3975
    %v3992 = vsel %vm3960, %v3947, %v3976
    %v3993 = vsel %vm3961, %v3433, %v3977
    %v3994 = vsel %vm3962, %v3435, %v3978
    %v3995 = vsel %vm3963, %v3605, %v3979
    %v3996 = vsel %vm3964, %v3607, %v3980
    %v3997 = vsel %vm3965, %v3777, %v3981
    %v3998 = vsel %vm3966, %v3779, %v3982
    %v3999 = vsel %vm3967, %v3949, %v3983
    %v4000 = vsel %vm3968, %v3951, %v3984
    %v4001 = vpack.c.bf16 %v3993, %v3985
    %v4002 = vpack.c.bf16 %v3994, %v3986
    %v4003 = vpack.c.bf16 %v3995, %v3987
    %v4004 = vpack.c.bf16 %v3996, %v3988
    %v4005 = vpack.c.bf16 %v3997, %v3989
    %v4006 = vpack.c.bf16 %v3998, %v3990
    %v4007 = vpack.c.bf16 %v3999, %v3991
    %v4008 = vpack.c.bf16 %v4000, %v3992
    %v4009 = vld [vmem:[#allocation6] sm:$0xff]
    %v4010 = vld [vmem:[#allocation6 + $0x8] sm:$0xff]
    %v4011 = vld [vmem:[#allocation6 + $0x10] sm:$0xff]
    %v4012 = vld [vmem:[#allocation6 + $0x18] sm:$0xff]
    %v4013 = vld [vmem:[#allocation6 + $0x20] sm:$0xff]
    %v4014 = vld [vmem:[#allocation6 + $0x28] sm:$0xff]
    %v4015 = vld [vmem:[#allocation6 + $0x30] sm:$0xff]
    %v4016 = vld [vmem:[#allocation6 + $0x38] sm:$0xff]
    %v4017 = vld [vmem:[#allocation6 + $0x40] sm:$0xff]
    %v4018 = vld [vmem:[#allocation6 + $0x48] sm:$0xff]
    %v4019 = vld [vmem:[#allocation6 + $0x50] sm:$0xff]
    %v4020 = vld [vmem:[#allocation6 + $0x58] sm:$0xff]
    %v4021 = vld [vmem:[#allocation6 + $0x60] sm:$0xff]
    %v4022 = vld [vmem:[#allocation6 + $0x68] sm:$0xff]
    %v4023 = vld [vmem:[#allocation6 + $0x70] sm:$0xff]
    %v4024 = vld [vmem:[#allocation6 + $0x78] sm:$0xff]
    %v4025 = vld [vmem:[#allocation6 + $0x80] sm:$0xff]
    %v4026 = vld [vmem:[#allocation6 + $0x88] sm:$0xff]
    %v4027 = vld [vmem:[#allocation6 + $0x90] sm:$0xff]
    %v4028 = vld [vmem:[#allocation6 + $0x98] sm:$0xff]
    %v4029 = vld [vmem:[#allocation6 + $0xa0] sm:$0xff]
    %v4030 = vld [vmem:[#allocation6 + $0xa8] sm:$0xff]
    %v4031 = vld [vmem:[#allocation6 + $0xb0] sm:$0xff]
    %v4032 = vld [vmem:[#allocation6 + $0xb8] sm:$0xff]
    %v4033 = vld [vmem:[#allocation6 + $0xc0] sm:$0xff]
    %v4034 = vld [vmem:[#allocation6 + $0xc8] sm:$0xff]
    %v4035 = vld [vmem:[#allocation6 + $0xd0] sm:$0xff]
    %v4036 = vld [vmem:[#allocation6 + $0xd8] sm:$0xff]
    %v4037 = vld [vmem:[#allocation6 + $0xe0] sm:$0xff]
    %v4038 = vld [vmem:[#allocation6 + $0xe8] sm:$0xff]
    %v4039 = vld [vmem:[#allocation6 + $0xf0] sm:$0xff]
    %v4040 = vld [vmem:[#allocation6 + $0xf8] sm:$0xff]
    %v4041 = vld [vmem:[#allocation6 + $0x100] sm:$0xff]
    %v4042 = vld [vmem:[#allocation6 + $0x108] sm:$0xff]
    %v4043 = vld [vmem:[#allocation6 + $0x110] sm:$0xff]
    %v4044 = vld [vmem:[#allocation6 + $0x118] sm:$0xff]
    %v4045 = vld [vmem:[#allocation6 + $0x120] sm:$0xff]
    %v4046 = vld [vmem:[#allocation6 + $0x128] sm:$0xff]
    %v4047 = vld [vmem:[#allocation6 + $0x130] sm:$0xff]
    %v4048 = vld [vmem:[#allocation6 + $0x138] sm:$0xff]
    %v4049 = vld [vmem:[#allocation6 + $0x140] sm:$0xff]
    %v4050 = vld [vmem:[#allocation6 + $0x148] sm:$0xff]
    %v4051 = vld [vmem:[#allocation6 + $0x150] sm:$0xff]
    %v4052 = vld [vmem:[#allocation6 + $0x158] sm:$0xff]
    %v4053 = vld [vmem:[#allocation6 + $0x160] sm:$0xff]
    %v4054 = vld [vmem:[#allocation6 + $0x168] sm:$0xff]
    %v4055 = vld [vmem:[#allocation6 + $0x170] sm:$0xff]
    %v4056 = vld [vmem:[#allocation6 + $0x178] sm:$0xff]
    %v4057 = vld [vmem:[#allocation6 + $0x180] sm:$0xff]
    %v4058 = vld [vmem:[#allocation6 + $0x188] sm:$0xff]
    %v4059 = vld [vmem:[#allocation6 + $0x190] sm:$0xff]
    %v4060 = vld [vmem:[#allocation6 + $0x198] sm:$0xff]
    %v4061 = vld [vmem:[#allocation6 + $0x1a0] sm:$0xff]
    %v4062 = vld [vmem:[#allocation6 + $0x1a8] sm:$0xff]
    %v4063 = vld [vmem:[#allocation6 + $0x1b0] sm:$0xff]
    %v4064 = vld [vmem:[#allocation6 + $0x1b8] sm:$0xff]
    %v4065 = vld [vmem:[#allocation6 + $0x1c0] sm:$0xff]
    %v4066 = vld [vmem:[#allocation6 + $0x1c8] sm:$0xff]
    %v4067 = vld [vmem:[#allocation6 + $0x1d0] sm:$0xff]
    %v4068 = vld [vmem:[#allocation6 + $0x1d8] sm:$0xff]
    %v4069 = vld [vmem:[#allocation6 + $0x1e0] sm:$0xff]
    %v4070 = vld [vmem:[#allocation6 + $0x1e8] sm:$0xff]
    %v4071 = vld [vmem:[#allocation6 + $0x1f0] sm:$0xff]
    %v4072 = vld [vmem:[#allocation6 + $0x1f8] sm:$0xff]
    %v4073 = vld [vmem:[#allocation6 + $0x200] sm:$0xff]
    %v4074 = vld [vmem:[#allocation6 + $0x208] sm:$0xff]
    %v4075 = vld [vmem:[#allocation6 + $0x210] sm:$0xff]
    %v4076 = vld [vmem:[#allocation6 + $0x218] sm:$0xff]
    %v4077 = vld [vmem:[#allocation6 + $0x220] sm:$0xff]
    %v4078 = vld [vmem:[#allocation6 + $0x228] sm:$0xff]
    %v4079 = vld [vmem:[#allocation6 + $0x230] sm:$0xff]
    %v4080 = vld [vmem:[#allocation6 + $0x238] sm:$0xff]
    %v4081 = vld [vmem:[#allocation6 + $0x240] sm:$0xff]
    %v4082 = vld [vmem:[#allocation6 + $0x248] sm:$0xff]
    %v4083 = vld [vmem:[#allocation6 + $0x250] sm:$0xff]
    %v4084 = vld [vmem:[#allocation6 + $0x258] sm:$0xff]
    %v4085 = vld [vmem:[#allocation6 + $0x260] sm:$0xff]
    %v4086 = vld [vmem:[#allocation6 + $0x268] sm:$0xff]
    %v4087 = vld [vmem:[#allocation6 + $0x270] sm:$0xff]
    %v4088 = vld [vmem:[#allocation6 + $0x278] sm:$0xff]
    %v4089 = vld [vmem:[#allocation6 + $0x280] sm:$0xff]
    %v4090 = vld [vmem:[#allocation6 + $0x288] sm:$0xff]
    %v4091 = vld [vmem:[#allocation6 + $0x290] sm:$0xff]
    %v4092 = vld [vmem:[#allocation6 + $0x298] sm:$0xff]
    %v4093 = vld [vmem:[#allocation6 + $0x2a0] sm:$0xff]
    %v4094 = vld [vmem:[#allocation6 + $0x2a8] sm:$0xff]
    %v4095 = vld [vmem:[#allocation6 + $0x2b0] sm:$0xff]
    %v4096 = vld [vmem:[#allocation6 + $0x2b8] sm:$0xff]
    %v4097 = vld [vmem:[#allocation6 + $0x2c0] sm:$0xff]
    %v4098 = vld [vmem:[#allocation6 + $0x2c8] sm:$0xff]
    %v4099 = vld [vmem:[#allocation6 + $0x2d0] sm:$0xff]
    %v4100 = vld [vmem:[#allocation6 + $0x2d8] sm:$0xff]
    %v4101 = vld [vmem:[#allocation6 + $0x2e0] sm:$0xff]
    %v4102 = vld [vmem:[#allocation6 + $0x2e8] sm:$0xff]
    %v4103 = vld [vmem:[#allocation6 + $0x2f0] sm:$0xff]
    %v4104 = vld [vmem:[#allocation6 + $0x2f8] sm:$0xff]
    %v4105 = vld [vmem:[#allocation6 + $0x300] sm:$0xff]
    %v4106 = vld [vmem:[#allocation6 + $0x308] sm:$0xff]
    %v4107 = vld [vmem:[#allocation6 + $0x310] sm:$0xff]
    %v4108 = vld [vmem:[#allocation6 + $0x318] sm:$0xff]
    %v4109 = vld [vmem:[#allocation6 + $0x320] sm:$0xff]
    %v4110 = vld [vmem:[#allocation6 + $0x328] sm:$0xff]
    %v4111 = vld [vmem:[#allocation6 + $0x330] sm:$0xff]
    %v4112 = vld [vmem:[#allocation6 + $0x338] sm:$0xff]
    %v4113 = vld [vmem:[#allocation6 + $0x340] sm:$0xff]
    %v4114 = vld [vmem:[#allocation6 + $0x348] sm:$0xff]
    %v4115 = vld [vmem:[#allocation6 + $0x350] sm:$0xff]
    %v4116 = vld [vmem:[#allocation6 + $0x358] sm:$0xff]
    %v4117 = vld [vmem:[#allocation6 + $0x360] sm:$0xff]
    %v4118 = vld [vmem:[#allocation6 + $0x368] sm:$0xff]
    %v4119 = vld [vmem:[#allocation6 + $0x370] sm:$0xff]
    %v4120 = vld [vmem:[#allocation6 + $0x378] sm:$0xff]
    %v4121 = vld [vmem:[#allocation6 + $0x380] sm:$0xff]
    %v4122 = vld [vmem:[#allocation6 + $0x388] sm:$0xff]
    %v4123 = vld [vmem:[#allocation6 + $0x390] sm:$0xff]
    %v4124 = vld [vmem:[#allocation6 + $0x398] sm:$0xff]
    %v4125 = vld [vmem:[#allocation6 + $0x3a0] sm:$0xff]
    %v4126 = vld [vmem:[#allocation6 + $0x3a8] sm:$0xff]
    %v4127 = vld [vmem:[#allocation6 + $0x3b0] sm:$0xff]
    %v4128 = vld [vmem:[#allocation6 + $0x3b8] sm:$0xff]
    %v4129 = vld [vmem:[#allocation6 + $0x3c0] sm:$0xff]
    %v4130 = vld [vmem:[#allocation6 + $0x3c8] sm:$0xff]
    %v4131 = vld [vmem:[#allocation6 + $0x3d0] sm:$0xff]
    %v4132 = vld [vmem:[#allocation6 + $0x3d8] sm:$0xff]
    %v4133 = vld [vmem:[#allocation6 + $0x3e0] sm:$0xff]
    %v4134 = vld [vmem:[#allocation6 + $0x3e8] sm:$0xff]
    %v4135 = vld [vmem:[#allocation6 + $0x3f0] sm:$0xff]
    %v4136 = vld [vmem:[#allocation6 + $0x3f8] sm:$0xff]
    %v4137 = vld [vmem:[#allocation6 + $0x400] sm:$0xff]
    %v4138 = vld [vmem:[#allocation6 + $0x408] sm:$0xff]
    %v4139 = vld [vmem:[#allocation6 + $0x410] sm:$0xff]
    %v4140 = vld [vmem:[#allocation6 + $0x418] sm:$0xff]
    %v4141 = vld [vmem:[#allocation6 + $0x420] sm:$0xff]
    %v4142 = vld [vmem:[#allocation6 + $0x428] sm:$0xff]
    %v4143 = vld [vmem:[#allocation6 + $0x430] sm:$0xff]
    %v4144 = vld [vmem:[#allocation6 + $0x438] sm:$0xff]
    %v4145 = vld [vmem:[#allocation6 + $0x440] sm:$0xff]
    %v4146 = vld [vmem:[#allocation6 + $0x448] sm:$0xff]
    %v4147 = vld [vmem:[#allocation6 + $0x450] sm:$0xff]
    %v4148 = vld [vmem:[#allocation6 + $0x458] sm:$0xff]
    %v4149 = vld [vmem:[#allocation6 + $0x460] sm:$0xff]
    %v4150 = vld [vmem:[#allocation6 + $0x468] sm:$0xff]
    %v4151 = vld [vmem:[#allocation6 + $0x470] sm:$0xff]
    %v4152 = vld [vmem:[#allocation6 + $0x478] sm:$0xff]
    %v4153 = vld [vmem:[#allocation6 + $0x480] sm:$0xff]
    %v4154 = vld [vmem:[#allocation6 + $0x488] sm:$0xff]
    %v4155 = vld [vmem:[#allocation6 + $0x490] sm:$0xff]
    %v4156 = vld [vmem:[#allocation6 + $0x498] sm:$0xff]
    %v4157 = vld [vmem:[#allocation6 + $0x4a0] sm:$0xff]
    %v4158 = vld [vmem:[#allocation6 + $0x4a8] sm:$0xff]
    %v4159 = vld [vmem:[#allocation6 + $0x4b0] sm:$0xff]
    %v4160 = vld [vmem:[#allocation6 + $0x4b8] sm:$0xff]
    %v4161 = vld [vmem:[#allocation6 + $0x4c0] sm:$0xff]
    %v4162 = vld [vmem:[#allocation6 + $0x4c8] sm:$0xff]
    %v4163 = vld [vmem:[#allocation6 + $0x4d0] sm:$0xff]
    %v4164 = vld [vmem:[#allocation6 + $0x4d8] sm:$0xff]
    %v4165 = vld [vmem:[#allocation6 + $0x4e0] sm:$0xff]
    %v4166 = vld [vmem:[#allocation6 + $0x4e8] sm:$0xff]
    %v4167 = vld [vmem:[#allocation6 + $0x4f0] sm:$0xff]
    %v4168 = vld [vmem:[#allocation6 + $0x4f8] sm:$0xff]
    %v4169 = vld [vmem:[#allocation6 + $0x500] sm:$0xff]
    %v4170 = vld [vmem:[#allocation6 + $0x508] sm:$0xff]
    %v4171 = vld [vmem:[#allocation6 + $0x510] sm:$0xff]
    %v4172 = vld [vmem:[#allocation6 + $0x518] sm:$0xff]
    %v4173 = vld [vmem:[#allocation6 + $0x520] sm:$0xff]
    %v4174 = vld [vmem:[#allocation6 + $0x528] sm:$0xff]
    %v4175 = vld [vmem:[#allocation6 + $0x530] sm:$0xff]
    %v4176 = vld [vmem:[#allocation6 + $0x538] sm:$0xff]
    %v4177 = vld [vmem:[#allocation6 + $0x540] sm:$0xff]
    %v4178 = vld [vmem:[#allocation6 + $0x548] sm:$0xff]
    %v4179 = vld [vmem:[#allocation6 + $0x550] sm:$0xff]
    %v4180 = vld [vmem:[#allocation6 + $0x558] sm:$0xff]
    %v4181 = vld [vmem:[#allocation6 + $0x560] sm:$0xff]
    %v4182 = vld [vmem:[#allocation6 + $0x568] sm:$0xff]
    %v4183 = vld [vmem:[#allocation6 + $0x570] sm:$0xff]
    %v4184 = vld [vmem:[#allocation6 + $0x578] sm:$0xff]
    %v4185 = vld [vmem:[#allocation6 + $0x580] sm:$0xff]
    %v4186 = vld [vmem:[#allocation6 + $0x588] sm:$0xff]
    %v4187 = vld [vmem:[#allocation6 + $0x590] sm:$0xff]
    %v4188 = vld [vmem:[#allocation6 + $0x598] sm:$0xff]
    %v4189 = vld [vmem:[#allocation6 + $0x5a0] sm:$0xff]
    %v4190 = vld [vmem:[#allocation6 + $0x5a8] sm:$0xff]
    %v4191 = vld [vmem:[#allocation6 + $0x5b0] sm:$0xff]
    %v4192 = vld [vmem:[#allocation6 + $0x5b8] sm:$0xff]
    %v4193 = vld [vmem:[#allocation6 + $0x5c0] sm:$0xff]
    %v4194 = vld [vmem:[#allocation6 + $0x5c8] sm:$0xff]
    %v4195 = vld [vmem:[#allocation6 + $0x5d0] sm:$0xff]
    %v4196 = vld [vmem:[#allocation6 + $0x5d8] sm:$0xff]
    %v4197 = vld [vmem:[#allocation6 + $0x5e0] sm:$0xff]
    %v4198 = vld [vmem:[#allocation6 + $0x5e8] sm:$0xff]
    %v4199 = vld [vmem:[#allocation6 + $0x5f0] sm:$0xff]
    %v4200 = vld [vmem:[#allocation6 + $0x5f8] sm:$0xff]
    %v4201 = vld [vmem:[#allocation6 + $0x600] sm:$0xff]
    %v4202 = vld [vmem:[#allocation6 + $0x608] sm:$0xff]
    %v4203 = vld [vmem:[#allocation6 + $0x610] sm:$0xff]
    %v4204 = vld [vmem:[#allocation6 + $0x618] sm:$0xff]
    %v4205 = vld [vmem:[#allocation6 + $0x620] sm:$0xff]
    %v4206 = vld [vmem:[#allocation6 + $0x628] sm:$0xff]
    %v4207 = vld [vmem:[#allocation6 + $0x630] sm:$0xff]
    %v4208 = vld [vmem:[#allocation6 + $0x638] sm:$0xff]
    %v4209 = vld [vmem:[#allocation6 + $0x640] sm:$0xff]
    %v4210 = vld [vmem:[#allocation6 + $0x648] sm:$0xff]
    %v4211 = vld [vmem:[#allocation6 + $0x650] sm:$0xff]
    %v4212 = vld [vmem:[#allocation6 + $0x658] sm:$0xff]
    %v4213 = vld [vmem:[#allocation6 + $0x660] sm:$0xff]
    %v4214 = vld [vmem:[#allocation6 + $0x668] sm:$0xff]
    %v4215 = vld [vmem:[#allocation6 + $0x670] sm:$0xff]
    %v4216 = vld [vmem:[#allocation6 + $0x678] sm:$0xff]
    %v4217 = vld [vmem:[#allocation6 + $0x680] sm:$0xff]
    %v4218 = vld [vmem:[#allocation6 + $0x688] sm:$0xff]
    %v4219 = vld [vmem:[#allocation6 + $0x690] sm:$0xff]
    %v4220 = vld [vmem:[#allocation6 + $0x698] sm:$0xff]
    %v4221 = vld [vmem:[#allocation6 + $0x6a0] sm:$0xff]
    %v4222 = vld [vmem:[#allocation6 + $0x6a8] sm:$0xff]
    %v4223 = vld [vmem:[#allocation6 + $0x6b0] sm:$0xff]
    %v4224 = vld [vmem:[#allocation6 + $0x6b8] sm:$0xff]
    %v4225 = vld [vmem:[#allocation6 + $0x6c0] sm:$0xff]
    %v4226 = vld [vmem:[#allocation6 + $0x6c8] sm:$0xff]
    %v4227 = vld [vmem:[#allocation6 + $0x6d0] sm:$0xff]
    %v4228 = vld [vmem:[#allocation6 + $0x6d8] sm:$0xff]
    %v4229 = vld [vmem:[#allocation6 + $0x6e0] sm:$0xff]
    %v4230 = vld [vmem:[#allocation6 + $0x6e8] sm:$0xff]
    %v4231 = vld [vmem:[#allocation6 + $0x6f0] sm:$0xff]
    %v4232 = vld [vmem:[#allocation6 + $0x6f8] sm:$0xff]
    %v4233 = vld [vmem:[#allocation6 + $0x700] sm:$0xff]
    %v4234 = vld [vmem:[#allocation6 + $0x708] sm:$0xff]
    %v4235 = vld [vmem:[#allocation6 + $0x710] sm:$0xff]
    %v4236 = vld [vmem:[#allocation6 + $0x718] sm:$0xff]
    %v4237 = vld [vmem:[#allocation6 + $0x720] sm:$0xff]
    %v4238 = vld [vmem:[#allocation6 + $0x728] sm:$0xff]
    %v4239 = vld [vmem:[#allocation6 + $0x730] sm:$0xff]
    %v4240 = vld [vmem:[#allocation6 + $0x738] sm:$0xff]
    %v4241 = vld [vmem:[#allocation6 + $0x740] sm:$0xff]
    %v4242 = vld [vmem:[#allocation6 + $0x748] sm:$0xff]
    %v4243 = vld [vmem:[#allocation6 + $0x750] sm:$0xff]
    %v4244 = vld [vmem:[#allocation6 + $0x758] sm:$0xff]
    %v4245 = vld [vmem:[#allocation6 + $0x760] sm:$0xff]
    %v4246 = vld [vmem:[#allocation6 + $0x768] sm:$0xff]
    %v4247 = vld [vmem:[#allocation6 + $0x770] sm:$0xff]
    %v4248 = vld [vmem:[#allocation6 + $0x778] sm:$0xff]
    %v4249 = vld [vmem:[#allocation6 + $0x780] sm:$0xff]
    %v4250 = vld [vmem:[#allocation6 + $0x788] sm:$0xff]
    %v4251 = vld [vmem:[#allocation6 + $0x790] sm:$0xff]
    %v4252 = vld [vmem:[#allocation6 + $0x798] sm:$0xff]
    %v4253 = vld [vmem:[#allocation6 + $0x7a0] sm:$0xff]
    %v4254 = vld [vmem:[#allocation6 + $0x7a8] sm:$0xff]
    %v4255 = vld [vmem:[#allocation6 + $0x7b0] sm:$0xff]
    %v4256 = vld [vmem:[#allocation6 + $0x7b8] sm:$0xff]
    %v4257 = vld [vmem:[#allocation6 + $0x7c0] sm:$0xff]
    %v4258 = vld [vmem:[#allocation6 + $0x7c8] sm:$0xff]
    %v4259 = vld [vmem:[#allocation6 + $0x7d0] sm:$0xff]
    %v4260 = vld [vmem:[#allocation6 + $0x7d8] sm:$0xff]
    %v4261 = vld [vmem:[#allocation6 + $0x7e0] sm:$0xff]
    %v4262 = vld [vmem:[#allocation6 + $0x7e8] sm:$0xff]
    %v4263 = vld [vmem:[#allocation6 + $0x7f0] sm:$0xff]
    %v4264 = vld [vmem:[#allocation6 + $0x7f8] sm:$0xff]
    %v4265 = vld [vmem:[#allocation7] sm:$0xf]
    %v4267 = vlaneseq
    %v4268 = vshrl.u32 %v4267, 7
    %v4269 = vsub.s32 0, %v4268
    %v4270 = vrot.slane %v4265, %v4269
    %v4271 = vlaneseq
    %v4272 = vshrl.u32 %v4271, 7
    %v4273 = vsub.s32 1, %v4272
    %v4274 = vrot.slane %v4265, %v4273
    %v4275 = vlaneseq
    %v4276 = vshrl.u32 %v4275, 7
    %v4277 = vsub.s32 2, %v4276
    %v4278 = vrot.slane %v4265, %v4277
    %v4279 = vlaneseq
    %v4280 = vshrl.u32 %v4279, 7
    %v4281 = vsub.s32 3, %v4280
    %v4282 = vrot.slane %v4265, %v4281
    %v4543 = vunpack.c.l.b16 %v4009
    %v4544 = vunpack.c.h.b16 %v4009
    %v4545 = vunpack.c.l.b16 %v4010
    %v4546 = vunpack.c.h.b16 %v4010
    %v4547 = vunpack.c.l.b16 %v4011
    %v4548 = vunpack.c.h.b16 %v4011
    %v4549 = vunpack.c.l.b16 %v4012
    %v4550 = vunpack.c.h.b16 %v4012
    %v4551 = vunpack.c.l.b16 %v4013
    %v4552 = vunpack.c.h.b16 %v4013
    %v4553 = vunpack.c.l.b16 %v4014
    %v4554 = vunpack.c.h.b16 %v4014
    %v4555 = vunpack.c.l.b16 %v4015
    %v4556 = vunpack.c.h.b16 %v4015
    %v4557 = vunpack.c.l.b16 %v4016
    %v4558 = vunpack.c.h.b16 %v4016
    %v4559 = vunpack.c.l.b16 %v4017
    %v4560 = vunpack.c.h.b16 %v4017
    %v4561 = vunpack.c.l.b16 %v4018
    %v4562 = vunpack.c.h.b16 %v4018
    %v4563 = vunpack.c.l.b16 %v4019
    %v4564 = vunpack.c.h.b16 %v4019
    %v4565 = vunpack.c.l.b16 %v4020
    %v4566 = vunpack.c.h.b16 %v4020
    %v4567 = vunpack.c.l.b16 %v4021
    %v4568 = vunpack.c.h.b16 %v4021
    %v4569 = vunpack.c.l.b16 %v4022
    %v4570 = vunpack.c.h.b16 %v4022
    %v4571 = vunpack.c.l.b16 %v4023
    %v4572 = vunpack.c.h.b16 %v4023
    %v4573 = vunpack.c.l.b16 %v4024
    %v4574 = vunpack.c.h.b16 %v4024
    %v4575 = vunpack.c.l.b16 %v4025
    %v4576 = vunpack.c.h.b16 %v4025
    %v4577 = vunpack.c.l.b16 %v4026
    %v4578 = vunpack.c.h.b16 %v4026
    %v4579 = vunpack.c.l.b16 %v4027
    %v4580 = vunpack.c.h.b16 %v4027
    %v4581 = vunpack.c.l.b16 %v4028
    %v4582 = vunpack.c.h.b16 %v4028
    %v4583 = vunpack.c.l.b16 %v4029
    %v4584 = vunpack.c.h.b16 %v4029
    %v4585 = vunpack.c.l.b16 %v4030
    %v4586 = vunpack.c.h.b16 %v4030
    %v4587 = vunpack.c.l.b16 %v4031
    %v4588 = vunpack.c.h.b16 %v4031
    %v4589 = vunpack.c.l.b16 %v4032
    %v4590 = vunpack.c.h.b16 %v4032
    %v4591 = vunpack.c.l.b16 %v4033
    %v4592 = vunpack.c.h.b16 %v4033
    %v4593 = vunpack.c.l.b16 %v4034
    %v4594 = vunpack.c.h.b16 %v4034
    %v4595 = vunpack.c.l.b16 %v4035
    %v4596 = vunpack.c.h.b16 %v4035
    %v4597 = vunpack.c.l.b16 %v4036
    %v4598 = vunpack.c.h.b16 %v4036
    %v4599 = vunpack.c.l.b16 %v4037
    %v4600 = vunpack.c.h.b16 %v4037
    %v4601 = vunpack.c.l.b16 %v4038
    %v4602 = vunpack.c.h.b16 %v4038
    %v4603 = vunpack.c.l.b16 %v4039
    %v4604 = vunpack.c.h.b16 %v4039
    %v4605 = vunpack.c.l.b16 %v4040
    %v4606 = vunpack.c.h.b16 %v4040
    %v4607 = vunpack.c.l.b16 %v4041
    %v4608 = vunpack.c.h.b16 %v4041
    %v4609 = vunpack.c.l.b16 %v4042
    %v4610 = vunpack.c.h.b16 %v4042
    %v4611 = vunpack.c.l.b16 %v4043
    %v4612 = vunpack.c.h.b16 %v4043
    %v4613 = vunpack.c.l.b16 %v4044
    %v4614 = vunpack.c.h.b16 %v4044
    %v4615 = vunpack.c.l.b16 %v4045
    %v4616 = vunpack.c.h.b16 %v4045
    %v4617 = vunpack.c.l.b16 %v4046
    %v4618 = vunpack.c.h.b16 %v4046
    %v4619 = vunpack.c.l.b16 %v4047
    %v4620 = vunpack.c.h.b16 %v4047
    %v4621 = vunpack.c.l.b16 %v4048
    %v4622 = vunpack.c.h.b16 %v4048
    %v4623 = vunpack.c.l.b16 %v4049
    %v4624 = vunpack.c.h.b16 %v4049
    %v4625 = vunpack.c.l.b16 %v4050
    %v4626 = vunpack.c.h.b16 %v4050
    %v4627 = vunpack.c.l.b16 %v4051
    %v4628 = vunpack.c.h.b16 %v4051
    %v4629 = vunpack.c.l.b16 %v4052
    %v4630 = vunpack.c.h.b16 %v4052
    %v4631 = vunpack.c.l.b16 %v4053
    %v4632 = vunpack.c.h.b16 %v4053
    %v4633 = vunpack.c.l.b16 %v4054
    %v4634 = vunpack.c.h.b16 %v4054
    %v4635 = vunpack.c.l.b16 %v4055
    %v4636 = vunpack.c.h.b16 %v4055
    %v4637 = vunpack.c.l.b16 %v4056
    %v4638 = vunpack.c.h.b16 %v4056
    %v4639 = vunpack.c.l.b16 %v4057
    %v4640 = vunpack.c.h.b16 %v4057
    %v4641 = vunpack.c.l.b16 %v4058
    %v4642 = vunpack.c.h.b16 %v4058
    %v4643 = vunpack.c.l.b16 %v4059
    %v4644 = vunpack.c.h.b16 %v4059
    %v4645 = vunpack.c.l.b16 %v4060
    %v4646 = vunpack.c.h.b16 %v4060
    %v4647 = vunpack.c.l.b16 %v4061
    %v4648 = vunpack.c.h.b16 %v4061
    %v4649 = vunpack.c.l.b16 %v4062
    %v4650 = vunpack.c.h.b16 %v4062
    %v4651 = vunpack.c.l.b16 %v4063
    %v4652 = vunpack.c.h.b16 %v4063
    %v4653 = vunpack.c.l.b16 %v4064
    %v4654 = vunpack.c.h.b16 %v4064
    %v4655 = vunpack.c.l.b16 %v4065
    %v4656 = vunpack.c.h.b16 %v4065
    %v4657 = vunpack.c.l.b16 %v4066
    %v4658 = vunpack.c.h.b16 %v4066
    %v4659 = vunpack.c.l.b16 %v4067
    %v4660 = vunpack.c.h.b16 %v4067
    %v4661 = vunpack.c.l.b16 %v4068
    %v4662 = vunpack.c.h.b16 %v4068
    %v4663 = vunpack.c.l.b16 %v4069
    %v4664 = vunpack.c.h.b16 %v4069
    %v4665 = vunpack.c.l.b16 %v4070
    %v4666 = vunpack.c.h.b16 %v4070
    %v4667 = vunpack.c.l.b16 %v4071
    %v4668 = vunpack.c.h.b16 %v4071
    %v4669 = vunpack.c.l.b16 %v4072
    %v4670 = vunpack.c.h.b16 %v4072
    %v4671 = vunpack.c.l.b16 %v4073
    %v4672 = vunpack.c.h.b16 %v4073
    %v4673 = vunpack.c.l.b16 %v4074
    %v4674 = vunpack.c.h.b16 %v4074
    %v4675 = vunpack.c.l.b16 %v4075
    %v4676 = vunpack.c.h.b16 %v4075
    %v4677 = vunpack.c.l.b16 %v4076
    %v4678 = vunpack.c.h.b16 %v4076
    %v4679 = vunpack.c.l.b16 %v4077
    %v4680 = vunpack.c.h.b16 %v4077
    %v4681 = vunpack.c.l.b16 %v4078
    %v4682 = vunpack.c.h.b16 %v4078
    %v4683 = vunpack.c.l.b16 %v4079
    %v4684 = vunpack.c.h.b16 %v4079
    %v4685 = vunpack.c.l.b16 %v4080
    %v4686 = vunpack.c.h.b16 %v4080
    %v4687 = vunpack.c.l.b16 %v4081
    %v4688 = vunpack.c.h.b16 %v4081
    %v4689 = vunpack.c.l.b16 %v4082
    %v4690 = vunpack.c.h.b16 %v4082
    %v4691 = vunpack.c.l.b16 %v4083
    %v4692 = vunpack.c.h.b16 %v4083
    %v4693 = vunpack.c.l.b16 %v4084
    %v4694 = vunpack.c.h.b16 %v4084
    %v4695 = vunpack.c.l.b16 %v4085
    %v4696 = vunpack.c.h.b16 %v4085
    %v4697 = vunpack.c.l.b16 %v4086
    %v4698 = vunpack.c.h.b16 %v4086
    %v4699 = vunpack.c.l.b16 %v4087
    %v4700 = vunpack.c.h.b16 %v4087
    %v4701 = vunpack.c.l.b16 %v4088
    %v4702 = vunpack.c.h.b16 %v4088
    %v4703 = vunpack.c.l.b16 %v4089
    %v4704 = vunpack.c.h.b16 %v4089
    %v4705 = vunpack.c.l.b16 %v4090
    %v4706 = vunpack.c.h.b16 %v4090
    %v4707 = vunpack.c.l.b16 %v4091
    %v4708 = vunpack.c.h.b16 %v4091
    %v4709 = vunpack.c.l.b16 %v4092
    %v4710 = vunpack.c.h.b16 %v4092
    %v4711 = vunpack.c.l.b16 %v4093
    %v4712 = vunpack.c.h.b16 %v4093
    %v4713 = vunpack.c.l.b16 %v4094
    %v4714 = vunpack.c.h.b16 %v4094
    %v4715 = vunpack.c.l.b16 %v4095
    %v4716 = vunpack.c.h.b16 %v4095
    %v4717 = vunpack.c.l.b16 %v4096
    %v4718 = vunpack.c.h.b16 %v4096
    %v4719 = vunpack.c.l.b16 %v4097
    %v4720 = vunpack.c.h.b16 %v4097
    %v4721 = vunpack.c.l.b16 %v4098
    %v4722 = vunpack.c.h.b16 %v4098
    %v4723 = vunpack.c.l.b16 %v4099
    %v4724 = vunpack.c.h.b16 %v4099
    %v4725 = vunpack.c.l.b16 %v4100
    %v4726 = vunpack.c.h.b16 %v4100
    %v4727 = vunpack.c.l.b16 %v4101
    %v4728 = vunpack.c.h.b16 %v4101
    %v4729 = vunpack.c.l.b16 %v4102
    %v4730 = vunpack.c.h.b16 %v4102
    %v4731 = vunpack.c.l.b16 %v4103
    %v4732 = vunpack.c.h.b16 %v4103
    %v4733 = vunpack.c.l.b16 %v4104
    %v4734 = vunpack.c.h.b16 %v4104
    %v4735 = vunpack.c.l.b16 %v4105
    %v4736 = vunpack.c.h.b16 %v4105
    %v4737 = vunpack.c.l.b16 %v4106
    %v4738 = vunpack.c.h.b16 %v4106
    %v4739 = vunpack.c.l.b16 %v4107
    %v4740 = vunpack.c.h.b16 %v4107
    %v4741 = vunpack.c.l.b16 %v4108
    %v4742 = vunpack.c.h.b16 %v4108
    %v4743 = vunpack.c.l.b16 %v4109
    %v4744 = vunpack.c.h.b16 %v4109
    %v4745 = vunpack.c.l.b16 %v4110
    %v4746 = vunpack.c.h.b16 %v4110
    %v4747 = vunpack.c.l.b16 %v4111
    %v4748 = vunpack.c.h.b16 %v4111
    %v4749 = vunpack.c.l.b16 %v4112
    %v4750 = vunpack.c.h.b16 %v4112
    %v4751 = vunpack.c.l.b16 %v4113
    %v4752 = vunpack.c.h.b16 %v4113
    %v4753 = vunpack.c.l.b16 %v4114
    %v4754 = vunpack.c.h.b16 %v4114
    %v4755 = vunpack.c.l.b16 %v4115
    %v4756 = vunpack.c.h.b16 %v4115
    %v4757 = vunpack.c.l.b16 %v4116
    %v4758 = vunpack.c.h.b16 %v4116
    %v4759 = vunpack.c.l.b16 %v4117
    %v4760 = vunpack.c.h.b16 %v4117
    %v4761 = vunpack.c.l.b16 %v4118
    %v4762 = vunpack.c.h.b16 %v4118
    %v4763 = vunpack.c.l.b16 %v4119
    %v4764 = vunpack.c.h.b16 %v4119
    %v4765 = vunpack.c.l.b16 %v4120
    %v4766 = vunpack.c.h.b16 %v4120
    %v4767 = vunpack.c.l.b16 %v4121
    %v4768 = vunpack.c.h.b16 %v4121
    %v4769 = vunpack.c.l.b16 %v4122
    %v4770 = vunpack.c.h.b16 %v4122
    %v4771 = vunpack.c.l.b16 %v4123
    %v4772 = vunpack.c.h.b16 %v4123
    %v4773 = vunpack.c.l.b16 %v4124
    %v4774 = vunpack.c.h.b16 %v4124
    %v4775 = vunpack.c.l.b16 %v4125
    %v4776 = vunpack.c.h.b16 %v4125
    %v4777 = vunpack.c.l.b16 %v4126
    %v4778 = vunpack.c.h.b16 %v4126
    %v4779 = vunpack.c.l.b16 %v4127
    %v4780 = vunpack.c.h.b16 %v4127
    %v4781 = vunpack.c.l.b16 %v4128
    %v4782 = vunpack.c.h.b16 %v4128
    %v4783 = vunpack.c.l.b16 %v4129
    %v4784 = vunpack.c.h.b16 %v4129
    %v4785 = vunpack.c.l.b16 %v4130
    %v4786 = vunpack.c.h.b16 %v4130
    %v4787 = vunpack.c.l.b16 %v4131
    %v4788 = vunpack.c.h.b16 %v4131
    %v4789 = vunpack.c.l.b16 %v4132
    %v4790 = vunpack.c.h.b16 %v4132
    %v4791 = vunpack.c.l.b16 %v4133
    %v4792 = vunpack.c.h.b16 %v4133
    %v4793 = vunpack.c.l.b16 %v4134
    %v4794 = vunpack.c.h.b16 %v4134
    %v4795 = vunpack.c.l.b16 %v4135
    %v4796 = vunpack.c.h.b16 %v4135
    %v4797 = vunpack.c.l.b16 %v4136
    %v4798 = vunpack.c.h.b16 %v4136
    %v4799 = vunpack.c.l.b16 %v4137
    %v4800 = vunpack.c.h.b16 %v4137
    %v4801 = vunpack.c.l.b16 %v4138
    %v4802 = vunpack.c.h.b16 %v4138
    %v4803 = vunpack.c.l.b16 %v4139
    %v4804 = vunpack.c.h.b16 %v4139
    %v4805 = vunpack.c.l.b16 %v4140
    %v4806 = vunpack.c.h.b16 %v4140
    %v4807 = vunpack.c.l.b16 %v4141
    %v4808 = vunpack.c.h.b16 %v4141
    %v4809 = vunpack.c.l.b16 %v4142
    %v4810 = vunpack.c.h.b16 %v4142
    %v4811 = vunpack.c.l.b16 %v4143
    %v4812 = vunpack.c.h.b16 %v4143
    %v4813 = vunpack.c.l.b16 %v4144
    %v4814 = vunpack.c.h.b16 %v4144
    %v4815 = vunpack.c.l.b16 %v4145
    %v4816 = vunpack.c.h.b16 %v4145
    %v4817 = vunpack.c.l.b16 %v4146
    %v4818 = vunpack.c.h.b16 %v4146
    %v4819 = vunpack.c.l.b16 %v4147
    %v4820 = vunpack.c.h.b16 %v4147
    %v4821 = vunpack.c.l.b16 %v4148
    %v4822 = vunpack.c.h.b16 %v4148
    %v4823 = vunpack.c.l.b16 %v4149
    %v4824 = vunpack.c.h.b16 %v4149
    %v4825 = vunpack.c.l.b16 %v4150
    %v4826 = vunpack.c.h.b16 %v4150
    %v4827 = vunpack.c.l.b16 %v4151
    %v4828 = vunpack.c.h.b16 %v4151
    %v4829 = vunpack.c.l.b16 %v4152
    %v4830 = vunpack.c.h.b16 %v4152
    %v4831 = vunpack.c.l.b16 %v4153
    %v4832 = vunpack.c.h.b16 %v4153
    %v4833 = vunpack.c.l.b16 %v4154
    %v4834 = vunpack.c.h.b16 %v4154
    %v4835 = vunpack.c.l.b16 %v4155
    %v4836 = vunpack.c.h.b16 %v4155
    %v4837 = vunpack.c.l.b16 %v4156
    %v4838 = vunpack.c.h.b16 %v4156
    %v4839 = vunpack.c.l.b16 %v4157
    %v4840 = vunpack.c.h.b16 %v4157
    %v4841 = vunpack.c.l.b16 %v4158
    %v4842 = vunpack.c.h.b16 %v4158
    %v4843 = vunpack.c.l.b16 %v4159
    %v4844 = vunpack.c.h.b16 %v4159
    %v4845 = vunpack.c.l.b16 %v4160
    %v4846 = vunpack.c.h.b16 %v4160
    %v4847 = vunpack.c.l.b16 %v4161
    %v4848 = vunpack.c.h.b16 %v4161
    %v4849 = vunpack.c.l.b16 %v4162
    %v4850 = vunpack.c.h.b16 %v4162
    %v4851 = vunpack.c.l.b16 %v4163
    %v4852 = vunpack.c.h.b16 %v4163
    %v4853 = vunpack.c.l.b16 %v4164
    %v4854 = vunpack.c.h.b16 %v4164
    %v4855 = vunpack.c.l.b16 %v4165
    %v4856 = vunpack.c.h.b16 %v4165
    %v4857 = vunpack.c.l.b16 %v4166
    %v4858 = vunpack.c.h.b16 %v4166
    %v4859 = vunpack.c.l.b16 %v4167
    %v4860 = vunpack.c.h.b16 %v4167
    %v4861 = vunpack.c.l.b16 %v4168
    %v4862 = vunpack.c.h.b16 %v4168
    %v4863 = vunpack.c.l.b16 %v4169
    %v4864 = vunpack.c.h.b16 %v4169
    %v4865 = vunpack.c.l.b16 %v4170
    %v4866 = vunpack.c.h.b16 %v4170
    %v4867 = vunpack.c.l.b16 %v4171
    %v4868 = vunpack.c.h.b16 %v4171
    %v4869 = vunpack.c.l.b16 %v4172
    %v4870 = vunpack.c.h.b16 %v4172
    %v4871 = vunpack.c.l.b16 %v4173
    %v4872 = vunpack.c.h.b16 %v4173
    %v4873 = vunpack.c.l.b16 %v4174
    %v4874 = vunpack.c.h.b16 %v4174
    %v4875 = vunpack.c.l.b16 %v4175
    %v4876 = vunpack.c.h.b16 %v4175
    %v4877 = vunpack.c.l.b16 %v4176
    %v4878 = vunpack.c.h.b16 %v4176
    %v4879 = vunpack.c.l.b16 %v4177
    %v4880 = vunpack.c.h.b16 %v4177
    %v4881 = vunpack.c.l.b16 %v4178
    %v4882 = vunpack.c.h.b16 %v4178
    %v4883 = vunpack.c.l.b16 %v4179
    %v4884 = vunpack.c.h.b16 %v4179
    %v4885 = vunpack.c.l.b16 %v4180
    %v4886 = vunpack.c.h.b16 %v4180
    %v4887 = vunpack.c.l.b16 %v4181
    %v4888 = vunpack.c.h.b16 %v4181
    %v4889 = vunpack.c.l.b16 %v4182
    %v4890 = vunpack.c.h.b16 %v4182
    %v4891 = vunpack.c.l.b16 %v4183
    %v4892 = vunpack.c.h.b16 %v4183
    %v4893 = vunpack.c.l.b16 %v4184
    %v4894 = vunpack.c.h.b16 %v4184
    %v4895 = vunpack.c.l.b16 %v4185
    %v4896 = vunpack.c.h.b16 %v4185
    %v4897 = vunpack.c.l.b16 %v4186
    %v4898 = vunpack.c.h.b16 %v4186
    %v4899 = vunpack.c.l.b16 %v4187
    %v4900 = vunpack.c.h.b16 %v4187
    %v4901 = vunpack.c.l.b16 %v4188
    %v4902 = vunpack.c.h.b16 %v4188
    %v4903 = vunpack.c.l.b16 %v4189
    %v4904 = vunpack.c.h.b16 %v4189
    %v4905 = vunpack.c.l.b16 %v4190
    %v4906 = vunpack.c.h.b16 %v4190
    %v4907 = vunpack.c.l.b16 %v4191
    %v4908 = vunpack.c.h.b16 %v4191
    %v4909 = vunpack.c.l.b16 %v4192
    %v4910 = vunpack.c.h.b16 %v4192
    %v4911 = vunpack.c.l.b16 %v4193
    %v4912 = vunpack.c.h.b16 %v4193
    %v4913 = vunpack.c.l.b16 %v4194
    %v4914 = vunpack.c.h.b16 %v4194
    %v4915 = vunpack.c.l.b16 %v4195
    %v4916 = vunpack.c.h.b16 %v4195
    %v4917 = vunpack.c.l.b16 %v4196
    %v4918 = vunpack.c.h.b16 %v4196
    %v4919 = vunpack.c.l.b16 %v4197
    %v4920 = vunpack.c.h.b16 %v4197
    %v4921 = vunpack.c.l.b16 %v4198
    %v4922 = vunpack.c.h.b16 %v4198
    %v4923 = vunpack.c.l.b16 %v4199
    %v4924 = vunpack.c.h.b16 %v4199
    %v4925 = vunpack.c.l.b16 %v4200
    %v4926 = vunpack.c.h.b16 %v4200
    %v4927 = vunpack.c.l.b16 %v4201
    %v4928 = vunpack.c.h.b16 %v4201
    %v4929 = vunpack.c.l.b16 %v4202
    %v4930 = vunpack.c.h.b16 %v4202
    %v4931 = vunpack.c.l.b16 %v4203
    %v4932 = vunpack.c.h.b16 %v4203
    %v4933 = vunpack.c.l.b16 %v4204
    %v4934 = vunpack.c.h.b16 %v4204
    %v4935 = vunpack.c.l.b16 %v4205
    %v4936 = vunpack.c.h.b16 %v4205
    %v4937 = vunpack.c.l.b16 %v4206
    %v4938 = vunpack.c.h.b16 %v4206
    %v4939 = vunpack.c.l.b16 %v4207
    %v4940 = vunpack.c.h.b16 %v4207
    %v4941 = vunpack.c.l.b16 %v4208
    %v4942 = vunpack.c.h.b16 %v4208
    %v4943 = vunpack.c.l.b16 %v4209
    %v4944 = vunpack.c.h.b16 %v4209
    %v4945 = vunpack.c.l.b16 %v4210
    %v4946 = vunpack.c.h.b16 %v4210
    %v4947 = vunpack.c.l.b16 %v4211
    %v4948 = vunpack.c.h.b16 %v4211
    %v4949 = vunpack.c.l.b16 %v4212
    %v4950 = vunpack.c.h.b16 %v4212
    %v4951 = vunpack.c.l.b16 %v4213
    %v4952 = vunpack.c.h.b16 %v4213
    %v4953 = vunpack.c.l.b16 %v4214
    %v4954 = vunpack.c.h.b16 %v4214
    %v4955 = vunpack.c.l.b16 %v4215
    %v4956 = vunpack.c.h.b16 %v4215
    %v4957 = vunpack.c.l.b16 %v4216
    %v4958 = vunpack.c.h.b16 %v4216
    %v4959 = vunpack.c.l.b16 %v4217
    %v4960 = vunpack.c.h.b16 %v4217
    %v4961 = vunpack.c.l.b16 %v4218
    %v4962 = vunpack.c.h.b16 %v4218
    %v4963 = vunpack.c.l.b16 %v4219
    %v4964 = vunpack.c.h.b16 %v4219
    %v4965 = vunpack.c.l.b16 %v4220
    %v4966 = vunpack.c.h.b16 %v4220
    %v4967 = vunpack.c.l.b16 %v4221
    %v4968 = vunpack.c.h.b16 %v4221
    %v4969 = vunpack.c.l.b16 %v4222
    %v4970 = vunpack.c.h.b16 %v4222
    %v4971 = vunpack.c.l.b16 %v4223
    %v4972 = vunpack.c.h.b16 %v4223
    %v4973 = vunpack.c.l.b16 %v4224
    %v4974 = vunpack.c.h.b16 %v4224
    %v4975 = vunpack.c.l.b16 %v4225
    %v4976 = vunpack.c.h.b16 %v4225
    %v4977 = vunpack.c.l.b16 %v4226
    %v4978 = vunpack.c.h.b16 %v4226
    %v4979 = vunpack.c.l.b16 %v4227
    %v4980 = vunpack.c.h.b16 %v4227
    %v4981 = vunpack.c.l.b16 %v4228
    %v4982 = vunpack.c.h.b16 %v4228
    %v4983 = vunpack.c.l.b16 %v4229
    %v4984 = vunpack.c.h.b16 %v4229
    %v4985 = vunpack.c.l.b16 %v4230
    %v4986 = vunpack.c.h.b16 %v4230
    %v4987 = vunpack.c.l.b16 %v4231
    %v4988 = vunpack.c.h.b16 %v4231
    %v4989 = vunpack.c.l.b16 %v4232
    %v4990 = vunpack.c.h.b16 %v4232
    %v4991 = vunpack.c.l.b16 %v4233
    %v4992 = vunpack.c.h.b16 %v4233
    %v4993 = vunpack.c.l.b16 %v4234
    %v4994 = vunpack.c.h.b16 %v4234
    %v4995 = vunpack.c.l.b16 %v4235
    %v4996 = vunpack.c.h.b16 %v4235
    %v4997 = vunpack.c.l.b16 %v4236
    %v4998 = vunpack.c.h.b16 %v4236
    %v4999 = vunpack.c.l.b16 %v4237
    %v5000 = vunpack.c.h.b16 %v4237
    %v5001 = vunpack.c.l.b16 %v4238
    %v5002 = vunpack.c.h.b16 %v4238
    %v5003 = vunpack.c.l.b16 %v4239
    %v5004 = vunpack.c.h.b16 %v4239
    %v5005 = vunpack.c.l.b16 %v4240
    %v5006 = vunpack.c.h.b16 %v4240
    %v5007 = vunpack.c.l.b16 %v4241
    %v5008 = vunpack.c.h.b16 %v4241
    %v5009 = vunpack.c.l.b16 %v4242
    %v5010 = vunpack.c.h.b16 %v4242
    %v5011 = vunpack.c.l.b16 %v4243
    %v5012 = vunpack.c.h.b16 %v4243
    %v5013 = vunpack.c.l.b16 %v4244
    %v5014 = vunpack.c.h.b16 %v4244
    %v5015 = vunpack.c.l.b16 %v4245
    %v5016 = vunpack.c.h.b16 %v4245
    %v5017 = vunpack.c.l.b16 %v4246
    %v5018 = vunpack.c.h.b16 %v4246
    %v5019 = vunpack.c.l.b16 %v4247
    %v5020 = vunpack.c.h.b16 %v4247
    %v5021 = vunpack.c.l.b16 %v4248
    %v5022 = vunpack.c.h.b16 %v4248
    %v5023 = vunpack.c.l.b16 %v4249
    %v5024 = vunpack.c.h.b16 %v4249
    %v5025 = vunpack.c.l.b16 %v4250
    %v5026 = vunpack.c.h.b16 %v4250
    %v5027 = vunpack.c.l.b16 %v4251
    %v5028 = vunpack.c.h.b16 %v4251
    %v5029 = vunpack.c.l.b16 %v4252
    %v5030 = vunpack.c.h.b16 %v4252
    %v5031 = vunpack.c.l.b16 %v4253
    %v5032 = vunpack.c.h.b16 %v4253
    %v5033 = vunpack.c.l.b16 %v4254
    %v5034 = vunpack.c.h.b16 %v4254
    %v5035 = vunpack.c.l.b16 %v4255
    %v5036 = vunpack.c.h.b16 %v4255
    %v5037 = vunpack.c.l.b16 %v4256
    %v5038 = vunpack.c.h.b16 %v4256
    %v5039 = vunpack.c.l.b16 %v4257
    %v5040 = vunpack.c.h.b16 %v4257
    %v5041 = vunpack.c.l.b16 %v4258
    %v5042 = vunpack.c.h.b16 %v4258
    %v5043 = vunpack.c.l.b16 %v4259
    %v5044 = vunpack.c.h.b16 %v4259
    %v5045 = vunpack.c.l.b16 %v4260
    %v5046 = vunpack.c.h.b16 %v4260
    %v5047 = vunpack.c.l.b16 %v4261
    %v5048 = vunpack.c.h.b16 %v4261
    %v5049 = vunpack.c.l.b16 %v4262
    %v5050 = vunpack.c.h.b16 %v4262
    %v5051 = vunpack.c.l.b16 %v4263
    %v5052 = vunpack.c.h.b16 %v4263
    %v5053 = vunpack.c.l.b16 %v4264
    %v5054 = vunpack.c.h.b16 %v4264
    %v5055 = vpack.c.b16 %v4547, %v4543
    %v5056 = vpack.c.b16 %v4548, %v4544
    %v5057 = vpack.c.b16 %v4549, %v4545
    %v5058 = vpack.c.b16 %v4550, %v4546
    %v5059 = vpack.c.b16 %v4555, %v4551
    %v5060 = vpack.c.b16 %v4556, %v4552
    %v5061 = vpack.c.b16 %v4557, %v4553
    %v5062 = vpack.c.b16 %v4558, %v4554
    %v5063 = vpack.c.b16 %v4563, %v4559
    %v5064 = vpack.c.b16 %v4564, %v4560
    %v5065 = vpack.c.b16 %v4565, %v4561
    %v5066 = vpack.c.b16 %v4566, %v4562
    %v5067 = vpack.c.b16 %v4571, %v4567
    %v5068 = vpack.c.b16 %v4572, %v4568
    %v5069 = vpack.c.b16 %v4573, %v4569
    %v5070 = vpack.c.b16 %v4574, %v4570
    %v5071 = vpack.c.b16 %v4579, %v4575
    %v5072 = vpack.c.b16 %v4580, %v4576
    %v5073 = vpack.c.b16 %v4581, %v4577
    %v5074 = vpack.c.b16 %v4582, %v4578
    %v5075 = vpack.c.b16 %v4587, %v4583
    %v5076 = vpack.c.b16 %v4588, %v4584
    %v5077 = vpack.c.b16 %v4589, %v4585
    %v5078 = vpack.c.b16 %v4590, %v4586
    %v5079 = vpack.c.b16 %v4595, %v4591
    %v5080 = vpack.c.b16 %v4596, %v4592
    %v5081 = vpack.c.b16 %v4597, %v4593
    %v5082 = vpack.c.b16 %v4598, %v4594
    %v5083 = vpack.c.b16 %v4603, %v4599
    %v5084 = vpack.c.b16 %v4604, %v4600
    %v5085 = vpack.c.b16 %v4605, %v4601
    %v5086 = vpack.c.b16 %v4606, %v4602
    %v5087 = vpack.c.b16 %v4611, %v4607
    %v5088 = vpack.c.b16 %v4612, %v4608
    %v5089 = vpack.c.b16 %v4613, %v4609
    %v5090 = vpack.c.b16 %v4614, %v4610
    %v5091 = vpack.c.b16 %v4619, %v4615
    %v5092 = vpack.c.b16 %v4620, %v4616
    %v5093 = vpack.c.b16 %v4621, %v4617
    %v5094 = vpack.c.b16 %v4622, %v4618
    %v5095 = vpack.c.b16 %v4627, %v4623
    %v5096 = vpack.c.b16 %v4628, %v4624
    %v5097 = vpack.c.b16 %v4629, %v4625
    %v5098 = vpack.c.b16 %v4630, %v4626
    %v5099 = vpack.c.b16 %v4635, %v4631
    %v5100 = vpack.c.b16 %v4636, %v4632
    %v5101 = vpack.c.b16 %v4637, %v4633
    %v5102 = vpack.c.b16 %v4638, %v4634
    %v5103 = vpack.c.b16 %v4643, %v4639
    %v5104 = vpack.c.b16 %v4644, %v4640
    %v5105 = vpack.c.b16 %v4645, %v4641
    %v5106 = vpack.c.b16 %v4646, %v4642
    %v5107 = vpack.c.b16 %v4651, %v4647
    %v5108 = vpack.c.b16 %v4652, %v4648
    %v5109 = vpack.c.b16 %v4653, %v4649
    %v5110 = vpack.c.b16 %v4654, %v4650
    %v5111 = vpack.c.b16 %v4659, %v4655
    %v5112 = vpack.c.b16 %v4660, %v4656
    %v5113 = vpack.c.b16 %v4661, %v4657
    %v5114 = vpack.c.b16 %v4662, %v4658
    %v5115 = vpack.c.b16 %v4667, %v4663
    %v5116 = vpack.c.b16 %v4668, %v4664
    %v5117 = vpack.c.b16 %v4669, %v4665
    %v5118 = vpack.c.b16 %v4670, %v4666
    %v5119 = vpack.c.b16 %v4675, %v4671
    %v5120 = vpack.c.b16 %v4676, %v4672
    %v5121 = vpack.c.b16 %v4677, %v4673
    %v5122 = vpack.c.b16 %v4678, %v4674
    %v5123 = vpack.c.b16 %v4683, %v4679
    %v5124 = vpack.c.b16 %v4684, %v4680
    %v5125 = vpack.c.b16 %v4685, %v4681
    %v5126 = vpack.c.b16 %v4686, %v4682
    %v5127 = vpack.c.b16 %v4691, %v4687
    %v5128 = vpack.c.b16 %v4692, %v4688
    %v5129 = vpack.c.b16 %v4693, %v4689
    %v5130 = vpack.c.b16 %v4694, %v4690
    %v5131 = vpack.c.b16 %v4699, %v4695
    %v5132 = vpack.c.b16 %v4700, %v4696
    %v5133 = vpack.c.b16 %v4701, %v4697
    %v5134 = vpack.c.b16 %v4702, %v4698
    %v5135 = vpack.c.b16 %v4707, %v4703
    %v5136 = vpack.c.b16 %v4708, %v4704
    %v5137 = vpack.c.b16 %v4709, %v4705
    %v5138 = vpack.c.b16 %v4710, %v4706
    %v5139 = vpack.c.b16 %v4715, %v4711
    %v5140 = vpack.c.b16 %v4716, %v4712
    %v5141 = vpack.c.b16 %v4717, %v4713
    %v5142 = vpack.c.b16 %v4718, %v4714
    %v5143 = vpack.c.b16 %v4723, %v4719
    %v5144 = vpack.c.b16 %v4724, %v4720
    %v5145 = vpack.c.b16 %v4725, %v4721
    %v5146 = vpack.c.b16 %v4726, %v4722
    %v5147 = vpack.c.b16 %v4731, %v4727
    %v5148 = vpack.c.b16 %v4732, %v4728
    %v5149 = vpack.c.b16 %v4733, %v4729
    %v5150 = vpack.c.b16 %v4734, %v4730
    %v5151 = vpack.c.b16 %v4739, %v4735
    %v5152 = vpack.c.b16 %v4740, %v4736
    %v5153 = vpack.c.b16 %v4741, %v4737
    %v5154 = vpack.c.b16 %v4742, %v4738
    %v5155 = vpack.c.b16 %v4747, %v4743
    %v5156 = vpack.c.b16 %v4748, %v4744
    %v5157 = vpack.c.b16 %v4749, %v4745
    %v5158 = vpack.c.b16 %v4750, %v4746
    %v5159 = vpack.c.b16 %v4755, %v4751
    %v5160 = vpack.c.b16 %v4756, %v4752
    %v5161 = vpack.c.b16 %v4757, %v4753
    %v5162 = vpack.c.b16 %v4758, %v4754
    %v5163 = vpack.c.b16 %v4763, %v4759
    %v5164 = vpack.c.b16 %v4764, %v4760
    %v5165 = vpack.c.b16 %v4765, %v4761
    %v5166 = vpack.c.b16 %v4766, %v4762
    %v5167 = vpack.c.b16 %v4771, %v4767
    %v5168 = vpack.c.b16 %v4772, %v4768
    %v5169 = vpack.c.b16 %v4773, %v4769
    %v5170 = vpack.c.b16 %v4774, %v4770
    %v5171 = vpack.c.b16 %v4779, %v4775
    %v5172 = vpack.c.b16 %v4780, %v4776
    %v5173 = vpack.c.b16 %v4781, %v4777
    %v5174 = vpack.c.b16 %v4782, %v4778
    %v5175 = vpack.c.b16 %v4787, %v4783
    %v5176 = vpack.c.b16 %v4788, %v4784
    %v5177 = vpack.c.b16 %v4789, %v4785
    %v5178 = vpack.c.b16 %v4790, %v4786
    %v5179 = vpack.c.b16 %v4795, %v4791
    %v5180 = vpack.c.b16 %v4796, %v4792
    %v5181 = vpack.c.b16 %v4797, %v4793
    %v5182 = vpack.c.b16 %v4798, %v4794
    %v5183 = vpack.c.b16 %v4803, %v4799
    %v5184 = vpack.c.b16 %v4804, %v4800
    %v5185 = vpack.c.b16 %v4805, %v4801
    %v5186 = vpack.c.b16 %v4806, %v4802
    %v5187 = vpack.c.b16 %v4811, %v4807
    %v5188 = vpack.c.b16 %v4812, %v4808
    %v5189 = vpack.c.b16 %v4813, %v4809
    %v5190 = vpack.c.b16 %v4814, %v4810
    %v5191 = vpack.c.b16 %v4819, %v4815
    %v5192 = vpack.c.b16 %v4820, %v4816
    %v5193 = vpack.c.b16 %v4821, %v4817
    %v5194 = vpack.c.b16 %v4822, %v4818
    %v5195 = vpack.c.b16 %v4827, %v4823
    %v5196 = vpack.c.b16 %v4828, %v4824
    %v5197 = vpack.c.b16 %v4829, %v4825
    %v5198 = vpack.c.b16 %v4830, %v4826
    %v5199 = vpack.c.b16 %v4835, %v4831
    %v5200 = vpack.c.b16 %v4836, %v4832
    %v5201 = vpack.c.b16 %v4837, %v4833
    %v5202 = vpack.c.b16 %v4838, %v4834
    %v5203 = vpack.c.b16 %v4843, %v4839
    %v5204 = vpack.c.b16 %v4844, %v4840
    %v5205 = vpack.c.b16 %v4845, %v4841
    %v5206 = vpack.c.b16 %v4846, %v4842
    %v5207 = vpack.c.b16 %v4851, %v4847
    %v5208 = vpack.c.b16 %v4852, %v4848
    %v5209 = vpack.c.b16 %v4853, %v4849
    %v5210 = vpack.c.b16 %v4854, %v4850
    %v5211 = vpack.c.b16 %v4859, %v4855
    %v5212 = vpack.c.b16 %v4860, %v4856
    %v5213 = vpack.c.b16 %v4861, %v4857
    %v5214 = vpack.c.b16 %v4862, %v4858
    %v5215 = vpack.c.b16 %v4867, %v4863
    %v5216 = vpack.c.b16 %v4868, %v4864
    %v5217 = vpack.c.b16 %v4869, %v4865
    %v5218 = vpack.c.b16 %v4870, %v4866
    %v5219 = vpack.c.b16 %v4875, %v4871
    %v5220 = vpack.c.b16 %v4876, %v4872
    %v5221 = vpack.c.b16 %v4877, %v4873
    %v5222 = vpack.c.b16 %v4878, %v4874
    %v5223 = vpack.c.b16 %v4883, %v4879
    %v5224 = vpack.c.b16 %v4884, %v4880
    %v5225 = vpack.c.b16 %v4885, %v4881
    %v5226 = vpack.c.b16 %v4886, %v4882
    %v5227 = vpack.c.b16 %v4891, %v4887
    %v5228 = vpack.c.b16 %v4892, %v4888
    %v5229 = vpack.c.b16 %v4893, %v4889
    %v5230 = vpack.c.b16 %v4894, %v4890
    %v5231 = vpack.c.b16 %v4899, %v4895
    %v5232 = vpack.c.b16 %v4900, %v4896
    %v5233 = vpack.c.b16 %v4901, %v4897
    %v5234 = vpack.c.b16 %v4902, %v4898
    %v5235 = vpack.c.b16 %v4907, %v4903
    %v5236 = vpack.c.b16 %v4908, %v4904
    %v5237 = vpack.c.b16 %v4909, %v4905
    %v5238 = vpack.c.b16 %v4910, %v4906
    %v5239 = vpack.c.b16 %v4915, %v4911
    %v5240 = vpack.c.b16 %v4916, %v4912
    %v5241 = vpack.c.b16 %v4917, %v4913
    %v5242 = vpack.c.b16 %v4918, %v4914
    %v5243 = vpack.c.b16 %v4923, %v4919
    %v5244 = vpack.c.b16 %v4924, %v4920
    %v5245 = vpack.c.b16 %v4925, %v4921
    %v5246 = vpack.c.b16 %v4926, %v4922
    %v5247 = vpack.c.b16 %v4931, %v4927
    %v5248 = vpack.c.b16 %v4932, %v4928
    %v5249 = vpack.c.b16 %v4933, %v4929
    %v5250 = vpack.c.b16 %v4934, %v4930
    %v5251 = vpack.c.b16 %v4939, %v4935
    %v5252 = vpack.c.b16 %v4940, %v4936
    %v5253 = vpack.c.b16 %v4941, %v4937
    %v5254 = vpack.c.b16 %v4942, %v4938
    %v5255 = vpack.c.b16 %v4947, %v4943
    %v5256 = vpack.c.b16 %v4948, %v4944
    %v5257 = vpack.c.b16 %v4949, %v4945
    %v5258 = vpack.c.b16 %v4950, %v4946
    %v5259 = vpack.c.b16 %v4955, %v4951
    %v5260 = vpack.c.b16 %v4956, %v4952
    %v5261 = vpack.c.b16 %v4957, %v4953
    %v5262 = vpack.c.b16 %v4958, %v4954
    %v5263 = vpack.c.b16 %v4963, %v4959
    %v5264 = vpack.c.b16 %v4964, %v4960
    %v5265 = vpack.c.b16 %v4965, %v4961
    %v5266 = vpack.c.b16 %v4966, %v4962
    %v5267 = vpack.c.b16 %v4971, %v4967
    %v5268 = vpack.c.b16 %v4972, %v4968
    %v5269 = vpack.c.b16 %v4973, %v4969
    %v5270 = vpack.c.b16 %v4974, %v4970
    %v5271 = vpack.c.b16 %v4979, %v4975
    %v5272 = vpack.c.b16 %v4980, %v4976
    %v5273 = vpack.c.b16 %v4981, %v4977
    %v5274 = vpack.c.b16 %v4982, %v4978
    %v5275 = vpack.c.b16 %v4987, %v4983
    %v5276 = vpack.c.b16 %v4988, %v4984
    %v5277 = vpack.c.b16 %v4989, %v4985
    %v5278 = vpack.c.b16 %v4990, %v4986
    %v5279 = vpack.c.b16 %v4995, %v4991
    %v5280 = vpack.c.b16 %v4996, %v4992
    %v5281 = vpack.c.b16 %v4997, %v4993
    %v5282 = vpack.c.b16 %v4998, %v4994
    %v5283 = vpack.c.b16 %v5003, %v4999
    %v5284 = vpack.c.b16 %v5004, %v5000
    %v5285 = vpack.c.b16 %v5005, %v5001
    %v5286 = vpack.c.b16 %v5006, %v5002
    %v5287 = vpack.c.b16 %v5011, %v5007
    %v5288 = vpack.c.b16 %v5012, %v5008
    %v5289 = vpack.c.b16 %v5013, %v5009
    %v5290 = vpack.c.b16 %v5014, %v5010
    %v5291 = vpack.c.b16 %v5019, %v5015
    %v5292 = vpack.c.b16 %v5020, %v5016
    %v5293 = vpack.c.b16 %v5021, %v5017
    %v5294 = vpack.c.b16 %v5022, %v5018
    %v5295 = vpack.c.b16 %v5027, %v5023
    %v5296 = vpack.c.b16 %v5028, %v5024
    %v5297 = vpack.c.b16 %v5029, %v5025
    %v5298 = vpack.c.b16 %v5030, %v5026
    %v5299 = vpack.c.b16 %v5035, %v5031
    %v5300 = vpack.c.b16 %v5036, %v5032
    %v5301 = vpack.c.b16 %v5037, %v5033
    %v5302 = vpack.c.b16 %v5038, %v5034
    %v5303 = vpack.c.b16 %v5043, %v5039
    %v5304 = vpack.c.b16 %v5044, %v5040
    %v5305 = vpack.c.b16 %v5045, %v5041
    %v5306 = vpack.c.b16 %v5046, %v5042
    %v5307 = vpack.c.b16 %v5051, %v5047
    %v5308 = vpack.c.b16 %v5052, %v5048
    %v5309 = vpack.c.b16 %v5053, %v5049
    %v5310 = vpack.c.b16 %v5054, %v5050
    %5567 = vmatprep.subr.bf16.mxu0 %v5056
    %5568 = vmatpush1.bf16.msra.mxu0 %v5055
    %5569 = vmatprep.subr.bf16.mxu0 %v5060
    %5570 = vmatpush1.bf16.msra.mxu0 %v5059
    %5571 = vmatprep.subr.bf16.mxu0 %v5064
    %5572 = vmatpush1.bf16.msra.mxu0 %v5063
    %5573 = vmatprep.subr.bf16.mxu0 %v5068
    %5574 = vmatpush1.bf16.msra.mxu0 %v5067
    %5575 = vmatprep.subr.bf16.mxu0 %v5072
    %5576 = vmatpush1.bf16.msra.mxu0 %v5071
    %5577 = vmatprep.subr.bf16.mxu0 %v5076
    %5578 = vmatpush1.bf16.msra.mxu0 %v5075
    %5579 = vmatprep.subr.bf16.mxu0 %v5080
    %5580 = vmatpush1.bf16.msra.mxu0 %v5079
    %5581 = vmatprep.subr.bf16.mxu0 %v5084
    %5582 = vmatpush1.bf16.msra.mxu0 %v5083
    %5583 = vmatprep.subr.bf16.mxu0 %v5088
    %5584 = vmatpush1.bf16.msra.mxu0 %v5087
    %5585 = vmatprep.subr.bf16.mxu0 %v5092
    %5586 = vmatpush1.bf16.msra.mxu0 %v5091
    %5587 = vmatprep.subr.bf16.mxu0 %v5096
    %5588 = vmatpush1.bf16.msra.mxu0 %v5095
    %5589 = vmatprep.subr.bf16.mxu0 %v5100
    %5590 = vmatpush1.bf16.msra.mxu0 %v5099
    %5591 = vmatprep.subr.bf16.mxu0 %v5104
    %5592 = vmatpush1.bf16.msra.mxu0 %v5103
    %5593 = vmatprep.subr.bf16.mxu0 %v5108
    %5594 = vmatpush1.bf16.msra.mxu0 %v5107
    %5595 = vmatprep.subr.bf16.mxu0 %v5112
    %5596 = vmatpush1.bf16.msra.mxu0 %v5111
    %5597 = vmatprep.subr.bf16.mxu0 %v5116
    %5598 = vmatpush1.bf16.msra.mxu0 %v5115
    %5599 = vmatprep.mubr.bf16.mxu0 %v4002
    %5600 = vmatmul.mubr.bf16.gmra.mrb[0].mxu0 %v4001
    %v5601 = vpop.f32.mrb[0].mxu0
    %v5602 = vadd.f32 %v4270, %v5601
    %v5603 = vpop.f32.mrb[0].mxu0
    %v5604 = vadd.f32 %v4274, %v5603
    %v5605 = vpop.f32.mrb[0].mxu0
    %v5606 = vadd.f32 %v4270, %v5605
    %v5607 = vpop.f32.mrb[0].mxu0
    %v5608 = vadd.f32 %v4274, %v5607
    %5609 = vdwg.mxu0
    %5610 = vmatprep.subr.bf16.mxu0 %v5120
    %5611 = vmatpush1.bf16.msra.mxu0 %v5119
    %5612 = vmatprep.subr.bf16.mxu0 %v5124
    %5613 = vmatpush1.bf16.msra.mxu0 %v5123
    %5614 = vmatprep.subr.bf16.mxu0 %v5128
    %5615 = vmatpush1.bf16.msra.mxu0 %v5127
    %5616 = vmatprep.subr.bf16.mxu0 %v5132
    %5617 = vmatpush1.bf16.msra.mxu0 %v5131
    %5618 = vmatprep.subr.bf16.mxu0 %v5136
    %5619 = vmatpush1.bf16.msra.mxu0 %v5135
    %5620 = vmatprep.subr.bf16.mxu0 %v5140
    %5621 = vmatpush1.bf16.msra.mxu0 %v5139
    %5622 = vmatprep.subr.bf16.mxu0 %v5144
    %5623 = vmatpush1.bf16.msra.mxu0 %v5143
    %5624 = vmatprep.subr.bf16.mxu0 %v5148
    %5625 = vmatpush1.bf16.msra.mxu0 %v5147
    %5626 = vmatprep.subr.bf16.mxu0 %v5152
    %5627 = vmatpush1.bf16.msra.mxu0 %v5151
    %5628 = vmatprep.subr.bf16.mxu0 %v5156
    %5629 = vmatpush1.bf16.msra.mxu0 %v5155
    %5630 = vmatprep.subr.bf16.mxu0 %v5160
    %5631 = vmatpush1.bf16.msra.mxu0 %v5159
    %5632 = vmatprep.subr.bf16.mxu0 %v5164
    %5633 = vmatpush1.bf16.msra.mxu0 %v5163
    %5634 = vmatprep.subr.bf16.mxu0 %v5168
    %5635 = vmatpush1.bf16.msra.mxu0 %v5167
    %5636 = vmatprep.subr.bf16.mxu0 %v5172
    %5637 = vmatpush1.bf16.msra.mxu0 %v5171
    %5638 = vmatprep.subr.bf16.mxu0 %v5176
    %5639 = vmatpush1.bf16.msra.mxu0 %v5175
    %5640 = vmatprep.subr.bf16.mxu0 %v5180
    %5641 = vmatpush1.bf16.msra.mxu0 %v5179
    %5642 = vmatprep.mubr.bf16.mxu0 %v4004
    %5643 = vmatmul.mubr.bf16.gmra.mrb[0].mxu0 %v4003
    %v5644 = vpop.f32.mrb[0].mxu0
    %v5645 = vadd.f32 %v5602, %v5644
    %v5646 = vpop.f32.mrb[0].mxu0
    %v5647 = vadd.f32 %v5604, %v5646
    %v5648 = vpop.f32.mrb[0].mxu0
    %v5649 = vadd.f32 %v5606, %v5648
    %v5650 = vpop.f32.mrb[0].mxu0
    %v5651 = vadd.f32 %v5608, %v5650
    %5652 = vdwg.mxu0
    %5653 = vmatprep.subr.bf16.mxu0 %v5184
    %5654 = vmatpush1.bf16.msra.mxu0 %v5183
    %5655 = vmatprep.subr.bf16.mxu0 %v5188
    %5656 = vmatpush1.bf16.msra.mxu0 %v5187
    %5657 = vmatprep.subr.bf16.mxu0 %v5192
    %5658 = vmatpush1.bf16.msra.mxu0 %v5191
    %5659 = vmatprep.subr.bf16.mxu0 %v5196
    %5660 = vmatpush1.bf16.msra.mxu0 %v5195
    %5661 = vmatprep.subr.bf16.mxu0 %v5200
    %5662 = vmatpush1.bf16.msra.mxu0 %v5199
    %5663 = vmatprep.subr.bf16.mxu0 %v5204
    %5664 = vmatpush1.bf16.msra.mxu0 %v5203
    %5665 = vmatprep.subr.bf16.mxu0 %v5208
    %5666 = vmatpush1.bf16.msra.mxu0 %v5207
    %5667 = vmatprep.subr.bf16.mxu0 %v5212
    %5668 = vmatpush1.bf16.msra.mxu0 %v5211
    %5669 = vmatprep.subr.bf16.mxu0 %v5216
    %5670 = vmatpush1.bf16.msra.mxu0 %v5215
    %5671 = vmatprep.subr.bf16.mxu0 %v5220
    %5672 = vmatpush1.bf16.msra.mxu0 %v5219
    %5673 = vmatprep.subr.bf16.mxu0 %v5224
    %5674 = vmatpush1.bf16.msra.mxu0 %v5223
    %5675 = vmatprep.subr.bf16.mxu0 %v5228
    %5676 = vmatpush1.bf16.msra.mxu0 %v5227
    %5677 = vmatprep.subr.bf16.mxu0 %v5232
    %5678 = vmatpush1.bf16.msra.mxu0 %v5231
    %5679 = vmatprep.subr.bf16.mxu0 %v5236
    %5680 = vmatpush1.bf16.msra.mxu0 %v5235
    %5681 = vmatprep.subr.bf16.mxu0 %v5240
    %5682 = vmatpush1.bf16.msra.mxu0 %v5239
    %5683 = vmatprep.subr.bf16.mxu0 %v5244
    %5684 = vmatpush1.bf16.msra.mxu0 %v5243
    %5685 = vmatprep.mubr.bf16.mxu0 %v4006
    %5686 = vmatmul.mubr.bf16.gmra.mrb[0].mxu0 %v4005
    %v5687 = vpop.f32.mrb[0].mxu0
    %v5688 = vadd.f32 %v5645, %v5687
    %v5689 = vpop.f32.mrb[0].mxu0
    %v5690 = vadd.f32 %v5647, %v5689
    %v5691 = vpop.f32.mrb[0].mxu0
    %v5692 = vadd.f32 %v5649, %v5691
    %v5693 = vpop.f32.mrb[0].mxu0
    %v5694 = vadd.f32 %v5651, %v5693
    %5695 = vdwg.mxu0
    %5696 = vmatprep.subr.bf16.mxu0 %v5248
    %5697 = vmatpush1.bf16.msra.mxu0 %v5247
    %5698 = vmatprep.subr.bf16.mxu0 %v5252
    %5699 = vmatpush1.bf16.msra.mxu0 %v5251
    %5700 = vmatprep.subr.bf16.mxu0 %v5256
    %5701 = vmatpush1.bf16.msra.mxu0 %v5255
    %5702 = vmatprep.subr.bf16.mxu0 %v5260
    %5703 = vmatpush1.bf16.msra.mxu0 %v5259
    %5704 = vmatprep.subr.bf16.mxu0 %v5264
    %5705 = vmatpush1.bf16.msra.mxu0 %v5263
    %5706 = vmatprep.subr.bf16.mxu0 %v5268
    %5707 = vmatpush1.bf16.msra.mxu0 %v5267
    %5708 = vmatprep.subr.bf16.mxu0 %v5272
    %5709 = vmatpush1.bf16.msra.mxu0 %v5271
    %5710 = vmatprep.subr.bf16.mxu0 %v5276
    %5711 = vmatpush1.bf16.msra.mxu0 %v5275
    %5712 = vmatprep.subr.bf16.mxu0 %v5280
    %5713 = vmatpush1.bf16.msra.mxu0 %v5279
    %5714 = vmatprep.subr.bf16.mxu0 %v5284
    %5715 = vmatpush1.bf16.msra.mxu0 %v5283
    %5716 = vmatprep.subr.bf16.mxu0 %v5288
    %5717 = vmatpush1.bf16.msra.mxu0 %v5287
    %5718 = vmatprep.subr.bf16.mxu0 %v5292
    %5719 = vmatpush1.bf16.msra.mxu0 %v5291
    %5720 = vmatprep.subr.bf16.mxu0 %v5296
    %5721 = vmatpush1.bf16.msra.mxu0 %v5295
    %5722 = vmatprep.subr.bf16.mxu0 %v5300
    %5723 = vmatpush1.bf16.msra.mxu0 %v5299
    %5724 = vmatprep.subr.bf16.mxu0 %v5304
    %5725 = vmatpush1.bf16.msra.mxu0 %v5303
    %5726 = vmatprep.subr.bf16.mxu0 %v5308
    %5727 = vmatpush1.bf16.msra.mxu0 %v5307
    %5728 = vmatprep.mubr.bf16.mxu0 %v4008
    %5729 = vmatmul.mubr.bf16.gmra.mrb[0].mxu0 %v4007
    %v5730 = vpop.f32.mrb[0].mxu0
    %v5731 = vadd.f32 %v5688, %v5730
    %v5732 = vpop.f32.mrb[0].mxu0
    %v5733 = vadd.f32 %v5690, %v5732
    %v5734 = vpop.f32.mrb[0].mxu0
    %v5735 = vadd.f32 %v5692, %v5734
    %v5736 = vpop.f32.mrb[0].mxu0
    %v5737 = vadd.f32 %v5694, %v5736
    %5738 = vdwg.mxu0
    %5739 = vmatprep.subr.bf16.mxu0 %v5058
    %5740 = vmatpush1.bf16.msra.mxu0 %v5057
    %5741 = vmatprep.subr.bf16.mxu0 %v5062
    %5742 = vmatpush1.bf16.msra.mxu0 %v5061
    %5743 = vmatprep.subr.bf16.mxu0 %v5066
    %5744 = vmatpush1.bf16.msra.mxu0 %v5065
    %5745 = vmatprep.subr.bf16.mxu0 %v5070
    %5746 = vmatpush1.bf16.msra.mxu0 %v5069
    %5747 = vmatprep.subr.bf16.mxu0 %v5074
    %5748 = vmatpush1.bf16.msra.mxu0 %v5073
    %5749 = vmatprep.subr.bf16.mxu0 %v5078
    %5750 = vmatpush1.bf16.msra.mxu0 %v5077
    %5751 = vmatprep.subr.bf16.mxu0 %v5082
    %5752 = vmatpush1.bf16.msra.mxu0 %v5081
    %5753 = vmatprep.subr.bf16.mxu0 %v5086
    %5754 = vmatpush1.bf16.msra.mxu0 %v5085
    %5755 = vmatprep.subr.bf16.mxu0 %v5090
    %5756 = vmatpush1.bf16.msra.mxu0 %v5089
    %5757 = vmatprep.subr.bf16.mxu0 %v5094
    %5758 = vmatpush1.bf16.msra.mxu0 %v5093
    %5759 = vmatprep.subr.bf16.mxu0 %v5098
    %5760 = vmatpush1.bf16.msra.mxu0 %v5097
    %5761 = vmatprep.subr.bf16.mxu0 %v5102
    %5762 = vmatpush1.bf16.msra.mxu0 %v5101
    %5763 = vmatprep.subr.bf16.mxu0 %v5106
    %5764 = vmatpush1.bf16.msra.mxu0 %v5105
    %5765 = vmatprep.subr.bf16.mxu0 %v5110
    %5766 = vmatpush1.bf16.msra.mxu0 %v5109
    %5767 = vmatprep.subr.bf16.mxu0 %v5114
    %5768 = vmatpush1.bf16.msra.mxu0 %v5113
    %5769 = vmatprep.subr.bf16.mxu0 %v5118
    %5770 = vmatpush1.bf16.msra.mxu0 %v5117
    %5771 = vmatprep.mubr.bf16.mxu0 %v4002
    %5772 = vmatmul.mubr.bf16.gmra.mrb[0].mxu0 %v4001
    %v5773 = vpop.f32.mrb[0].mxu0
    %v5774 = vadd.f32 %v4278, %v5773
    %v5775 = vpop.f32.mrb[0].mxu0
    %v5776 = vadd.f32 %v4282, %v5775
    %v5777 = vpop.f32.mrb[0].mxu0
    %v5778 = vadd.f32 %v4278, %v5777
    %v5779 = vpop.f32.mrb[0].mxu0
    %v5780 = vadd.f32 %v4282, %v5779
    %5781 = vdwg.mxu0
    %5782 = vmatprep.subr.bf16.mxu0 %v5122
    %5783 = vmatpush1.bf16.msra.mxu0 %v5121
    %5784 = vmatprep.subr.bf16.mxu0 %v5126
    %5785 = vmatpush1.bf16.msra.mxu0 %v5125
    %5786 = vmatprep.subr.bf16.mxu0 %v5130
    %5787 = vmatpush1.bf16.msra.mxu0 %v5129
    %5788 = vmatprep.subr.bf16.mxu0 %v5134
    %5789 = vmatpush1.bf16.msra.mxu0 %v5133
    %5790 = vmatprep.subr.bf16.mxu0 %v5138
    %5791 = vmatpush1.bf16.msra.mxu0 %v5137
    %5792 = vmatprep.subr.bf16.mxu0 %v5142
    %5793 = vmatpush1.bf16.msra.mxu0 %v5141
    %5794 = vmatprep.subr.bf16.mxu0 %v5146
    %5795 = vmatpush1.bf16.msra.mxu0 %v5145
    %5796 = vmatprep.subr.bf16.mxu0 %v5150
    %5797 = vmatpush1.bf16.msra.mxu0 %v5149
    %5798 = vmatprep.subr.bf16.mxu0 %v5154
    %5799 = vmatpush1.bf16.msra.mxu0 %v5153
    %5800 = vmatprep.subr.bf16.mxu0 %v5158
    %5801 = vmatpush1.bf16.msra.mxu0 %v5157
    %5802 = vmatprep.subr.bf16.mxu0 %v5162
    %5803 = vmatpush1.bf16.msra.mxu0 %v5161
    %5804 = vmatprep.subr.bf16.mxu0 %v5166
    %5805 = vmatpush1.bf16.msra.mxu0 %v5165
    %5806 = vmatprep.subr.bf16.mxu0 %v5170
    %5807 = vmatpush1.bf16.msra.mxu0 %v5169
    %5808 = vmatprep.subr.bf16.mxu0 %v5174
    %5809 = vmatpush1.bf16.msra.mxu0 %v5173
    %5810 = vmatprep.subr.bf16.mxu0 %v5178
    %5811 = vmatpush1.bf16.msra.mxu0 %v5177
    %5812 = vmatprep.subr.bf16.mxu0 %v5182
    %5813 = vmatpush1.bf16.msra.mxu0 %v5181
    %5814 = vmatprep.mubr.bf16.mxu0 %v4004
    %5815 = vmatmul.mubr.bf16.gmra.mrb[0].mxu0 %v4003
    %v5816 = vpop.f32.mrb[0].mxu0
    %v5817 = vadd.f32 %v5774, %v5816
    %v5818 = vpop.f32.mrb[0].mxu0
    %v5819 = vadd.f32 %v5776, %v5818
    %v5820 = vpop.f32.mrb[0].mxu0
    %v5821 = vadd.f32 %v5778, %v5820
    %v5822 = vpop.f32.mrb[0].mxu0
    %v5823 = vadd.f32 %v5780, %v5822
    %5824 = vdwg.mxu0
    %5825 = vmatprep.subr.bf16.mxu0 %v5186
    %5826 = vmatpush1.bf16.msra.mxu0 %v5185
    %5827 = vmatprep.subr.bf16.mxu0 %v5190
    %5828 = vmatpush1.bf16.msra.mxu0 %v5189
    %5829 = vmatprep.subr.bf16.mxu0 %v5194
    %5830 = vmatpush1.bf16.msra.mxu0 %v5193
    %5831 = vmatprep.subr.bf16.mxu0 %v5198
    %5832 = vmatpush1.bf16.msra.mxu0 %v5197
    %5833 = vmatprep.subr.bf16.mxu0 %v5202
    %5834 = vmatpush1.bf16.msra.mxu0 %v5201
    %5835 = vmatprep.subr.bf16.mxu0 %v5206
    %5836 = vmatpush1.bf16.msra.mxu0 %v5205
    %5837 = vmatprep.subr.bf16.mxu0 %v5210
    %5838 = vmatpush1.bf16.msra.mxu0 %v5209
    %5839 = vmatprep.subr.bf16.mxu0 %v5214
    %5840 = vmatpush1.bf16.msra.mxu0 %v5213
    %5841 = vmatprep.subr.bf16.mxu0 %v5218
    %5842 = vmatpush1.bf16.msra.mxu0 %v5217
    %5843 = vmatprep.subr.bf16.mxu0 %v5222
    %5844 = vmatpush1.bf16.msra.mxu0 %v5221
    %5845 = vmatprep.subr.bf16.mxu0 %v5226
    %5846 = vmatpush1.bf16.msra.mxu0 %v5225
    %5847 = vmatprep.subr.bf16.mxu0 %v5230
    %5848 = vmatpush1.bf16.msra.mxu0 %v5229
    %5849 = vmatprep.subr.bf16.mxu0 %v5234
    %5850 = vmatpush1.bf16.msra.mxu0 %v5233
    %5851 = vmatprep.subr.bf16.mxu0 %v5238
    %5852 = vmatpush1.bf16.msra.mxu0 %v5237
    %5853 = vmatprep.subr.bf16.mxu0 %v5242
    %5854 = vmatpush1.bf16.msra.mxu0 %v5241
    %5855 = vmatprep.subr.bf16.mxu0 %v5246
    %5856 = vmatpush1.bf16.msra.mxu0 %v5245
    %5857 = vmatprep.mubr.bf16.mxu0 %v4006
    %5858 = vmatmul.mubr.bf16.gmra.mrb[0].mxu0 %v4005
    %v5859 = vpop.f32.mrb[0].mxu0
    %v5860 = vadd.f32 %v5817, %v5859
    %v5861 = vpop.f32.mrb[0].mxu0
    %v5862 = vadd.f32 %v5819, %v5861
    %v5863 = vpop.f32.mrb[0].mxu0
    %v5864 = vadd.f32 %v5821, %v5863
    %v5865 = vpop.f32.mrb[0].mxu0
    %v5866 = vadd.f32 %v5823, %v5865
    %5867 = vdwg.mxu0
    %5868 = vmatprep.subr.bf16.mxu0 %v5250
    %5869 = vmatpush1.bf16.msra.mxu0 %v5249
    %5870 = vmatprep.subr.bf16.mxu0 %v5254
    %5871 = vmatpush1.bf16.msra.mxu0 %v5253
    %5872 = vmatprep.subr.bf16.mxu0 %v5258
    %5873 = vmatpush1.bf16.msra.mxu0 %v5257
    %5874 = vmatprep.subr.bf16.mxu0 %v5262
    %5875 = vmatpush1.bf16.msra.mxu0 %v5261
    %5876 = vmatprep.subr.bf16.mxu0 %v5266
    %5877 = vmatpush1.bf16.msra.mxu0 %v5265
    %5878 = vmatprep.subr.bf16.mxu0 %v5270
    %5879 = vmatpush1.bf16.msra.mxu0 %v5269
    %5880 = vmatprep.subr.bf16.mxu0 %v5274
    %5881 = vmatpush1.bf16.msra.mxu0 %v5273
    %5882 = vmatprep.subr.bf16.mxu0 %v5278
    %5883 = vmatpush1.bf16.msra.mxu0 %v5277
    %5884 = vmatprep.subr.bf16.mxu0 %v5282
    %5885 = vmatpush1.bf16.msra.mxu0 %v5281
    %5886 = vmatprep.subr.bf16.mxu0 %v5286
    %5887 = vmatpush1.bf16.msra.mxu0 %v5285
    %5888 = vmatprep.subr.bf16.mxu0 %v5290
    %5889 = vmatpush1.bf16.msra.mxu0 %v5289
    %5890 = vmatprep.subr.bf16.mxu0 %v5294
    %5891 = vmatpush1.bf16.msra.mxu0 %v5293
    %5892 = vmatprep.subr.bf16.mxu0 %v5298
    %5893 = vmatpush1.bf16.msra.mxu0 %v5297
    %5894 = vmatprep.subr.bf16.mxu0 %v5302
    %5895 = vmatpush1.bf16.msra.mxu0 %v5301
    %5896 = vmatprep.subr.bf16.mxu0 %v5306
    %5897 = vmatpush1.bf16.msra.mxu0 %v5305
    %5898 = vmatprep.subr.bf16.mxu0 %v5310
    %5899 = vmatpush1.bf16.msra.mxu0 %v5309
    %5900 = vmatprep.mubr.bf16.mxu0 %v4008
    %5901 = vmatmul.mubr.bf16.gmra.mrb[0].mxu0 %v4007
    %v5902 = vpop.f32.mrb[0].mxu0
    %v5903 = vadd.f32 %v5860, %v5902
    %v5904 = vpop.f32.mrb[0].mxu0
    %v5905 = vadd.f32 %v5862, %v5904
    %v5906 = vpop.f32.mrb[0].mxu0
    %v5907 = vadd.f32 %v5864, %v5906
    %v5908 = vpop.f32.mrb[0].mxu0
    %v5909 = vadd.f32 %v5866, %v5908
    %5910 = vdwg.mxu0
    %vm5911 = vcmp.ge.f32.partialorder %v5731, 0.0
    %vm5912 = vcmp.ge.f32.partialorder %v5733, 0.0
    %vm5913 = vcmp.ge.f32.partialorder %v5903, 0.0
    %vm5914 = vcmp.ge.f32.partialorder %v5905, 0.0
    %vm5915 = vcmp.ge.f32.partialorder %v5735, 0.0
    %vm5916 = vcmp.ge.f32.partialorder %v5737, 0.0
    %vm5917 = vcmp.ge.f32.partialorder %v5907, 0.0
    %vm5918 = vcmp.ge.f32.partialorder %v5909, 0.0
    %v5919 = vmul.f32 %v5731, 0.1
    %v5920 = vmul.f32 %v5733, 0.1
    %v5921 = vmul.f32 %v5903, 0.1
    %v5922 = vmul.f32 %v5905, 0.1
    %v5923 = vmul.f32 %v5735, 0.1
    %v5924 = vmul.f32 %v5737, 0.1
    %v5925 = vmul.f32 %v5907, 0.1
    %v5926 = vmul.f32 %v5909, 0.1
    %v5927 = vsel %vm5911, %v5731, %v5919
    %v5928 = vsel %vm5912, %v5733, %v5920
    %v5929 = vsel %vm5913, %v5903, %v5921
    %v5930 = vsel %vm5914, %v5905, %v5922
    %v5931 = vsel %vm5915, %v5735, %v5923
    %v5932 = vsel %vm5916, %v5737, %v5924
    %v5933 = vsel %vm5917, %v5907, %v5925
    %v5934 = vsel %vm5918, %v5909, %v5926
    %v5935 = vpack.c.bf16 %v5931, %v5927
    %v5936 = vpack.c.bf16 %v5932, %v5928
    %v5937 = vpack.c.bf16 %v5933, %v5929
    %v5938 = vpack.c.bf16 %v5934, %v5930
    %v5939 = vld [vmem:[#allocation9] sm:$0xf]
    %v5940 = vld [vmem:[#allocation9 + $0x4] sm:$0xf]
    %v5941 = vld [vmem:[#allocation9 + $0x8] sm:$0xf]
    %v5942 = vld [vmem:[#allocation9 + $0xc] sm:$0xf]
    %v5943 = vld [vmem:[#allocation9 + $0x10] sm:$0xf]
    %v5944 = vld [vmem:[#allocation9 + $0x14] sm:$0xf]
    %v5945 = vld [vmem:[#allocation9 + $0x18] sm:$0xf]
    %v5946 = vld [vmem:[#allocation9 + $0x1c] sm:$0xf]
    %v5947 = vld [vmem:[#allocation9 + $0x20] sm:$0xf]
    %v5948 = vld [vmem:[#allocation9 + $0x24] sm:$0xf]
    %v5949 = vld [vmem:[#allocation9 + $0x28] sm:$0xf]
    %v5950 = vld [vmem:[#allocation9 + $0x2c] sm:$0xf]
    %v5951 = vld [vmem:[#allocation9 + $0x30] sm:$0xf]
    %v5952 = vld [vmem:[#allocation9 + $0x34] sm:$0xf]
    %v5953 = vld [vmem:[#allocation9 + $0x38] sm:$0xf]
    %v5954 = vld [vmem:[#allocation9 + $0x3c] sm:$0xf]
    %v5955 = vld [vmem:[#allocation9 + $0x40] sm:$0xf]
    %v5956 = vld [vmem:[#allocation9 + $0x44] sm:$0xf]
    %v5957 = vld [vmem:[#allocation9 + $0x48] sm:$0xf]
    %v5958 = vld [vmem:[#allocation9 + $0x4c] sm:$0xf]
    %v5959 = vld [vmem:[#allocation9 + $0x50] sm:$0xf]
    %v5960 = vld [vmem:[#allocation9 + $0x54] sm:$0xf]
    %v5961 = vld [vmem:[#allocation9 + $0x58] sm:$0xf]
    %v5962 = vld [vmem:[#allocation9 + $0x5c] sm:$0xf]
    %v5963 = vld [vmem:[#allocation9 + $0x60] sm:$0xf]
    %v5964 = vld [vmem:[#allocation9 + $0x64] sm:$0xf]
    %v5965 = vld [vmem:[#allocation9 + $0x68] sm:$0xf]
    %v5966 = vld [vmem:[#allocation9 + $0x6c] sm:$0xf]
    %v5967 = vld [vmem:[#allocation9 + $0x70] sm:$0xf]
    %v5968 = vld [vmem:[#allocation9 + $0x74] sm:$0xf]
    %v5969 = vld [vmem:[#allocation9 + $0x78] sm:$0xf]
    %v5970 = vld [vmem:[#allocation9 + $0x7c] sm:$0xf]
    %v5971 = vld [vmem:[#allocation9 + $0x80] sm:$0xf]
    %v5972 = vld [vmem:[#allocation9 + $0x84] sm:$0xf]
    %v5973 = vld [vmem:[#allocation9 + $0x88] sm:$0xf]
    %v5974 = vld [vmem:[#allocation9 + $0x8c] sm:$0xf]
    %v5975 = vld [vmem:[#allocation9 + $0x90] sm:$0xf]
    %v5976 = vld [vmem:[#allocation9 + $0x94] sm:$0xf]
    %v5977 = vld [vmem:[#allocation9 + $0x98] sm:$0xf]
    %v5978 = vld [vmem:[#allocation9 + $0x9c] sm:$0xf]
    %v5979 = vld [vmem:[#allocation9 + $0xa0] sm:$0xf]
    %v5980 = vld [vmem:[#allocation9 + $0xa4] sm:$0xf]
    %v5981 = vld [vmem:[#allocation9 + $0xa8] sm:$0xf]
    %v5982 = vld [vmem:[#allocation9 + $0xac] sm:$0xf]
    %v5983 = vld [vmem:[#allocation9 + $0xb0] sm:$0xf]
    %v5984 = vld [vmem:[#allocation9 + $0xb4] sm:$0xf]
    %v5985 = vld [vmem:[#allocation9 + $0xb8] sm:$0xf]
    %v5986 = vld [vmem:[#allocation9 + $0xbc] sm:$0xf]
    %v5987 = vld [vmem:[#allocation9 + $0xc0] sm:$0xf]
    %v5988 = vld [vmem:[#allocation9 + $0xc4] sm:$0xf]
    %v5989 = vld [vmem:[#allocation9 + $0xc8] sm:$0xf]
    %v5990 = vld [vmem:[#allocation9 + $0xcc] sm:$0xf]
    %v5991 = vld [vmem:[#allocation9 + $0xd0] sm:$0xf]
    %v5992 = vld [vmem:[#allocation9 + $0xd4] sm:$0xf]
    %v5993 = vld [vmem:[#allocation9 + $0xd8] sm:$0xf]
    %v5994 = vld [vmem:[#allocation9 + $0xdc] sm:$0xf]
    %v5995 = vld [vmem:[#allocation9 + $0xe0] sm:$0xf]
    %v5996 = vld [vmem:[#allocation9 + $0xe4] sm:$0xf]
    %v5997 = vld [vmem:[#allocation9 + $0xe8] sm:$0xf]
    %v5998 = vld [vmem:[#allocation9 + $0xec] sm:$0xf]
    %v5999 = vld [vmem:[#allocation9 + $0xf0] sm:$0xf]
    %v6000 = vld [vmem:[#allocation9 + $0xf4] sm:$0xf]
    %v6001 = vld [vmem:[#allocation9 + $0xf8] sm:$0xf]
    %v6002 = vld [vmem:[#allocation9 + $0xfc] sm:$0xf]
    %v6003 = vld [vmem:[#allocation10] sm:$0x1]
    %v6005 = vlaneseq
    %v6006 = vshrl.u32 %v6005, 7
    %v6007 = vsub.s32 0, %v6006
    %v6008 = vrot.slane %v6003, %v6007
    %v6074 = vunpack.c.l.b16 %v5939
    %v6075 = vunpack.c.l.b16 %v5940
    %v6076 = vunpack.c.l.b16 %v5941
    %v6077 = vunpack.c.l.b16 %v5942
    %v6078 = vunpack.c.l.b16 %v5943
    %v6079 = vunpack.c.l.b16 %v5944
    %v6080 = vunpack.c.l.b16 %v5945
    %v6081 = vunpack.c.l.b16 %v5946
    %v6082 = vunpack.c.l.b16 %v5947
    %v6083 = vunpack.c.l.b16 %v5948
    %v6084 = vunpack.c.l.b16 %v5949
    %v6085 = vunpack.c.l.b16 %v5950
    %v6086 = vunpack.c.l.b16 %v5951
    %v6087 = vunpack.c.l.b16 %v5952
    %v6088 = vunpack.c.l.b16 %v5953
    %v6089 = vunpack.c.l.b16 %v5954
    %v6090 = vunpack.c.l.b16 %v5955
    %v6091 = vunpack.c.l.b16 %v5956
    %v6092 = vunpack.c.l.b16 %v5957
    %v6093 = vunpack.c.l.b16 %v5958
    %v6094 = vunpack.c.l.b16 %v5959
    %v6095 = vunpack.c.l.b16 %v5960
    %v6096 = vunpack.c.l.b16 %v5961
    %v6097 = vunpack.c.l.b16 %v5962
    %v6098 = vunpack.c.l.b16 %v5963
    %v6099 = vunpack.c.l.b16 %v5964
    %v6100 = vunpack.c.l.b16 %v5965
    %v6101 = vunpack.c.l.b16 %v5966
    %v6102 = vunpack.c.l.b16 %v5967
    %v6103 = vunpack.c.l.b16 %v5968
    %v6104 = vunpack.c.l.b16 %v5969
    %v6105 = vunpack.c.l.b16 %v5970
    %v6106 = vunpack.c.l.b16 %v5971
    %v6107 = vunpack.c.l.b16 %v5972
    %v6108 = vunpack.c.l.b16 %v5973
    %v6109 = vunpack.c.l.b16 %v5974
    %v6110 = vunpack.c.l.b16 %v5975
    %v6111 = vunpack.c.l.b16 %v5976
    %v6112 = vunpack.c.l.b16 %v5977
    %v6113 = vunpack.c.l.b16 %v5978
    %v6114 = vunpack.c.l.b16 %v5979
    %v6115 = vunpack.c.l.b16 %v5980
    %v6116 = vunpack.c.l.b16 %v5981
    %v6117 = vunpack.c.l.b16 %v5982
    %v6118 = vunpack.c.l.b16 %v5983
    %v6119 = vunpack.c.l.b16 %v5984
    %v6120 = vunpack.c.l.b16 %v5985
    %v6121 = vunpack.c.l.b16 %v5986
    %v6122 = vunpack.c.l.b16 %v5987
    %v6123 = vunpack.c.l.b16 %v5988
    %v6124 = vunpack.c.l.b16 %v5989
    %v6125 = vunpack.c.l.b16 %v5990
    %v6126 = vunpack.c.l.b16 %v5991
    %v6127 = vunpack.c.l.b16 %v5992
    %v6128 = vunpack.c.l.b16 %v5993
    %v6129 = vunpack.c.l.b16 %v5994
    %v6130 = vunpack.c.l.b16 %v5995
    %v6131 = vunpack.c.l.b16 %v5996
    %v6132 = vunpack.c.l.b16 %v5997
    %v6133 = vunpack.c.l.b16 %v5998
    %v6134 = vunpack.c.l.b16 %v5999
    %v6135 = vunpack.c.l.b16 %v6000
    %v6136 = vunpack.c.l.b16 %v6001
    %v6137 = vunpack.c.l.b16 %v6002
    %v6138 = vpack.c.b16 %v6075, %v6074
    %v6139 = vpack.c.b16 %v6077, %v6076
    %v6140 = vpack.c.b16 %v6079, %v6078
    %v6141 = vpack.c.b16 %v6081, %v6080
    %v6142 = vpack.c.b16 %v6083, %v6082
    %v6143 = vpack.c.b16 %v6085, %v6084
    %v6144 = vpack.c.b16 %v6087, %v6086
    %v6145 = vpack.c.b16 %v6089, %v6088
    %v6146 = vpack.c.b16 %v6091, %v6090
    %v6147 = vpack.c.b16 %v6093, %v6092
    %v6148 = vpack.c.b16 %v6095, %v6094
    %v6149 = vpack.c.b16 %v6097, %v6096
    %v6150 = vpack.c.b16 %v6099, %v6098
    %v6151 = vpack.c.b16 %v6101, %v6100
    %v6152 = vpack.c.b16 %v6103, %v6102
    %v6153 = vpack.c.b16 %v6105, %v6104
    %v6154 = vpack.c.b16 %v6107, %v6106
    %v6155 = vpack.c.b16 %v6109, %v6108
    %v6156 = vpack.c.b16 %v6111, %v6110
    %v6157 = vpack.c.b16 %v6113, %v6112
    %v6158 = vpack.c.b16 %v6115, %v6114
    %v6159 = vpack.c.b16 %v6117, %v6116
    %v6160 = vpack.c.b16 %v6119, %v6118
    %v6161 = vpack.c.b16 %v6121, %v6120
    %v6162 = vpack.c.b16 %v6123, %v6122
    %v6163 = vpack.c.b16 %v6125, %v6124
    %v6164 = vpack.c.b16 %v6127, %v6126
    %v6165 = vpack.c.b16 %v6129, %v6128
    %v6166 = vpack.c.b16 %v6131, %v6130
    %v6167 = vpack.c.b16 %v6133, %v6132
    %v6168 = vpack.c.b16 %v6135, %v6134
    %v6169 = vpack.c.b16 %v6137, %v6136
    %6202 = vmatprep.subr.bf16.mxu0 0
    %6203 = vmatpush1.bf16.msra.mxu0 %v6138
    %6204 = vmatprep.subr.bf16.mxu0 0
    %6205 = vmatpush1.bf16.msra.mxu0 %v6139
    %6206 = vmatprep.subr.bf16.mxu0 0
    %6207 = vmatpush1.bf16.msra.mxu0 %v6140
    %6208 = vmatprep.subr.bf16.mxu0 0
    %6209 = vmatpush1.bf16.msra.mxu0 %v6141
    %6210 = vmatprep.subr.bf16.mxu0 0
    %6211 = vmatpush1.bf16.msra.mxu0 %v6142
    %6212 = vmatprep.subr.bf16.mxu0 0
    %6213 = vmatpush1.bf16.msra.mxu0 %v6143
    %6214 = vmatprep.subr.bf16.mxu0 0
    %6215 = vmatpush1.bf16.msra.mxu0 %v6144
    %6216 = vmatprep.subr.bf16.mxu0 0
    %6217 = vmatpush1.bf16.msra.mxu0 %v6145
    %6218 = vmatprep.subr.bf16.mxu0 0
    %6219 = vmatpush1.bf16.msra.mxu0 %v6146
    %6220 = vmatprep.subr.bf16.mxu0 0
    %6221 = vmatpush1.bf16.msra.mxu0 %v6147
    %6222 = vmatprep.subr.bf16.mxu0 0
    %6223 = vmatpush1.bf16.msra.mxu0 %v6148
    %6224 = vmatprep.subr.bf16.mxu0 0
    %6225 = vmatpush1.bf16.msra.mxu0 %v6149
    %6226 = vmatprep.subr.bf16.mxu0 0
    %6227 = vmatpush1.bf16.msra.mxu0 %v6150
    %6228 = vmatprep.subr.bf16.mxu0 0
    %6229 = vmatpush1.bf16.msra.mxu0 %v6151
    %6230 = vmatprep.subr.bf16.mxu0 0
    %6231 = vmatpush1.bf16.msra.mxu0 %v6152
    %6232 = vmatprep.subr.bf16.mxu0 0
    %6233 = vmatpush1.bf16.msra.mxu0 %v6153
    %6234 = vmatprep.mubr.bf16.mxu0 %v5936
    %6235 = vmatmul.mubr.bf16.gmra.mrb[0].mxu0 %v5935
    %v6236 = vpop.f32.mrb[0].mxu0
    %v6237 = vadd.f32 %v6008, %v6236
    %v6238 = vpop.f32.mrb[0].mxu0
    %v6239 = vpop.f32.mrb[0].mxu0
    %v6240 = vadd.f32 %v6008, %v6239
    %v6241 = vpop.f32.mrb[0].mxu0
    %6242 = vdwg.mxu0
    %6243 = vmatprep.subr.bf16.mxu0 0
    %6244 = vmatpush1.bf16.msra.mxu0 %v6154
    %6245 = vmatprep.subr.bf16.mxu0 0
    %6246 = vmatpush1.bf16.msra.mxu0 %v6155
    %6247 = vmatprep.subr.bf16.mxu0 0
    %6248 = vmatpush1.bf16.msra.mxu0 %v6156
    %6249 = vmatprep.subr.bf16.mxu0 0
    %6250 = vmatpush1.bf16.msra.mxu0 %v6157
    %6251 = vmatprep.subr.bf16.mxu0 0
    %6252 = vmatpush1.bf16.msra.mxu0 %v6158
    %6253 = vmatprep.subr.bf16.mxu0 0
    %6254 = vmatpush1.bf16.msra.mxu0 %v6159
    %6255 = vmatprep.subr.bf16.mxu0 0
    %6256 = vmatpush1.bf16.msra.mxu0 %v6160
    %6257 = vmatprep.subr.bf16.mxu0 0
    %6258 = vmatpush1.bf16.msra.mxu0 %v6161
    %6259 = vmatprep.subr.bf16.mxu0 0
    %6260 = vmatpush1.bf16.msra.mxu0 %v6162
    %6261 = vmatprep.subr.bf16.mxu0 0
    %6262 = vmatpush1.bf16.msra.mxu0 %v6163
    %6263 = vmatprep.subr.bf16.mxu0 0
    %6264 = vmatpush1.bf16.msra.mxu0 %v6164
    %6265 = vmatprep.subr.bf16.mxu0 0
    %6266 = vmatpush1.bf16.msra.mxu0 %v6165
    %6267 = vmatprep.subr.bf16.mxu0 0
    %6268 = vmatpush1.bf16.msra.mxu0 %v6166
    %6269 = vmatprep.subr.bf16.mxu0 0
    %6270 = vmatpush1.bf16.msra.mxu0 %v6167
    %6271 = vmatprep.subr.bf16.mxu0 0
    %6272 = vmatpush1.bf16.msra.mxu0 %v6168
    %6273 = vmatprep.subr.bf16.mxu0 0
    %6274 = vmatpush1.bf16.msra.mxu0 %v6169
    %6275 = vmatprep.mubr.bf16.mxu0 %v5938
    %6276 = vmatmul.mubr.bf16.gmra.mrb[0].mxu0 %v5937
    %v6277 = vpop.f32.mrb[0].mxu0
    %v6278 = vadd.f32 %v6237, %v6277
    %v6279 = vpop.f32.mrb[0].mxu0
    %v6280 = vpop.f32.mrb[0].mxu0
    %v6281 = vadd.f32 %v6240, %v6280
    %v6282 = vpop.f32.mrb[0].mxu0
    %6283 = vdwg.mxu0
    %v6284 = vlaneseq
    %v6285 = vand.u32 %v6284, 127
    %vm6286 = vcmp.ge.s32.totalorder %v6285, 32
    %vm6287 = vcmp.lt.s32.totalorder %v6285, 64
    %vm6288 = vmand %vm6286, %vm6287
    %v6289 = vmax.f32 %v6278, 0.0
    %v6290 = vmax.f32 %v6281, 0.0
    %v6291 = vand.u32 2147483647, %v6278
    %v6292 = vand.u32 2147483647, %v6281
    %v6293 = vsub.f32 0.0, %v6291
    %v6294 = vsub.f32 0.0, %v6292
    %v6295 = vmul.f32 %v6293, 1.442695
    %v6296 = vpow.pop %v6295
    %v6297 = vmul.f32 %v6294, 1.442695
    %v6298 = vpow.pop %v6297
    %v6299 = vadd.f32 %v6296, 1.0
    %v6300 = vlog2.pop %v6299
    %v6301 = vmul.f32 %v6300, 0.6931472
    %v6302 = vmul.f32 -0.5, %v6296
    %v6303 = vadd.f32 %v6302, 1.0
    %v6304 = vmul.f32 %v6303, %v6296
    %v6305 = vand.u32 2147483647, %v6296
    %vm6306 = vcmp.lt.f32.partialorder %v6305, 0.0004427343
    %v6307 = vsel %vm6306, %v6304, %v6301
    %v6308 = vadd.f32 %v6298, 1.0
    %v6309 = vlog2.pop %v6308
    %v6310 = vmul.f32 %v6309, 0.6931472
    %v6311 = vmul.f32 -0.5, %v6298
    %v6312 = vadd.f32 %v6311, 1.0
    %v6313 = vmul.f32 %v6312, %v6298
    %v6314 = vand.u32 2147483647, %v6298
    %vm6315 = vcmp.lt.f32.partialorder %v6314, 0.0004427343
    %v6316 = vsel %vm6315, %v6313, %v6310
    %v6317 = vadd.f32 %v6289, %v6307
    %v6318 = vadd.f32 %v6290, %v6316
    %v6319 = vsel %vm6288, %v6317, %v6278
    %v6320 = vsel %vm6288, %v6318, %v6281
    %6321 = vst [vmem:[%s7] sm:$0xff] %v6319
    %6322 = vst [vmem:[%s7 + $0x8] sm:$0xff] %v6320
    // Predicated region
    $region54: #{mlp_encoder_forward.1} parent=1 // pred_check
      _
    $region55: #{mlp_encoder_forward.1} parent=1 // pred_check_branch
      %6324 = sbr.rel (0) target = $region57
    $region56: #{mlp_encoder_forward.1} parent=1 // pred_region
      _
    $region57: #{mlp_encoder_forward.1} parent=1 // pred_fallthru
      _
    // Predicated region
    $region58: #{mlp_encoder_forward.1} parent=1 // pred_check
      _
    $region59: #{mlp_encoder_forward.1} parent=1 // pred_check_branch
      %6326 = sbr.rel (0) target = $region61
    $region60: #{mlp_encoder_forward.1} parent=1 // pred_region
      _
    $region61: #{mlp_encoder_forward.1} parent=1 // pred_fallthru
      _
    %6327 = vsyncpa [#allocation3], 1
    %6328 = vsyncpa [#allocation5], 1
    %6329 = vsyncpa [#allocation8], 1
    %6330 = vsyncpa [#allocation11], 1

</llo_original>
